<compile_context>
chip_gen: v7x
topology: tpu7x:2x2x1
jax: 0.10.0
libtpu: 0.0.40
codegen_flags: <defaults>
</compile_context>

<pallas_src>
import math
from functools import partial

import jax
import jax.numpy as jnp
from jax.experimental import pallas as pl
from jax.experimental.pallas import tpu as pltpu

_MXU_DTYPE = jnp.float32   # set to jnp.bfloat16 on v6e/v7x (validate tolerance)


def _round_up(x: int, m: int) -> int:
    return ((x + m - 1) // m) * m


def _mm(a, b):
    """MXU matmul with f32 accumulation; operand dtype is configurable."""
    return jnp.dot(a.astype(_MXU_DTYPE), b.astype(_MXU_DTYPE),
                   preferred_element_type=jnp.float32)


def _vmem_limit_bytes(est_bytes: int) -> int:
    phys = 128 * 1024 * 1024                       # v5e/v6e default
    try:
        info = pltpu.get_tpu_info()                # v7x reports 64 MiB per TC
        phys = int(getattr(info, "vmem_capacity_bytes", phys) or phys)
    except Exception:
        pass
    budget = (phys * 3) // 4                       # headroom for Mosaic scratch
    need = max((est_bytes * 3) // 2, 16 * 1024 * 1024)
    return int(min(need, budget))


def _bspec(block_shape, index_map, single_buffer=False):
    """BlockSpec; constant-index blocks can request single buffering."""
    if single_buffer:
        return pl.BlockSpec(block_shape, index_map, pipeline_mode=pl.Buffered(1))
    return pl.BlockSpec(block_shape, index_map)


# ---------------------------------------------------------------------------
# Kernel A: base embedding (one-hot matmul gather) + fused QKV projection.
# Emits q, K^T (pre-transposed) and v; `base` is NOT written (recomputed in B).
# ---------------------------------------------------------------------------
def _embed_qkv_kernel(ids_ref, emb_ref, wqkv_ref, bqkv_ref, q_ref, kt_ref, v_ref):
    tm = ids_ref.shape[0]
    n_types, d = emb_ref.shape
    ids = ids_ref[...]                                          # (tm, 1) int32
    iota = jax.lax.broadcasted_iota(jnp.int32, (tm, n_types), 1)
    onehot = (ids == iota).astype(jnp.float32)                  # (tm, n_types)
    # one-hot matmul == exact row gather (0/1 coefficients, tiny K)
    base = jnp.dot(onehot, emb_ref[...], preferred_element_type=jnp.float32)
    qkv = _mm(base, wqkv_ref[...]) + bqkv_ref[...]              # (tm, 3d)
    q_ref[...] = qkv[:, :d]
    kt_ref[...] = qkv[:, d:2 * d].T          # K pre-transposed: (d, tm)
    v_ref[...] = qkv[:, 2 * d:]


def _fused_embed_qkv(ids2d, emb, wqkv, bqkv, *, tm, single_buffer):
    n_pad = ids2d.shape[0]
    n_types, d = emb.shape
    grid = (n_pad // tm,)
    row = lambda i: (i, 0)
    col = lambda i: (0, i)
    const = lambda i: (0, 0)

    sb = 1 if single_buffer else 2
    est = 4 * (2 * tm + sb * (n_types * d + 3 * d * d + 3 * d)
               + 2 * 3 * tm * d + tm * n_types + 6 * tm * d)
    flops = n_pad * (2 * n_types * d + 6 * d * d + 3 * d)
    bytes_accessed = 4 * (n_pad + n_types * d + 3 * d * d + 3 * d + 3 * n_pad * d)

    return pl.pallas_call(
        _embed_qkv_kernel,
        out_shape=(jax.ShapeDtypeStruct((n_pad, d), jnp.float32),    # q
                   jax.ShapeDtypeStruct((d, n_pad), jnp.float32),    # K^T
                   jax.ShapeDtypeStruct((n_pad, d), jnp.float32)),   # v
        grid_spec=pltpu.PrefetchScalarGridSpec(
            num_scalar_prefetch=0,
            grid=grid,
            in_specs=[
                pl.BlockSpec((tm, 1), row),                          # atom ids
                _bspec((n_types, d), const, single_buffer),          # emb table
                _bspec((d, 3 * d), const, single_buffer),            # W_qkv
                _bspec((1, 3 * d), const, single_buffer),            # b_qkv
            ],
            out_specs=[pl.BlockSpec((tm, d), row),
                       pl.BlockSpec((d, tm), col),
                       pl.BlockSpec((tm, d), row)],
        ),
        compiler_params=pltpu.CompilerParams(
            dimension_semantics=("parallel",),
            vmem_limit_bytes=_vmem_limit_bytes(est)),
        cost_estimate=pl.CostEstimate(flops=int(flops), transcendentals=0,
                                      bytes_accessed=int(bytes_accessed)),
    )(ids2d, emb, wqkv, bqkv)


# ---------------------------------------------------------------------------
# Kernel B: KV-tiled online-softmax neighborhood attention + residual +
# LayerNorm + 2-layer SiLU MLP, fully fused.  Empty KV tiles are skipped.
# ---------------------------------------------------------------------------
def _attn_ln_mlp_kernel(flags_ref, ids_ref, emb_ref, q_ref, kt_ref, v_ref,
                        mask_ref, gamma_ref, beta_ref, w1_ref, b1_ref,
                        w2_ref, b2_ref, o_ref, m_sc, l_sc, acc_sc,
                        *, scale, eps):
    qi = pl.program_id(0)
    kv = pl.program_id(1)
    num_kv = pl.num_programs(1)

    @pl.when(kv == 0)
    def _init():
        m_sc[...] = jnp.full_like(m_sc, -1e30)
        l_sc[...] = jnp.zeros_like(l_sc)
        acc_sc[...] = jnp.zeros_like(acc_sc)

    @pl.when(flags_ref[qi * num_kv + kv] != 0)          # skip empty KV tiles
    def _update():
        counts = mask_ref[...].astype(jnp.float32)              # (tm, tk) edge counts
        scores = _mm(q_ref[...], kt_ref[...]) * scale           # (tm, tk)
        masked = jnp.where(counts > 0.0, scores, -1e30)
        m_prev = m_sc[...]
        m_new = jnp.maximum(m_prev, jnp.max(masked, axis=-1, keepdims=True))
        alpha = jnp.exp(m_prev - m_new)
        p = jnp.exp(masked - m_new) * counts                    # counts weight dup edges
        l_sc[...] = alpha * l_sc[...] + jnp.sum(p, axis=-1, keepdims=True)
        acc_sc[...] = alpha * acc_sc[...] + _mm(p, v_ref[...])
        m_sc[...] = m_new

    @pl.when(kv == num_kv - 1)
    def _finalize():
        # Recompute base embedding from ids + tiny table (no HBM round-trip).
        tm = ids_ref.shape[0]
        n_types = emb_ref.shape[0]
        iota = jax.lax.broadcasted_iota(jnp.int32, (tm, n_types), 1)
        onehot = (ids_ref[...] == iota).astype(jnp.float32)
        base = jnp.dot(onehot, emb_ref[...], preferred_element_type=jnp.float32)

        inv_l = pl.reciprocal(jnp.maximum(l_sc[...], 1e-30))    # exact; empty
        h = base + acc_sc[...] * inv_l                          # rows -> +0
        mu = jnp.mean(h, axis=-1, keepdims=True)                # LayerNorm
        var = jnp.mean(jnp.square(h - mu), axis=-1, keepdims=True)
        h = (h - mu) * jax.lax.rsqrt(var + eps)
        h = h * gamma_ref[...] + beta_ref[...]

        y = _mm(h, w1_ref[...]) + b1_ref[...]
        y = y * jax.nn.sigmoid(y)                               # SiLU
        y = _mm(y, w2_ref[...]) + b2_ref[...]
        y = y * jax.nn.sigmoid(y)                               # SiLU
        o_ref[...] = y.astype(o_ref.dtype)


def _fused_attn_ln_mlp(flags, ids2d, emb, q, kt, v, mask, gamma, beta,
                       w1, b1, w2, b2, *, tm, tk, single_buffer):
    n_pad, d = q.shape
    n_types = emb.shape[0]
    num_q = n_pad // tm
    num_kv = n_pad // tk

    row = lambda i, k, f: (i, 0)
    const = lambda i, k, f: (0, 0)

    def _kv_sel(i, k, f):
        # Redirect DMAs of empty tiles to block 0 so consecutive skipped steps
        # do not re-fetch anything (compute is gated by the same flag).
        return jnp.where(f[i * num_kv + k] != 0, k, 0)

    kt_map = lambda i, k, f: (0, _kv_sel(i, k, f))
    v_map = lambda i, k, f: (_kv_sel(i, k, f), 0)
    mask_map = lambda i, k, f: (i, _kv_sel(i, k, f))

    sb = 1 if single_buffer else 2
    est = 4 * (2 * tm + 2 * tm * d + 2 * (d * tk + tk * d)
               + sb * (n_types * d + 2 * d * d + 4 * d)
               + 2 * tm * d + tm * d + 2 * tm
               + 4 * tm * tk + 5 * tm * d) + 2 * tm * tk        # int8 mask
    flops = (4 * n_pad * n_pad * d + 6 * n_pad * n_pad
             + 4 * n_pad * d * d + 2 * n_pad * n_types * d + 20 * n_pad * d)
    transcendentals = 2 * n_pad * n_pad + 2 * n_pad * d + 2 * n_pad
    bytes_accessed = (4 * (4 * n_pad * d + n_pad + n_types * d + 2 * d * d + 6 * d)
                      + n_pad * n_pad)

    kernel = partial(_attn_ln_mlp_kernel, scale=1.0 / math.sqrt(d), eps=1e-5)
    return pl.pallas_call(
        kernel,
        out_shape=jax.ShapeDtypeStruct((n_pad, d), jnp.float32),
        grid_spec=pltpu.PrefetchScalarGridSpec(
            num_scalar_prefetch=1,                               # tile flags
            grid=(num_q, num_kv),
            in_specs=[
                pl.BlockSpec((tm, 1), row),                      # atom ids (q tile)
                _bspec((n_types, d), const, single_buffer),      # embedding table
                pl.BlockSpec((tm, d), row),                      # queries (q tile)
                pl.BlockSpec((d, tk), kt_map),                   # K^T tile
                pl.BlockSpec((tk, d), v_map),                    # V tile
                pl.BlockSpec((tm, tk), mask_map),                # int8 edge counts
                _bspec((1, d), const, single_buffer),            # ln gamma
                _bspec((1, d), const, single_buffer),            # ln beta
                _bspec((d, d), const, single_buffer),            # mlp W1
                _bspec((1, d), const, single_buffer),            # mlp b1
                _bspec((d, d), const, single_buffer),            # mlp W2
                _bspec((1, d), const, single_buffer),            # mlp b2
            ],
            out_specs=pl.BlockSpec((tm, d), row),
            scratch_shapes=[pltpu.VMEM((tm, 1), jnp.float32),    # running max m
                            pltpu.VMEM((tm, 1), jnp.float32),    # running sum l
                            pltpu.VMEM((tm, d), jnp.float32)],   # running acc
        ),
        compiler_params=pltpu.CompilerParams(
            dimension_semantics=("parallel", "arbitrary"),
            vmem_limit_bytes=_vmem_limit_bytes(est)),
        cost_estimate=pl.CostEstimate(flops=int(flops),
                                      transcendentals=int(transcendentals),
                                      bytes_accessed=int(bytes_accessed)),
    )(flags, ids2d, emb, q, kt, v, mask, gamma, beta, w1, b1, w2, b2)


# ---------------------------------------------------------------------------
# Parameters (mirrors the PyTorch module's submodules).
# ---------------------------------------------------------------------------
def init_params(key, n_atom_types: int, embedding_dim: int, dtype=jnp.float32):
    d = embedding_dim
    ks = jax.random.split(key, 11)

    def linear(kw, kb, fan_in, fan_out):
        bound = 1.0 / math.sqrt(fan_in)
        wgt = jax.random.uniform(kw, (fan_in, fan_out), dtype, -bound, bound)
        bia = jax.random.uniform(kb, (1, fan_out), dtype, -bound, bound)
        return wgt, bia

    emb = jax.random.normal(ks[0], (n_atom_types, d), dtype)    # nn.Embedding
    wq, bq = linear(ks[1], ks[2], d, d)
    wk, bk = linear(ks[3], ks[4], d, d)
    wv, bv = linear(ks[5], ks[6], d, d)
    w1, b1 = linear(ks[7], ks[8], d, d)                         # final_mlp L1
    w2, b2 = linear(ks[9], ks[10], d, d)                        # final_mlp L2
    gamma = jnp.ones((1, d), dtype)
    beta = jnp.zeros((1, d), dtype)
    return dict(emb=emb, wq=wq, bq=bq, wk=wk, bk=bk, wv=wv, bv=bv,
                gamma=gamma, beta=beta, w1=w1, b1=b1, w2=w2, b2=b2)


# ---------------------------------------------------------------------------
# Forward pass (AttentionAtomEmbedding.forward equivalent).
# ---------------------------------------------------------------------------
@partial(jax.jit, static_argnames=("max_tile", "single_buffer_consts"))
def _forward_impl(params, atom_features, bond_atom_indices, *,
                  max_tile=256, single_buffer_consts=True):
    ids = atom_features.astype(jnp.int32).reshape(-1)       # .long().squeeze(-1)
    n_atoms = ids.shape[0]

    # Pad the atom count so both grid axes tile evenly (padded atoms have no
    # edges, are skipped by the tile flags, and are sliced off at the end).
    tm = min(max_tile, _round_up(n_atoms, 8))
    tk = tm
    n_pad = _round_up(n_atoms, tm)
    num_q = n_pad // tm
    num_kv = n_pad // tk

    ids2d = jnp.zeros((n_pad, 1), jnp.int32).at[:n_atoms, 0].set(ids)

    neighbor = bond_atom_indices[:, 0].astype(jnp.int32)
    center = bond_atom_indices[:, 1].astype(jnp.int32)

    # Dense adjacency-count matrix in int8 (duplicate-edge counts are tiny).
    # TODO(synk): replace with a padded per-center CSR neighbor list + manual
    # K/V gather (paged-attention style) to remove the quadratic buffer.
    mask = jnp.zeros((n_pad, n_pad), jnp.int8).at[center, neighbor].add(
        jnp.int8(1))

    # Per-(q-tile, kv-tile) nonzero flags for block-sparse skipping (1-D so the
    # SMEM footprint stays small).
    flags = jnp.zeros((num_q, num_kv), jnp.int32).at[
        center // tm, neighbor // tk].add(1)
    flags = (flags > 0).astype(jnp.int32).reshape(-1)

    # Fused (d, 3d) QKV weight: one wide matmul fills the 256-wide MXU better.
    wqkv = jnp.concatenate([params["wq"], params["wk"], params["wv"]], axis=1)
    bqkv = jnp.concatenate([params["bq"], params["bk"], params["bv"]], axis=1)

    q, kt, v = _fused_embed_qkv(ids2d, params["emb"], wqkv, bqkv,
                                tm=tm, single_buffer=single_buffer_consts)

    out = _fused_attn_ln_mlp(
        flags, ids2d, params["emb"], q, kt, v, mask,
        params["gamma"], params["beta"], params["w1"], params["b1"],
        params["w2"], params["b2"], tm=tm, tk=tk,
        single_buffer=single_buffer_consts)

    return out[:n_atoms]


def attention_atom_embedding_forward(params, atom_features, bond_atom_indices,
                                     *, max_tile: int = 256):
    try:
        return _forward_impl(params, atom_features, bond_atom_indices,
                             max_tile=max_tile, single_buffer_consts=True)
    except Exception:
        # Fallback if this JAX/Mosaic build rejects pl.Buffered(1) single
        # buffering of constant blocks: use default double buffering.
        return _forward_impl(params, atom_features, bond_atom_indices,
                             max_tile=max_tile, single_buffer_consts=False)


forward = attention_atom_embedding_forward


# ---------------------------------------------------------------------------
# Pure-JAX reference (edge-list scatter formulation, mirroring the PyTorch code).
# ---------------------------------------------------------------------------
def reference_forward(params, atom_features, bond_atom_indices):
    hp = jax.lax.Precision.HIGHEST
    ids = atom_features.astype(jnp.int32).reshape(-1)
    base = params["emb"][ids]
    q = jnp.dot(base, params["wq"], precision=hp) + params["bq"]
    k = jnp.dot(base, params["wk"], precision=hp) + params["bk"]
    v = jnp.dot(base, params["wv"], precision=hp) + params["bv"]

    neighbor = bond_atom_indices[:, 0]
    center = bond_atom_indices[:, 1]
    nk = k[neighbor]
    nv = v[neighbor]
    cq = q[center]
    d = q.shape[-1]
    scores = jnp.sum(cq * nk, axis=-1) / math.sqrt(d)

    n = base.shape[0]
    m = jax.ops.segment_max(scores, center, num_segments=n)
    e = jnp.exp(scores - m[center])
    s = jax.ops.segment_sum(e, center, num_segments=n)
    w = e / s[center]
    attn = jax.ops.segment_sum(w[:, None] * nv, center, num_segments=n)

    h = base + attn
    mu = jnp.mean(h, axis=-1, keepdims=True)
    var = jnp.mean((h - mu) ** 2, axis=-1, keepdims=True)
    h = (h - mu) / jnp.sqrt(var + 1e-5)
    h = h * params["gamma"] + params["beta"]

    y = jnp.dot(h, params["w1"], precision=hp) + params["b1"]
    y = y * jax.nn.sigmoid(y)
    y = jnp.dot(y, params["w2"], precision=hp) + params["b2"]
    y = y * jax.nn.sigmoid(y)
    return y


if __name__ == "__main__":
    key = jax.random.PRNGKey(0)
    k_param, k_atoms = jax.random.split(key)

    n_atom_types, embedding_dim, n_atoms = 10, 128, 64
    params = init_params(k_param, n_atom_types, embedding_dim)

    # graph.atom_features: [N, 1] (stored as float, cast to long in forward)
    atom_features = jax.random.randint(
        k_atoms, (n_atoms, 1), 0, n_atom_types).astype(jnp.float32)

    # graph.bond_atom_indices: [E, 2] with columns (neighbor, center).
    # Bidirectional chain over atoms 0..59; atoms 60..63 are isolated
    # (exercises the empty-neighborhood path -> zero attention output).
    src = jnp.arange(0, 59, dtype=jnp.int32)
    e_fwd = jnp.stack([src, src + 1], axis=1)
    e_bwd = jnp.stack([src + 1, src], axis=1)
    bond_atom_indices = jnp.concatenate([e_fwd, e_bwd], axis=0)   # [118, 2]

    out = forward(params, atom_features, bond_atom_indices)
    jax.block_until_ready(out)

    ref = reference_forward(params, atom_features, bond_atom_indices)
    assert out.shape == (n_atoms, embedding_dim)
    assert jnp.allclose(out, ref, atol=1e-4, rtol=1e-4), "mismatch vs reference"

    print("KERNEL_OK")
</pallas_src>

<mosaic_0001>
module attributes {stable_mosaic.version = 11 : i64} {
  func.func @_embed_qkv_kernel(%arg0: i32, %arg1: memref<64x1xi32, #tpu.memory_space<vmem>>, %arg2: memref<10x128xf32, #tpu.memory_space<vmem>>, %arg3: memref<128x384xf32, #tpu.memory_space<vmem>>, %arg4: memref<1x384xf32, #tpu.memory_space<vmem>>, %arg5: memref<64x128xf32, #tpu.memory_space<vmem>>, %arg6: memref<128x64xf32, #tpu.memory_space<vmem>>, %arg7: memref<64x128xf32, #tpu.memory_space<vmem>>) attributes {dimension_semantics = [#tpu.dimension_semantics<parallel>], iteration_bounds = array<i64: 1>, scalar_prefetch = 0 : i64, scratch_operands = 0 : i64, tpu.core_type = #tpu.core_type<tc>, window_params = [{transform_indices = @transform_0, window_bounds = array<i64: 64, 1>}, {pipeline_mode = #tpu.pipeline_mode<synchronous>, transform_indices = @transform_1, window_bounds = array<i64: 10, 128>}, {pipeline_mode = #tpu.pipeline_mode<synchronous>, transform_indices = @transform_2, window_bounds = array<i64: 128, 384>}, {pipeline_mode = #tpu.pipeline_mode<synchronous>, transform_indices = @transform_3, window_bounds = array<i64: 1, 384>}, {transform_indices = @transform_4, window_bounds = array<i64: 64, 128>}, {transform_indices = @transform_5, window_bounds = array<i64: 128, 64>}, {transform_indices = @transform_6, window_bounds = array<i64: 64, 128>}]} {
    %c0 = arith.constant 0 : index
    %c0_0 = arith.constant 0 : index
    %0 = vector.load %arg1[%c0, %c0_0] : memref<64x1xi32, #tpu.memory_space<vmem>>, vector<64x1xi32>
    %1 = tpu.iota {dimensions = array<i32: 1>} : vector<64x10xi32>
    %2 = vector.broadcast %0 : vector<64x1xi32> to vector<64x10xi32>
    %3 = arith.cmpi eq, %2, %1 : vector<64x10xi32>
    %4 = arith.extui %3 : vector<64x10xi1> to vector<64x10xi32>
    %5 = arith.sitofp %4 : vector<64x10xi32> to vector<64x10xf32>
    %c0_1 = arith.constant 0 : index
    %c0_2 = arith.constant 0 : index
    %6 = vector.load %arg2[%c0_1, %c0_2] : memref<10x128xf32, #tpu.memory_space<vmem>>, vector<10x128xf32>
    %cst = arith.constant dense<0.000000e+00> : vector<64x128xf32>
    %7 = tpu.matmul %5, %6, %cst {dimension_numbers = #tpu.dot_dimension_numbers<[1], [0], [0], [1], [0, 0, 1, 1], [], []>} : vector<64x10xf32>, vector<10x128xf32>, vector<64x128xf32> -> vector<64x128xf32>
    %c0_3 = arith.constant 0 : index
    %c0_4 = arith.constant 0 : index
    %8 = vector.load %arg3[%c0_3, %c0_4] : memref<128x384xf32, #tpu.memory_space<vmem>>, vector<128x384xf32>
    %cst_5 = arith.constant dense<0.000000e+00> : vector<64x384xf32>
    %9 = tpu.matmul %7, %8, %cst_5 {dimension_numbers = #tpu.dot_dimension_numbers<[1], [0], [0], [1], [0, 0, 1, 1], [], []>} : vector<64x128xf32>, vector<128x384xf32>, vector<64x384xf32> -> vector<64x384xf32>
    %c0_6 = arith.constant 0 : index
    %c0_7 = arith.constant 0 : index
    %10 = vector.load %arg4[%c0_6, %c0_7] : memref<1x384xf32, #tpu.memory_space<vmem>>, vector<1x384xf32>
    %11 = vector.broadcast %10 : vector<1x384xf32> to vector<64x384xf32>
    %12 = arith.addf %9, %11 : vector<64x384xf32>
    %13 = vector.extract_strided_slice %12 {offsets = [0, 0], sizes = [64, 128], strides = [1, 1]} : vector<64x384xf32> to vector<64x128xf32>
    %c0_8 = arith.constant 0 : index
    %c0_9 = arith.constant 0 : index
    %14 = vector.load %arg5[%c0_8, %c0_9] : memref<64x128xf32, #tpu.memory_space<vmem>>, vector<64x128xf32>
    tpu.vector_store %arg5[%c0_8, %c0_9], %13 {strides = array<i32>} : memref<64x128xf32, #tpu.memory_space<vmem>>, vector<64x128xf32>,
    %15 = vector.extract_strided_slice %12 {offsets = [0, 128], sizes = [64, 128], strides = [1, 1]} : vector<64x384xf32> to vector<64x128xf32>
    %16 = tpu.transpose %15, [1, 0] : vector<64x128xf32> -> vector<128x64xf32>
    %c0_10 = arith.constant 0 : index
    %c0_11 = arith.constant 0 : index
    %17 = vector.load %arg6[%c0_10, %c0_11] : memref<128x64xf32, #tpu.memory_space<vmem>>, vector<128x64xf32>
    tpu.vector_store %arg6[%c0_10, %c0_11], %16 {strides = array<i32>} : memref<128x64xf32, #tpu.memory_space<vmem>>, vector<128x64xf32>,
    %18 = vector.extract_strided_slice %12 {offsets = [0, 256], sizes = [64, 128], strides = [1, 1]} : vector<64x384xf32> to vector<64x128xf32>
    %c0_12 = arith.constant 0 : index
    %c0_13 = arith.constant 0 : index
    %19 = vector.load %arg7[%c0_12, %c0_13] : memref<64x128xf32, #tpu.memory_space<vmem>>, vector<64x128xf32>
    tpu.vector_store %arg7[%c0_12, %c0_13], %18 {strides = array<i32>} : memref<64x128xf32, #tpu.memory_space<vmem>>, vector<64x128xf32>,
    return
  }
  func.func @transform_0(%arg0: i32) -> (i32, i32) {
    %c0_i32 = arith.constant 0 : i32
    %c0_i32_0 = arith.constant 0 : i32
    return %arg0, %c0_i32 : i32, i32
  }
  func.func @transform_1(%arg0: i32) -> (i32, i32) {
    %c0_i32 = arith.constant 0 : i32
    %c0_i32_0 = arith.constant 0 : i32
    %c0_i32_1 = arith.constant 0 : i32
    return %c0_i32, %c0_i32_0 : i32, i32
  }
  func.func @transform_2(%arg0: i32) -> (i32, i32) {
    %c0_i32 = arith.constant 0 : i32
    %c0_i32_0 = arith.constant 0 : i32
    %c0_i32_1 = arith.constant 0 : i32
    return %c0_i32, %c0_i32_0 : i32, i32
  }
  func.func @transform_3(%arg0: i32) -> (i32, i32) {
    %c0_i32 = arith.constant 0 : i32
    %c0_i32_0 = arith.constant 0 : i32
    %c0_i32_1 = arith.constant 0 : i32
    return %c0_i32, %c0_i32_0 : i32, i32
  }
  func.func @transform_4(%arg0: i32) -> (i32, i32) {
    %c0_i32 = arith.constant 0 : i32
    %c0_i32_0 = arith.constant 0 : i32
    return %arg0, %c0_i32 : i32, i32
  }
  func.func @transform_5(%arg0: i32) -> (i32, i32) {
    %c0_i32 = arith.constant 0 : i32
    %c0_i32_0 = arith.constant 0 : i32
    return %c0_i32, %arg0 : i32, i32
  }
  func.func @transform_6(%arg0: i32) -> (i32, i32) {
    %c0_i32 = arith.constant 0 : i32
    %c0_i32_0 = arith.constant 0 : i32
    return %arg0, %c0_i32 : i32, i32
  }
}

module attributes {stable_mosaic.version = 11 : i64} {
  func.func @_attn_ln_mlp_kernel(%arg0: i32, %arg1: i32, %arg2: memref<1xi32, #tpu.memory_space<smem>>, %arg3: memref<64x1xi32, #tpu.memory_space<vmem>>, %arg4: memref<10x128xf32, #tpu.memory_space<vmem>>, %arg5: memref<64x128xf32, #tpu.memory_space<vmem>>, %arg6: memref<128x64xf32, #tpu.memory_space<vmem>>, %arg7: memref<64x128xf32, #tpu.memory_space<vmem>>, %arg8: memref<64x64xi8, #tpu.memory_space<vmem>>, %arg9: memref<1x128xf32, #tpu.memory_space<vmem>>, %arg10: memref<1x128xf32, #tpu.memory_space<vmem>>, %arg11: memref<128x128xf32, #tpu.memory_space<vmem>>, %arg12: memref<1x128xf32, #tpu.memory_space<vmem>>, %arg13: memref<128x128xf32, #tpu.memory_space<vmem>>, %arg14: memref<1x128xf32, #tpu.memory_space<vmem>>, %arg15: memref<64x128xf32, #tpu.memory_space<vmem>>, %arg16: memref<64x1xf32, #tpu.memory_space<vmem>>, %arg17: memref<64x1xf32, #tpu.memory_space<vmem>>, %arg18: memref<64x128xf32, #tpu.memory_space<vmem>>) attributes {dimension_semantics = [#tpu.dimension_semantics<parallel>, #tpu.dimension_semantics<arbitrary>], iteration_bounds = array<i64: 1, 1>, scalar_prefetch = 1 : i64, scratch_operands = 3 : i64, tpu.core_type = #tpu.core_type<tc>, window_params = [{transform_indices = @transform_0, window_bounds = array<i64: 64, 1>}, {pipeline_mode = #tpu.pipeline_mode<synchronous>, transform_indices = @transform_1, window_bounds = array<i64: 10, 128>}, {transform_indices = @transform_2, window_bounds = array<i64: 64, 128>}, {transform_indices = @transform_3, window_bounds = array<i64: 128, 64>}, {transform_indices = @transform_4, window_bounds = array<i64: 64, 128>}, {transform_indices = @transform_5, window_bounds = array<i64: 64, 64>}, {pipeline_mode = #tpu.pipeline_mode<synchronous>, transform_indices = @transform_6, window_bounds = array<i64: 1, 128>}, {pipeline_mode = #tpu.pipeline_mode<synchronous>, transform_indices = @transform_7, window_bounds = array<i64: 1, 128>}, {pipeline_mode = #tpu.pipeline_mode<synchronous>, transform_indices = @transform_8, window_bounds = array<i64: 128, 128>}, {pipeline_mode = #tpu.pipeline_mode<synchronous>, transform_indices = @transform_9, window_bounds = array<i64: 1, 128>}, {pipeline_mode = #tpu.pipeline_mode<synchronous>, transform_indices = @transform_10, window_bounds = array<i64: 128, 128>}, {pipeline_mode = #tpu.pipeline_mode<synchronous>, transform_indices = @transform_11, window_bounds = array<i64: 1, 128>}, {transform_indices = @transform_12, window_bounds = array<i64: 64, 128>}]} {
    %c0_i32 = arith.constant 0 : i32
    %0 = arith.cmpi eq, %arg1, %c0_i32 : i32
    %1 = arith.extui %0 : i1 to i32
    %c0_i32_0 = arith.constant 0 : i32
    %2 = arith.cmpi ne, %1, %c0_i32_0 : i32
    scf.if %2 {
      %cst = arith.constant -1.000000e+30 : f32
      %13 = vector.broadcast %cst : f32 to vector<64x1xf32>
      %c0 = arith.constant 0 : index
      %c0_5 = arith.constant 0 : index
      %14 = vector.load %arg16[%c0, %c0_5] : memref<64x1xf32, #tpu.memory_space<vmem>>, vector<64x1xf32>
      tpu.vector_store %arg16[%c0, %c0_5], %13 {strides = array<i32>} : memref<64x1xf32, #tpu.memory_space<vmem>>, vector<64x1xf32>,
      %cst_6 = arith.constant 0.000000e+00 : f32
      %15 = vector.broadcast %cst_6 : f32 to vector<64x1xf32>
      %c0_7 = arith.constant 0 : index
      %c0_8 = arith.constant 0 : index
      %16 = vector.load %arg17[%c0_7, %c0_8] : memref<64x1xf32, #tpu.memory_space<vmem>>, vector<64x1xf32>
      tpu.vector_store %arg17[%c0_7, %c0_8], %15 {strides = array<i32>} : memref<64x1xf32, #tpu.memory_space<vmem>>, vector<64x1xf32>,
      %cst_9 = arith.constant 0.000000e+00 : f32
      %17 = vector.broadcast %cst_9 : f32 to vector<64x128xf32>
      %c0_10 = arith.constant 0 : index
      %c0_11 = arith.constant 0 : index
      %18 = vector.load %arg18[%c0_10, %c0_11] : memref<64x128xf32, #tpu.memory_space<vmem>>, vector<64x128xf32>
      tpu.vector_store %arg18[%c0_10, %c0_11], %17 {strides = array<i32>} : memref<64x128xf32, #tpu.memory_space<vmem>>, vector<64x128xf32>,
    } else {
    }
    %c1_i32 = arith.constant 1 : i32
    %3 = arith.muli %arg0, %c1_i32 : i32
    %4 = arith.addi %3, %arg1 : i32
    %5 = arith.index_cast %4 : i32 to index
    %6 = memref.load %arg2[%5] : memref<1xi32, #tpu.memory_space<smem>>
    %c0_i32_1 = arith.constant 0 : i32
    %7 = arith.cmpi ne, %6, %c0_i32_1 : i32
    %8 = arith.extui %7 : i1 to i32
    %c0_i32_2 = arith.constant 0 : i32
    %9 = arith.cmpi ne, %8, %c0_i32_2 : i32
    scf.if %9 {
      %c0 = arith.constant 0 : index
      %c0_5 = arith.constant 0 : index
      %13 = vector.load %arg8[%c0, %c0_5] : memref<64x64xi8, #tpu.memory_space<vmem>>, vector<64x64xi8>
      %14 = arith.sitofp %13 : vector<64x64xi8> to vector<64x64xf32>
      %c0_6 = arith.constant 0 : index
      %c0_7 = arith.constant 0 : index
      %15 = vector.load %arg5[%c0_6, %c0_7] : memref<64x128xf32, #tpu.memory_space<vmem>>, vector<64x128xf32>
      %c0_8 = arith.constant 0 : index
      %c0_9 = arith.constant 0 : index
      %16 = vector.load %arg6[%c0_8, %c0_9] : memref<128x64xf32, #tpu.memory_space<vmem>>, vector<128x64xf32>
      %cst = arith.constant dense<0.000000e+00> : vector<64x64xf32>
      %17 = tpu.matmul %15, %16, %cst {dimension_numbers = #tpu.dot_dimension_numbers<[1], [0], [0], [1], [0, 0, 1, 1], [], []>} : vector<64x128xf32>, vector<128x64xf32>, vector<64x64xf32> -> vector<64x64xf32>
      %cst_10 = arith.constant 0.0883883461 : f32
      %18 = vector.broadcast %cst_10 : f32 to vector<64x64xf32>
      %19 = arith.mulf %17, %18 : vector<64x64xf32>
      %cst_11 = arith.constant 0.000000e+00 : f32
      %20 = vector.broadcast %cst_11 : f32 to vector<64x64xf32>
      %21 = arith.cmpf ogt, %14, %20 : vector<64x64xf32>
      %cst_12 = arith.constant -1.000000e+30 : f32
      %22 = vector.broadcast %cst_12 : f32 to vector<64x64xf32>
      %23 = arith.select %21, %19, %22 : vector<64x64xi1>, vector<64x64xf32>
      %c0_13 = arith.constant 0 : index
      %c0_14 = arith.constant 0 : index
      %24 = vector.load %arg16[%c0_13, %c0_14] : memref<64x1xf32, #tpu.memory_space<vmem>>, vector<64x1xf32>
      %cst_15 = arith.constant dense<0xFF800000> : vector<64xf32>
      %25 = vector.multi_reduction <maximumf>, %23, %cst_15 [1] : vector<64x64xf32> to vector<64xf32>
      %26 = vector.shape_cast %25 : vector<64xf32> to vector<64x1xf32>
      %27 = arith.maximumf %24, %26 : vector<64x1xf32>
      %28 = arith.subf %24, %27 : vector<64x1xf32>
      %29 = math.exp %28 : vector<64x1xf32>
      %30 = vector.broadcast %27 : vector<64x1xf32> to vector<64x64xf32>
      %31 = arith.subf %23, %30 : vector<64x64xf32>
      %32 = math.exp %31 : vector<64x64xf32>
      %33 = arith.mulf %32, %14 : vector<64x64xf32>
      %c0_16 = arith.constant 0 : index
      %c0_17 = arith.constant 0 : index
      %34 = vector.load %arg17[%c0_16, %c0_17] : memref<64x1xf32, #tpu.memory_space<vmem>>, vector<64x1xf32>
      %35 = arith.mulf %29, %34 : vector<64x1xf32>
      %cst_18 = arith.constant dense<0.000000e+00> : vector<64xf32>
      %36 = vector.multi_reduction <add>, %33, %cst_18 [1] : vector<64x64xf32> to vector<64xf32>
      %37 = vector.shape_cast %36 : vector<64xf32> to vector<64x1xf32>
      %38 = arith.addf %35, %37 : vector<64x1xf32>
      %c0_19 = arith.constant 0 : index
      %c0_20 = arith.constant 0 : index
      %39 = vector.load %arg17[%c0_19, %c0_20] : memref<64x1xf32, #tpu.memory_space<vmem>>, vector<64x1xf32>
      tpu.vector_store %arg17[%c0_19, %c0_20], %38 {strides = array<i32>} : memref<64x1xf32, #tpu.memory_space<vmem>>, vector<64x1xf32>,
      %c0_21 = arith.constant 0 : index
      %c0_22 = arith.constant 0 : index
      %40 = vector.load %arg18[%c0_21, %c0_22] : memref<64x128xf32, #tpu.memory_space<vmem>>, vector<64x128xf32>
      %41 = vector.broadcast %29 : vector<64x1xf32> to vector<64x128xf32>
      %42 = arith.mulf %41, %40 : vector<64x128xf32>
      %c0_23 = arith.constant 0 : index
      %c0_24 = arith.constant 0 : index
      %43 = vector.load %arg7[%c0_23, %c0_24] : memref<64x128xf32, #tpu.memory_space<vmem>>, vector<64x128xf32>
      %cst_25 = arith.constant dense<0.000000e+00> : vector<64x128xf32>
      %44 = tpu.matmul %33, %43, %cst_25 {dimension_numbers = #tpu.dot_dimension_numbers<[1], [0], [0], [1], [0, 0, 1, 1], [], []>} : vector<64x64xf32>, vector<64x128xf32>, vector<64x128xf32> -> vector<64x128xf32>
      %45 = arith.addf %42, %44 : vector<64x128xf32>
      %c0_26 = arith.constant 0 : index
      %c0_27 = arith.constant 0 : index
      %46 = vector.load %arg18[%c0_26, %c0_27] : memref<64x128xf32, #tpu.memory_space<vmem>>, vector<64x128xf32>
      tpu.vector_store %arg18[%c0_26, %c0_27], %45 {strides = array<i32>} : memref<64x128xf32, #tpu.memory_space<vmem>>, vector<64x128xf32>,
      %c0_28 = arith.constant 0 : index
      %c0_29 = arith.constant 0 : index
      %47 = vector.load %arg16[%c0_28, %c0_29] : memref<64x1xf32, #tpu.memory_space<vmem>>, vector<64x1xf32>
      tpu.vector_store %arg16[%c0_28, %c0_29], %27 {strides = array<i32>} : memref<64x1xf32, #tpu.memory_space<vmem>>, vector<64x1xf32>,
    } else {
    }
    %c0_i32_3 = arith.constant 0 : i32
    %10 = arith.cmpi eq, %arg1, %c0_i32_3 : i32
    %11 = arith.extui %10 : i1 to i32
    %c0_i32_4 = arith.constant 0 : i32
    %12 = arith.cmpi ne, %11, %c0_i32_4 : i32
    scf.if %12 {
      %13 = tpu.iota {dimensions = array<i32: 1>} : vector<64x10xi32>
      %c0 = arith.constant 0 : index
      %c0_5 = arith.constant 0 : index
      %14 = vector.load %arg3[%c0, %c0_5] : memref<64x1xi32, #tpu.memory_space<vmem>>, vector<64x1xi32>
      %15 = vector.broadcast %14 : vector<64x1xi32> to vector<64x10xi32>
      %16 = arith.cmpi eq, %15, %13 : vector<64x10xi32>
      %17 = arith.extui %16 : vector<64x10xi1> to vector<64x10xi32>
      %18 = arith.sitofp %17 : vector<64x10xi32> to vector<64x10xf32>
      %c0_6 = arith.constant 0 : index
      %c0_7 = arith.constant 0 : index
      %19 = vector.load %arg4[%c0_6, %c0_7] : memref<10x128xf32, #tpu.memory_space<vmem>>, vector<10x128xf32>
      %cst = arith.constant dense<0.000000e+00> : vector<64x128xf32>
      %20 = tpu.matmul %18, %19, %cst {dimension_numbers = #tpu.dot_dimension_numbers<[1], [0], [0], [1], [0, 0, 1, 1], [], []>} : vector<64x10xf32>, vector<10x128xf32>, vector<64x128xf32> -> vector<64x128xf32>
      %c0_8 = arith.constant 0 : index
      %c0_9 = arith.constant 0 : index
      %21 = vector.load %arg17[%c0_8, %c0_9] : memref<64x1xf32, #tpu.memory_space<vmem>>, vector<64x1xf32>
      %cst_10 = arith.constant 1.000000e-30 : f32
      %22 = vector.broadcast %cst_10 : f32 to vector<64x1xf32>
      %23 = arith.maximumf %21, %22 : vector<64x1xf32>
      %24 = tpu.reciprocal %23 : vector<64x1xf32> -> vector<64x1xf32>
      %c0_11 = arith.constant 0 : index
      %c0_12 = arith.constant 0 : index
      %25 = vector.load %arg18[%c0_11, %c0_12] : memref<64x128xf32, #tpu.memory_space<vmem>>, vector<64x128xf32>
      %26 = vector.broadcast %24 : vector<64x1xf32> to vector<64x128xf32>
      %27 = arith.mulf %25, %26 : vector<64x128xf32>
      %28 = arith.addf %20, %27 : vector<64x128xf32>
      %cst_13 = arith.constant dense<0.000000e+00> : vector<64xf32>
      %29 = vector.multi_reduction <add>, %28, %cst_13 [1] : vector<64x128xf32> to vector<64xf32>
      %30 = vector.shape_cast %29 : vector<64xf32> to vector<64x1xf32>
      %cst_14 = arith.constant 1.280000e+02 : f32
      %31 = vector.broadcast %cst_14 : f32 to vector<64x1xf32>
      %32 = arith.divf %30, %31 : vector<64x1xf32>
      %33 = vector.broadcast %32 : vector<64x1xf32> to vector<64x128xf32>
      %34 = arith.subf %28, %33 : vector<64x128xf32>
      %35 = arith.mulf %34, %34 : vector<64x128xf32>
      %cst_15 = arith.constant dense<0.000000e+00> : vector<64xf32>
      %36 = vector.multi_reduction <add>, %35, %cst_15 [1] : vector<64x128xf32> to vector<64xf32>
      %37 = vector.shape_cast %36 : vector<64xf32> to vector<64x1xf32>
      %cst_16 = arith.constant 1.280000e+02 : f32
      %38 = vector.broadcast %cst_16 : f32 to vector<64x1xf32>
      %39 = arith.divf %37, %38 : vector<64x1xf32>
      %40 = vector.broadcast %32 : vector<64x1xf32> to vector<64x128xf32>
      %41 = arith.subf %28, %40 : vector<64x128xf32>
      %cst_17 = arith.constant 9.99999974E-6 : f32
      %42 = vector.broadcast %cst_17 : f32 to vector<64x1xf32>
      %43 = arith.addf %39, %42 : vector<64x1xf32>
      %44 = math.rsqrt %43 : vector<64x1xf32>
      %45 = vector.broadcast %44 : vector<64x1xf32> to vector<64x128xf32>
      %46 = arith.mulf %41, %45 : vector<64x128xf32>
      %c0_18 = arith.constant 0 : index
      %c0_19 = arith.constant 0 : index
      %47 = vector.load %arg9[%c0_18, %c0_19] : memref<1x128xf32, #tpu.memory_space<vmem>>, vector<1x128xf32>
      %48 = vector.broadcast %47 : vector<1x128xf32> to vector<64x128xf32>
      %49 = arith.mulf %46, %48 : vector<64x128xf32>
      %c0_20 = arith.constant 0 : index
      %c0_21 = arith.constant 0 : index
      %50 = vector.load %arg10[%c0_20, %c0_21] : memref<1x128xf32, #tpu.memory_space<vmem>>, vector<1x128xf32>
      %51 = vector.broadcast %50 : vector<1x128xf32> to vector<64x128xf32>
      %52 = arith.addf %49, %51 : vector<64x128xf32>
      %c0_22 = arith.constant 0 : index
      %c0_23 = arith.constant 0 : index
      %53 = vector.load %arg11[%c0_22, %c0_23] : memref<128x128xf32, #tpu.memory_space<vmem>>, vector<128x128xf32>
      %cst_24 = arith.constant dense<0.000000e+00> : vector<64x128xf32>
      %54 = tpu.matmul %52, %53, %cst_24 {dimension_numbers = #tpu.dot_dimension_numbers<[1], [0], [0], [1], [0, 0, 1, 1], [], []>} : vector<64x128xf32>, vector<128x128xf32>, vector<64x128xf32> -> vector<64x128xf32>
      %c0_25 = arith.constant 0 : index
      %c0_26 = arith.constant 0 : index
      %55 = vector.load %arg12[%c0_25, %c0_26] : memref<1x128xf32, #tpu.memory_space<vmem>>, vector<1x128xf32>
      %56 = vector.broadcast %55 : vector<1x128xf32> to vector<64x128xf32>
      %57 = arith.addf %54, %56 : vector<64x128xf32>
      %58 = arith.negf %57 : vector<64x128xf32>
      %59 = math.exp %58 : vector<64x128xf32>
      %cst_27 = arith.constant 1.000000e+00 : f32
      %60 = vector.broadcast %cst_27 : f32 to vector<64x128xf32>
      %61 = arith.addf %60, %59 : vector<64x128xf32>
      %62 = arith.divf %60, %61 : vector<64x128xf32>
      %63 = arith.mulf %57, %62 : vector<64x128xf32>
      %c0_28 = arith.constant 0 : index
      %c0_29 = arith.constant 0 : index
      %64 = vector.load %arg13[%c0_28, %c0_29] : memref<128x128xf32, #tpu.memory_space<vmem>>, vector<128x128xf32>
      %cst_30 = arith.constant dense<0.000000e+00> : vector<64x128xf32>
      %65 = tpu.matmul %63, %64, %cst_30 {dimension_numbers = #tpu.dot_dimension_numbers<[1], [0], [0], [1], [0, 0, 1, 1], [], []>} : vector<64x128xf32>, vector<128x128xf32>, vector<64x128xf32> -> vector<64x128xf32>
      %c0_31 = arith.constant 0 : index
      %c0_32 = arith.constant 0 : index
      %66 = vector.load %arg14[%c0_31, %c0_32] : memref<1x128xf32, #tpu.memory_space<vmem>>, vector<1x128xf32>
      %67 = vector.broadcast %66 : vector<1x128xf32> to vector<64x128xf32>
      %68 = arith.addf %65, %67 : vector<64x128xf32>
      %69 = arith.negf %68 : vector<64x128xf32>
      %70 = math.exp %69 : vector<64x128xf32>
      %cst_33 = arith.constant 1.000000e+00 : f32
      %71 = vector.broadcast %cst_33 : f32 to vector<64x128xf32>
      %72 = arith.addf %71, %70 : vector<64x128xf32>
      %73 = arith.divf %71, %72 : vector<64x128xf32>
      %74 = arith.mulf %68, %73 : vector<64x128xf32>
      %c0_34 = arith.constant 0 : index
      %c0_35 = arith.constant 0 : index
      %75 = vector.load %arg15[%c0_34, %c0_35] : memref<64x128xf32, #tpu.memory_space<vmem>>, vector<64x128xf32>
      tpu.vector_store %arg15[%c0_34, %c0_35], %74 {strides = array<i32>} : memref<64x128xf32, #tpu.memory_space<vmem>>, vector<64x128xf32>,
    } else {
    }
    return
  }
  func.func @transform_0(%arg0: i32, %arg1: i32, %arg2: memref<1xi32, #tpu.memory_space<smem>>) -> (i32, i32) {
    %c0_i32 = arith.constant 0 : i32
    %c0_i32_0 = arith.constant 0 : i32
    return %arg0, %c0_i32 : i32, i32
  }
  func.func @transform_1(%arg0: i32, %arg1: i32, %arg2: memref<1xi32, #tpu.memory_space<smem>>) -> (i32, i32) {
    %c0_i32 = arith.constant 0 : i32
    %c0_i32_0 = arith.constant 0 : i32
    %c0_i32_1 = arith.constant 0 : i32
    return %c0_i32, %c0_i32_0 : i32, i32
  }
  func.func @transform_2(%arg0: i32, %arg1: i32, %arg2: memref<1xi32, #tpu.memory_space<smem>>) -> (i32, i32) {
    %c0_i32 = arith.constant 0 : i32
    %c0_i32_0 = arith.constant 0 : i32
    return %arg0, %c0_i32 : i32, i32
  }
  func.func @transform_3(%arg0: i32, %arg1: i32, %arg2: memref<1xi32, #tpu.memory_space<smem>>) -> (i32, i32) {
    %c1_i32 = arith.constant 1 : i32
    %0 = arith.muli %arg0, %c1_i32 : i32
    %1 = arith.addi %0, %arg1 : i32
    %2 = arith.index_cast %1 : i32 to index
    %3 = memref.load %arg2[%2] : memref<1xi32, #tpu.memory_space<smem>>
    %c0_i32 = arith.constant 0 : i32
    %4 = arith.cmpi ne, %3, %c0_i32 : i32
    %c0_i32_0 = arith.constant 0 : i32
    %5 = arith.select %4, %arg1, %c0_i32_0 : i32
    %c0_i32_1 = arith.constant 0 : i32
    %c0_i32_2 = arith.constant 0 : i32
    return %c0_i32_1, %5 : i32, i32
  }
  func.func @transform_4(%arg0: i32, %arg1: i32, %arg2: memref<1xi32, #tpu.memory_space<smem>>) -> (i32, i32) {
    %c1_i32 = arith.constant 1 : i32
    %0 = arith.muli %arg0, %c1_i32 : i32
    %1 = arith.addi %0, %arg1 : i32
    %2 = arith.index_cast %1 : i32 to index
    %3 = memref.load %arg2[%2] : memref<1xi32, #tpu.memory_space<smem>>
    %c0_i32 = arith.constant 0 : i32
    %4 = arith.cmpi ne, %3, %c0_i32 : i32
    %c0_i32_0 = arith.constant 0 : i32
    %5 = arith.select %4, %arg1, %c0_i32_0 : i32
    %c0_i32_1 = arith.constant 0 : i32
    %c0_i32_2 = arith.constant 0 : i32
    return %5, %c0_i32_1 : i32, i32
  }
  func.func @transform_5(%arg0: i32, %arg1: i32, %arg2: memref<1xi32, #tpu.memory_space<smem>>) -> (i32, i32) {
    %c1_i32 = arith.constant 1 : i32
    %0 = arith.muli %arg0, %c1_i32 : i32
    %1 = arith.addi %0, %arg1 : i32
    %2 = arith.index_cast %1 : i32 to index
    %3 = memref.load %arg2[%2] : memref<1xi32, #tpu.memory_space<smem>>
    %c0_i32 = arith.constant 0 : i32
    %4 = arith.cmpi ne, %3, %c0_i32 : i32
    %c0_i32_0 = arith.constant 0 : i32
    %5 = arith.select %4, %arg1, %c0_i32_0 : i32
    %c0_i32_1 = arith.constant 0 : i32
    return %arg0, %5 : i32, i32
  }
  func.func @transform_6(%arg0: i32, %arg1: i32, %arg2: memref<1xi32, #tpu.memory_space<smem>>) -> (i32, i32) {
    %c0_i32 = arith.constant 0 : i32
    %c0_i32_0 = arith.constant 0 : i32
    %c0_i32_1 = arith.constant 0 : i32
    return %c0_i32, %c0_i32_0 : i32, i32
  }
  func.func @transform_7(%arg0: i32, %arg1: i32, %arg2: memref<1xi32, #tpu.memory_space<smem>>) -> (i32, i32) {
    %c0_i32 = arith.constant 0 : i32
    %c0_i32_0 = arith.constant 0 : i32
    %c0_i32_1 = arith.constant 0 : i32
    return %c0_i32, %c0_i32_0 : i32, i32
  }
  func.func @transform_8(%arg0: i32, %arg1: i32, %arg2: memref<1xi32, #tpu.memory_space<smem>>) -> (i32, i32) {
    %c0_i32 = arith.constant 0 : i32
    %c0_i32_0 = arith.constant 0 : i32
    %c0_i32_1 = arith.constant 0 : i32
    return %c0_i32, %c0_i32_0 : i32, i32
  }
  func.func @transform_9(%arg0: i32, %arg1: i32, %arg2: memref<1xi32, #tpu.memory_space<smem>>) -> (i32, i32) {
    %c0_i32 = arith.constant 0 : i32
    %c0_i32_0 = arith.constant 0 : i32
    %c0_i32_1 = arith.constant 0 : i32
    return %c0_i32, %c0_i32_0 : i32, i32
  }
  func.func @transform_10(%arg0: i32, %arg1: i32, %arg2: memref<1xi32, #tpu.memory_space<smem>>) -> (i32, i32) {
    %c0_i32 = arith.constant 0 : i32
    %c0_i32_0 = arith.constant 0 : i32
    %c0_i32_1 = arith.constant 0 : i32
    return %c0_i32, %c0_i32_0 : i32, i32
  }
  func.func @transform_11(%arg0: i32, %arg1: i32, %arg2: memref<1xi32, #tpu.memory_space<smem>>) -> (i32, i32) {
    %c0_i32 = arith.constant 0 : i32
    %c0_i32_0 = arith.constant 0 : i32
    %c0_i32_1 = arith.constant 0 : i32
    return %c0_i32, %c0_i32_0 : i32, i32
  }
  func.func @transform_12(%arg0: i32, %arg1: i32, %arg2: memref<1xi32, #tpu.memory_space<smem>>) -> (i32, i32) {
    %c0_i32 = arith.constant 0 : i32
    %c0_i32_0 = arith.constant 0 : i32
    return %arg0, %c0_i32 : i32, i32
  }
}

module attributes {stable_mosaic.version = 11 : i64} {
  func.func @_embed_qkv_kernel(%arg0: i32, %arg1: memref<64x1xi32, #tpu.memory_space<vmem>>, %arg2: memref<10x128xf32, #tpu.memory_space<vmem>>, %arg3: memref<128x384xf32, #tpu.memory_space<vmem>>, %arg4: memref<1x384xf32, #tpu.memory_space<vmem>>, %arg5: memref<64x128xf32, #tpu.memory_space<vmem>>, %arg6: memref<128x64xf32, #tpu.memory_space<vmem>>, %arg7: memref<64x128xf32, #tpu.memory_space<vmem>>) attributes {dimension_semantics = [#tpu.dimension_semantics<parallel>], iteration_bounds = array<i64: 1>, scalar_prefetch = 0 : i64, scratch_operands = 0 : i64, tpu.core_type = #tpu.core_type<tc>, window_params = [{transform_indices = @transform_0, window_bounds = array<i64: 64, 1>}, {pipeline_mode = #tpu.pipeline_mode<synchronous>, transform_indices = @transform_1, window_bounds = array<i64: 10, 128>}, {pipeline_mode = #tpu.pipeline_mode<synchronous>, transform_indices = @transform_2, window_bounds = array<i64: 128, 384>}, {pipeline_mode = #tpu.pipeline_mode<synchronous>, transform_indices = @transform_3, window_bounds = array<i64: 1, 384>}, {transform_indices = @transform_4, window_bounds = array<i64: 64, 128>}, {transform_indices = @transform_5, window_bounds = array<i64: 128, 64>}, {transform_indices = @transform_6, window_bounds = array<i64: 64, 128>}]} {
    %c0 = arith.constant 0 : index
    %c0_0 = arith.constant 0 : index
    %0 = vector.load %arg1[%c0, %c0_0] : memref<64x1xi32, #tpu.memory_space<vmem>>, vector<64x1xi32>
    %1 = tpu.iota {dimensions = array<i32: 1>} : vector<64x10xi32>
    %2 = vector.broadcast %0 : vector<64x1xi32> to vector<64x10xi32>
    %3 = arith.cmpi eq, %2, %1 : vector<64x10xi32>
    %4 = arith.extui %3 : vector<64x10xi1> to vector<64x10xi32>
    %5 = arith.sitofp %4 : vector<64x10xi32> to vector<64x10xf32>
    %c0_1 = arith.constant 0 : index
    %c0_2 = arith.constant 0 : index
    %6 = vector.load %arg2[%c0_1, %c0_2] : memref<10x128xf32, #tpu.memory_space<vmem>>, vector<10x128xf32>
    %cst = arith.constant dense<0.000000e+00> : vector<64x128xf32>
    %7 = tpu.matmul %5, %6, %cst {dimension_numbers = #tpu.dot_dimension_numbers<[1], [0], [0], [1], [0, 0, 1, 1], [], []>} : vector<64x10xf32>, vector<10x128xf32>, vector<64x128xf32> -> vector<64x128xf32>
    %c0_3 = arith.constant 0 : index
    %c0_4 = arith.constant 0 : index
    %8 = vector.load %arg3[%c0_3, %c0_4] : memref<128x384xf32, #tpu.memory_space<vmem>>, vector<128x384xf32>
    %cst_5 = arith.constant dense<0.000000e+00> : vector<64x384xf32>
    %9 = tpu.matmul %7, %8, %cst_5 {dimension_numbers = #tpu.dot_dimension_numbers<[1], [0], [0], [1], [0, 0, 1, 1], [], []>} : vector<64x128xf32>, vector<128x384xf32>, vector<64x384xf32> -> vector<64x384xf32>
    %c0_6 = arith.constant 0 : index
    %c0_7 = arith.constant 0 : index
    %10 = vector.load %arg4[%c0_6, %c0_7] : memref<1x384xf32, #tpu.memory_space<vmem>>, vector<1x384xf32>
    %11 = vector.broadcast %10 : vector<1x384xf32> to vector<64x384xf32>
    %12 = arith.addf %9, %11 : vector<64x384xf32>
    %13 = vector.extract_strided_slice %12 {offsets = [0, 0], sizes = [64, 128], strides = [1, 1]} : vector<64x384xf32> to vector<64x128xf32>
    %c0_8 = arith.constant 0 : index
    %c0_9 = arith.constant 0 : index
    %14 = vector.load %arg5[%c0_8, %c0_9] : memref<64x128xf32, #tpu.memory_space<vmem>>, vector<64x128xf32>
    tpu.vector_store %arg5[%c0_8, %c0_9], %13 {strides = array<i32>} : memref<64x128xf32, #tpu.memory_space<vmem>>, vector<64x128xf32>,
    %15 = vector.extract_strided_slice %12 {offsets = [0, 128], sizes = [64, 128], strides = [1, 1]} : vector<64x384xf32> to vector<64x128xf32>
    %16 = tpu.transpose %15, [1, 0] : vector<64x128xf32> -> vector<128x64xf32>
    %c0_10 = arith.constant 0 : index
    %c0_11 = arith.constant 0 : index
    %17 = vector.load %arg6[%c0_10, %c0_11] : memref<128x64xf32, #tpu.memory_space<vmem>>, vector<128x64xf32>
    tpu.vector_store %arg6[%c0_10, %c0_11], %16 {strides = array<i32>} : memref<128x64xf32, #tpu.memory_space<vmem>>, vector<128x64xf32>,
    %18 = vector.extract_strided_slice %12 {offsets = [0, 256], sizes = [64, 128], strides = [1, 1]} : vector<64x384xf32> to vector<64x128xf32>
    %c0_12 = arith.constant 0 : index
    %c0_13 = arith.constant 0 : index
    %19 = vector.load %arg7[%c0_12, %c0_13] : memref<64x128xf32, #tpu.memory_space<vmem>>, vector<64x128xf32>
    tpu.vector_store %arg7[%c0_12, %c0_13], %18 {strides = array<i32>} : memref<64x128xf32, #tpu.memory_space<vmem>>, vector<64x128xf32>,
    return
  }
  func.func @transform_0(%arg0: i32) -> (i32, i32) {
    %c0_i32 = arith.constant 0 : i32
    %c0_i32_0 = arith.constant 0 : i32
    return %arg0, %c0_i32 : i32, i32
  }
  func.func @transform_1(%arg0: i32) -> (i32, i32) {
    %c0_i32 = arith.constant 0 : i32
    %c0_i32_0 = arith.constant 0 : i32
    %c0_i32_1 = arith.constant 0 : i32
    return %c0_i32, %c0_i32_0 : i32, i32
  }
  func.func @transform_2(%arg0: i32) -> (i32, i32) {
    %c0_i32 = arith.constant 0 : i32
    %c0_i32_0 = arith.constant 0 : i32
    %c0_i32_1 = arith.constant 0 : i32
    return %c0_i32, %c0_i32_0 : i32, i32
  }
  func.func @transform_3(%arg0: i32) -> (i32, i32) {
    %c0_i32 = arith.constant 0 : i32
    %c0_i32_0 = arith.constant 0 : i32
    %c0_i32_1 = arith.constant 0 : i32
    return %c0_i32, %c0_i32_0 : i32, i32
  }
  func.func @transform_4(%arg0: i32) -> (i32, i32) {
    %c0_i32 = arith.constant 0 : i32
    %c0_i32_0 = arith.constant 0 : i32
    return %arg0, %c0_i32 : i32, i32
  }
  func.func @transform_5(%arg0: i32) -> (i32, i32) {
    %c0_i32 = arith.constant 0 : i32
    %c0_i32_0 = arith.constant 0 : i32
    return %c0_i32, %arg0 : i32, i32
  }
  func.func @transform_6(%arg0: i32) -> (i32, i32) {
    %c0_i32 = arith.constant 0 : i32
    %c0_i32_0 = arith.constant 0 : i32
    return %arg0, %c0_i32 : i32, i32
  }
}

module attributes {stable_mosaic.version = 11 : i64} {
  func.func @_attn_ln_mlp_kernel(%arg0: i32, %arg1: i32, %arg2: memref<1xi32, #tpu.memory_space<smem>>, %arg3: memref<64x1xi32, #tpu.memory_space<vmem>>, %arg4: memref<10x128xf32, #tpu.memory_space<vmem>>, %arg5: memref<64x128xf32, #tpu.memory_space<vmem>>, %arg6: memref<128x64xf32, #tpu.memory_space<vmem>>, %arg7: memref<64x128xf32, #tpu.memory_space<vmem>>, %arg8: memref<64x64xi8, #tpu.memory_space<vmem>>, %arg9: memref<1x128xf32, #tpu.memory_space<vmem>>, %arg10: memref<1x128xf32, #tpu.memory_space<vmem>>, %arg11: memref<128x128xf32, #tpu.memory_space<vmem>>, %arg12: memref<1x128xf32, #tpu.memory_space<vmem>>, %arg13: memref<128x128xf32, #tpu.memory_space<vmem>>, %arg14: memref<1x128xf32, #tpu.memory_space<vmem>>, %arg15: memref<64x128xf32, #tpu.memory_space<vmem>>, %arg16: memref<64x1xf32, #tpu.memory_space<vmem>>, %arg17: memref<64x1xf32, #tpu.memory_space<vmem>>, %arg18: memref<64x128xf32, #tpu.memory_space<vmem>>) attributes {dimension_semantics = [#tpu.dimension_semantics<parallel>, #tpu.dimension_semantics<arbitrary>], iteration_bounds = array<i64: 1, 1>, scalar_prefetch = 1 : i64, scratch_operands = 3 : i64, tpu.core_type = #tpu.core_type<tc>, window_params = [{transform_indices = @transform_0, window_bounds = array<i64: 64, 1>}, {pipeline_mode = #tpu.pipeline_mode<synchronous>, transform_indices = @transform_1, window_bounds = array<i64: 10, 128>}, {transform_indices = @transform_2, window_bounds = array<i64: 64, 128>}, {transform_indices = @transform_3, window_bounds = array<i64: 128, 64>}, {transform_indices = @transform_4, window_bounds = array<i64: 64, 128>}, {transform_indices = @transform_5, window_bounds = array<i64: 64, 64>}, {pipeline_mode = #tpu.pipeline_mode<synchronous>, transform_indices = @transform_6, window_bounds = array<i64: 1, 128>}, {pipeline_mode = #tpu.pipeline_mode<synchronous>, transform_indices = @transform_7, window_bounds = array<i64: 1, 128>}, {pipeline_mode = #tpu.pipeline_mode<synchronous>, transform_indices = @transform_8, window_bounds = array<i64: 128, 128>}, {pipeline_mode = #tpu.pipeline_mode<synchronous>, transform_indices = @transform_9, window_bounds = array<i64: 1, 128>}, {pipeline_mode = #tpu.pipeline_mode<synchronous>, transform_indices = @transform_10, window_bounds = array<i64: 128, 128>}, {pipeline_mode = #tpu.pipeline_mode<synchronous>, transform_indices = @transform_11, window_bounds = array<i64: 1, 128>}, {transform_indices = @transform_12, window_bounds = array<i64: 64, 128>}]} {
    %c0_i32 = arith.constant 0 : i32
    %0 = arith.cmpi eq, %arg1, %c0_i32 : i32
    %1 = arith.extui %0 : i1 to i32
    %c0_i32_0 = arith.constant 0 : i32
    %2 = arith.cmpi ne, %1, %c0_i32_0 : i32
    scf.if %2 {
      %cst = arith.constant -1.000000e+30 : f32
      %13 = vector.broadcast %cst : f32 to vector<64x1xf32>
      %c0 = arith.constant 0 : index
      %c0_5 = arith.constant 0 : index
      %14 = vector.load %arg16[%c0, %c0_5] : memref<64x1xf32, #tpu.memory_space<vmem>>, vector<64x1xf32>
      tpu.vector_store %arg16[%c0, %c0_5], %13 {strides = array<i32>} : memref<64x1xf32, #tpu.memory_space<vmem>>, vector<64x1xf32>,
      %cst_6 = arith.constant 0.000000e+00 : f32
      %15 = vector.broadcast %cst_6 : f32 to vector<64x1xf32>
      %c0_7 = arith.constant 0 : index
      %c0_8 = arith.constant 0 : index
      %16 = vector.load %arg17[%c0_7, %c0_8] : memref<64x1xf32, #tpu.memory_space<vmem>>, vector<64x1xf32>
      tpu.vector_store %arg17[%c0_7, %c0_8], %15 {strides = array<i32>} : memref<64x1xf32, #tpu.memory_space<vmem>>, vector<64x1xf32>,
      %cst_9 = arith.constant 0.000000e+00 : f32
      %17 = vector.broadcast %cst_9 : f32 to vector<64x128xf32>
      %c0_10 = arith.constant 0 : index
      %c0_11 = arith.constant 0 : index
      %18 = vector.load %arg18[%c0_10, %c0_11] : memref<64x128xf32, #tpu.memory_space<vmem>>, vector<64x128xf32>
      tpu.vector_store %arg18[%c0_10, %c0_11], %17 {strides = array<i32>} : memref<64x128xf32, #tpu.memory_space<vmem>>, vector<64x128xf32>,
    } else {
    }
    %c1_i32 = arith.constant 1 : i32
    %3 = arith.muli %arg0, %c1_i32 : i32
    %4 = arith.addi %3, %arg1 : i32
    %5 = arith.index_cast %4 : i32 to index
    %6 = memref.load %arg2[%5] : memref<1xi32, #tpu.memory_space<smem>>
    %c0_i32_1 = arith.constant 0 : i32
    %7 = arith.cmpi ne, %6, %c0_i32_1 : i32
    %8 = arith.extui %7 : i1 to i32
    %c0_i32_2 = arith.constant 0 : i32
    %9 = arith.cmpi ne, %8, %c0_i32_2 : i32
    scf.if %9 {
      %c0 = arith.constant 0 : index
      %c0_5 = arith.constant 0 : index
      %13 = vector.load %arg8[%c0, %c0_5] : memref<64x64xi8, #tpu.memory_space<vmem>>, vector<64x64xi8>
      %14 = arith.sitofp %13 : vector<64x64xi8> to vector<64x64xf32>
      %c0_6 = arith.constant 0 : index
      %c0_7 = arith.constant 0 : index
      %15 = vector.load %arg5[%c0_6, %c0_7] : memref<64x128xf32, #tpu.memory_space<vmem>>, vector<64x128xf32>
      %c0_8 = arith.constant 0 : index
      %c0_9 = arith.constant 0 : index
      %16 = vector.load %arg6[%c0_8, %c0_9] : memref<128x64xf32, #tpu.memory_space<vmem>>, vector<128x64xf32>
      %cst = arith.constant dense<0.000000e+00> : vector<64x64xf32>
      %17 = tpu.matmul %15, %16, %cst {dimension_numbers = #tpu.dot_dimension_numbers<[1], [0], [0], [1], [0, 0, 1, 1], [], []>} : vector<64x128xf32>, vector<128x64xf32>, vector<64x64xf32> -> vector<64x64xf32>
      %cst_10 = arith.constant 0.0883883461 : f32
      %18 = vector.broadcast %cst_10 : f32 to vector<64x64xf32>
      %19 = arith.mulf %17, %18 : vector<64x64xf32>
      %cst_11 = arith.constant 0.000000e+00 : f32
      %20 = vector.broadcast %cst_11 : f32 to vector<64x64xf32>
      %21 = arith.cmpf ogt, %14, %20 : vector<64x64xf32>
      %cst_12 = arith.constant -1.000000e+30 : f32
      %22 = vector.broadcast %cst_12 : f32 to vector<64x64xf32>
      %23 = arith.select %21, %19, %22 : vector<64x64xi1>, vector<64x64xf32>
      %c0_13 = arith.constant 0 : index
      %c0_14 = arith.constant 0 : index
      %24 = vector.load %arg16[%c0_13, %c0_14] : memref<64x1xf32, #tpu.memory_space<vmem>>, vector<64x1xf32>
      %cst_15 = arith.constant dense<0xFF800000> : vector<64xf32>
      %25 = vector.multi_reduction <maximumf>, %23, %cst_15 [1] : vector<64x64xf32> to vector<64xf32>
      %26 = vector.shape_cast %25 : vector<64xf32> to vector<64x1xf32>
      %27 = arith.maximumf %24, %26 : vector<64x1xf32>
      %28 = arith.subf %24, %27 : vector<64x1xf32>
      %29 = math.exp %28 : vector<64x1xf32>
      %30 = vector.broadcast %27 : vector<64x1xf32> to vector<64x64xf32>
      %31 = arith.subf %23, %30 : vector<64x64xf32>
      %32 = math.exp %31 : vector<64x64xf32>
      %33 = arith.mulf %32, %14 : vector<64x64xf32>
      %c0_16 = arith.constant 0 : index
      %c0_17 = arith.constant 0 : index
      %34 = vector.load %arg17[%c0_16, %c0_17] : memref<64x1xf32, #tpu.memory_space<vmem>>, vector<64x1xf32>
      %35 = arith.mulf %29, %34 : vector<64x1xf32>
      %cst_18 = arith.constant dense<0.000000e+00> : vector<64xf32>
      %36 = vector.multi_reduction <add>, %33, %cst_18 [1] : vector<64x64xf32> to vector<64xf32>
      %37 = vector.shape_cast %36 : vector<64xf32> to vector<64x1xf32>
      %38 = arith.addf %35, %37 : vector<64x1xf32>
      %c0_19 = arith.constant 0 : index
      %c0_20 = arith.constant 0 : index
      %39 = vector.load %arg17[%c0_19, %c0_20] : memref<64x1xf32, #tpu.memory_space<vmem>>, vector<64x1xf32>
      tpu.vector_store %arg17[%c0_19, %c0_20], %38 {strides = array<i32>} : memref<64x1xf32, #tpu.memory_space<vmem>>, vector<64x1xf32>,
      %c0_21 = arith.constant 0 : index
      %c0_22 = arith.constant 0 : index
      %40 = vector.load %arg18[%c0_21, %c0_22] : memref<64x128xf32, #tpu.memory_space<vmem>>, vector<64x128xf32>
      %41 = vector.broadcast %29 : vector<64x1xf32> to vector<64x128xf32>
      %42 = arith.mulf %41, %40 : vector<64x128xf32>
      %c0_23 = arith.constant 0 : index
      %c0_24 = arith.constant 0 : index
      %43 = vector.load %arg7[%c0_23, %c0_24] : memref<64x128xf32, #tpu.memory_space<vmem>>, vector<64x128xf32>
      %cst_25 = arith.constant dense<0.000000e+00> : vector<64x128xf32>
      %44 = tpu.matmul %33, %43, %cst_25 {dimension_numbers = #tpu.dot_dimension_numbers<[1], [0], [0], [1], [0, 0, 1, 1], [], []>} : vector<64x64xf32>, vector<64x128xf32>, vector<64x128xf32> -> vector<64x128xf32>
      %45 = arith.addf %42, %44 : vector<64x128xf32>
      %c0_26 = arith.constant 0 : index
      %c0_27 = arith.constant 0 : index
      %46 = vector.load %arg18[%c0_26, %c0_27] : memref<64x128xf32, #tpu.memory_space<vmem>>, vector<64x128xf32>
      tpu.vector_store %arg18[%c0_26, %c0_27], %45 {strides = array<i32>} : memref<64x128xf32, #tpu.memory_space<vmem>>, vector<64x128xf32>,
      %c0_28 = arith.constant 0 : index
      %c0_29 = arith.constant 0 : index
      %47 = vector.load %arg16[%c0_28, %c0_29] : memref<64x1xf32, #tpu.memory_space<vmem>>, vector<64x1xf32>
      tpu.vector_store %arg16[%c0_28, %c0_29], %27 {strides = array<i32>} : memref<64x1xf32, #tpu.memory_space<vmem>>, vector<64x1xf32>,
    } else {
    }
    %c0_i32_3 = arith.constant 0 : i32
    %10 = arith.cmpi eq, %arg1, %c0_i32_3 : i32
    %11 = arith.extui %10 : i1 to i32
    %c0_i32_4 = arith.constant 0 : i32
    %12 = arith.cmpi ne, %11, %c0_i32_4 : i32
    scf.if %12 {
      %13 = tpu.iota {dimensions = array<i32: 1>} : vector<64x10xi32>
      %c0 = arith.constant 0 : index
      %c0_5 = arith.constant 0 : index
      %14 = vector.load %arg3[%c0, %c0_5] : memref<64x1xi32, #tpu.memory_space<vmem>>, vector<64x1xi32>
      %15 = vector.broadcast %14 : vector<64x1xi32> to vector<64x10xi32>
      %16 = arith.cmpi eq, %15, %13 : vector<64x10xi32>
      %17 = arith.extui %16 : vector<64x10xi1> to vector<64x10xi32>
      %18 = arith.sitofp %17 : vector<64x10xi32> to vector<64x10xf32>
      %c0_6 = arith.constant 0 : index
      %c0_7 = arith.constant 0 : index
      %19 = vector.load %arg4[%c0_6, %c0_7] : memref<10x128xf32, #tpu.memory_space<vmem>>, vector<10x128xf32>
      %cst = arith.constant dense<0.000000e+00> : vector<64x128xf32>
      %20 = tpu.matmul %18, %19, %cst {dimension_numbers = #tpu.dot_dimension_numbers<[1], [0], [0], [1], [0, 0, 1, 1], [], []>} : vector<64x10xf32>, vector<10x128xf32>, vector<64x128xf32> -> vector<64x128xf32>
      %c0_8 = arith.constant 0 : index
      %c0_9 = arith.constant 0 : index
      %21 = vector.load %arg17[%c0_8, %c0_9] : memref<64x1xf32, #tpu.memory_space<vmem>>, vector<64x1xf32>
      %cst_10 = arith.constant 1.000000e-30 : f32
      %22 = vector.broadcast %cst_10 : f32 to vector<64x1xf32>
      %23 = arith.maximumf %21, %22 : vector<64x1xf32>
      %24 = tpu.reciprocal %23 : vector<64x1xf32> -> vector<64x1xf32>
      %c0_11 = arith.constant 0 : index
      %c0_12 = arith.constant 0 : index
      %25 = vector.load %arg18[%c0_11, %c0_12] : memref<64x128xf32, #tpu.memory_space<vmem>>, vector<64x128xf32>
      %26 = vector.broadcast %24 : vector<64x1xf32> to vector<64x128xf32>
      %27 = arith.mulf %25, %26 : vector<64x128xf32>
      %28 = arith.addf %20, %27 : vector<64x128xf32>
      %cst_13 = arith.constant dense<0.000000e+00> : vector<64xf32>
      %29 = vector.multi_reduction <add>, %28, %cst_13 [1] : vector<64x128xf32> to vector<64xf32>
      %30 = vector.shape_cast %29 : vector<64xf32> to vector<64x1xf32>
      %cst_14 = arith.constant 1.280000e+02 : f32
      %31 = vector.broadcast %cst_14 : f32 to vector<64x1xf32>
      %32 = arith.divf %30, %31 : vector<64x1xf32>
      %33 = vector.broadcast %32 : vector<64x1xf32> to vector<64x128xf32>
      %34 = arith.subf %28, %33 : vector<64x128xf32>
      %35 = arith.mulf %34, %34 : vector<64x128xf32>
      %cst_15 = arith.constant dense<0.000000e+00> : vector<64xf32>
      %36 = vector.multi_reduction <add>, %35, %cst_15 [1] : vector<64x128xf32> to vector<64xf32>
      %37 = vector.shape_cast %36 : vector<64xf32> to vector<64x1xf32>
      %cst_16 = arith.constant 1.280000e+02 : f32
      %38 = vector.broadcast %cst_16 : f32 to vector<64x1xf32>
      %39 = arith.divf %37, %38 : vector<64x1xf32>
      %40 = vector.broadcast %32 : vector<64x1xf32> to vector<64x128xf32>
      %41 = arith.subf %28, %40 : vector<64x128xf32>
      %cst_17 = arith.constant 9.99999974E-6 : f32
      %42 = vector.broadcast %cst_17 : f32 to vector<64x1xf32>
      %43 = arith.addf %39, %42 : vector<64x1xf32>
      %44 = math.rsqrt %43 : vector<64x1xf32>
      %45 = vector.broadcast %44 : vector<64x1xf32> to vector<64x128xf32>
      %46 = arith.mulf %41, %45 : vector<64x128xf32>
      %c0_18 = arith.constant 0 : index
      %c0_19 = arith.constant 0 : index
      %47 = vector.load %arg9[%c0_18, %c0_19] : memref<1x128xf32, #tpu.memory_space<vmem>>, vector<1x128xf32>
      %48 = vector.broadcast %47 : vector<1x128xf32> to vector<64x128xf32>
      %49 = arith.mulf %46, %48 : vector<64x128xf32>
      %c0_20 = arith.constant 0 : index
      %c0_21 = arith.constant 0 : index
      %50 = vector.load %arg10[%c0_20, %c0_21] : memref<1x128xf32, #tpu.memory_space<vmem>>, vector<1x128xf32>
      %51 = vector.broadcast %50 : vector<1x128xf32> to vector<64x128xf32>
      %52 = arith.addf %49, %51 : vector<64x128xf32>
      %c0_22 = arith.constant 0 : index
      %c0_23 = arith.constant 0 : index
      %53 = vector.load %arg11[%c0_22, %c0_23] : memref<128x128xf32, #tpu.memory_space<vmem>>, vector<128x128xf32>
      %cst_24 = arith.constant dense<0.000000e+00> : vector<64x128xf32>
      %54 = tpu.matmul %52, %53, %cst_24 {dimension_numbers = #tpu.dot_dimension_numbers<[1], [0], [0], [1], [0, 0, 1, 1], [], []>} : vector<64x128xf32>, vector<128x128xf32>, vector<64x128xf32> -> vector<64x128xf32>
      %c0_25 = arith.constant 0 : index
      %c0_26 = arith.constant 0 : index
      %55 = vector.load %arg12[%c0_25, %c0_26] : memref<1x128xf32, #tpu.memory_space<vmem>>, vector<1x128xf32>
      %56 = vector.broadcast %55 : vector<1x128xf32> to vector<64x128xf32>
      %57 = arith.addf %54, %56 : vector<64x128xf32>
      %58 = arith.negf %57 : vector<64x128xf32>
      %59 = math.exp %58 : vector<64x128xf32>
      %cst_27 = arith.constant 1.000000e+00 : f32
      %60 = vector.broadcast %cst_27 : f32 to vector<64x128xf32>
      %61 = arith.addf %60, %59 : vector<64x128xf32>
      %62 = arith.divf %60, %61 : vector<64x128xf32>
      %63 = arith.mulf %57, %62 : vector<64x128xf32>
      %c0_28 = arith.constant 0 : index
      %c0_29 = arith.constant 0 : index
      %64 = vector.load %arg13[%c0_28, %c0_29] : memref<128x128xf32, #tpu.memory_space<vmem>>, vector<128x128xf32>
      %cst_30 = arith.constant dense<0.000000e+00> : vector<64x128xf32>
      %65 = tpu.matmul %63, %64, %cst_30 {dimension_numbers = #tpu.dot_dimension_numbers<[1], [0], [0], [1], [0, 0, 1, 1], [], []>} : vector<64x128xf32>, vector<128x128xf32>, vector<64x128xf32> -> vector<64x128xf32>
      %c0_31 = arith.constant 0 : index
      %c0_32 = arith.constant 0 : index
      %66 = vector.load %arg14[%c0_31, %c0_32] : memref<1x128xf32, #tpu.memory_space<vmem>>, vector<1x128xf32>
      %67 = vector.broadcast %66 : vector<1x128xf32> to vector<64x128xf32>
      %68 = arith.addf %65, %67 : vector<64x128xf32>
      %69 = arith.negf %68 : vector<64x128xf32>
      %70 = math.exp %69 : vector<64x128xf32>
      %cst_33 = arith.constant 1.000000e+00 : f32
      %71 = vector.broadcast %cst_33 : f32 to vector<64x128xf32>
      %72 = arith.addf %71, %70 : vector<64x128xf32>
      %73 = arith.divf %71, %72 : vector<64x128xf32>
      %74 = arith.mulf %68, %73 : vector<64x128xf32>
      %c0_34 = arith.constant 0 : index
      %c0_35 = arith.constant 0 : index
      %75 = vector.load %arg15[%c0_34, %c0_35] : memref<64x128xf32, #tpu.memory_space<vmem>>, vector<64x128xf32>
      tpu.vector_store %arg15[%c0_34, %c0_35], %74 {strides = array<i32>} : memref<64x128xf32, #tpu.memory_space<vmem>>, vector<64x128xf32>,
    } else {
    }
    return
  }
  func.func @transform_0(%arg0: i32, %arg1: i32, %arg2: memref<1xi32, #tpu.memory_space<smem>>) -> (i32, i32) {
    %c0_i32 = arith.constant 0 : i32
    %c0_i32_0 = arith.constant 0 : i32
    return %arg0, %c0_i32 : i32, i32
  }
  func.func @transform_1(%arg0: i32, %arg1: i32, %arg2: memref<1xi32, #tpu.memory_space<smem>>) -> (i32, i32) {
    %c0_i32 = arith.constant 0 : i32
    %c0_i32_0 = arith.constant 0 : i32
    %c0_i32_1 = arith.constant 0 : i32
    return %c0_i32, %c0_i32_0 : i32, i32
  }
  func.func @transform_2(%arg0: i32, %arg1: i32, %arg2: memref<1xi32, #tpu.memory_space<smem>>) -> (i32, i32) {
    %c0_i32 = arith.constant 0 : i32
    %c0_i32_0 = arith.constant 0 : i32
    return %arg0, %c0_i32 : i32, i32
  }
  func.func @transform_3(%arg0: i32, %arg1: i32, %arg2: memref<1xi32, #tpu.memory_space<smem>>) -> (i32, i32) {
    %c1_i32 = arith.constant 1 : i32
    %0 = arith.muli %arg0, %c1_i32 : i32
    %1 = arith.addi %0, %arg1 : i32
    %2 = arith.index_cast %1 : i32 to index
    %3 = memref.load %arg2[%2] : memref<1xi32, #tpu.memory_space<smem>>
    %c0_i32 = arith.constant 0 : i32
    %4 = arith.cmpi ne, %3, %c0_i32 : i32
    %c0_i32_0 = arith.constant 0 : i32
    %5 = arith.select %4, %arg1, %c0_i32_0 : i32
    %c0_i32_1 = arith.constant 0 : i32
    %c0_i32_2 = arith.constant 0 : i32
    return %c0_i32_1, %5 : i32, i32
  }
  func.func @transform_4(%arg0: i32, %arg1: i32, %arg2: memref<1xi32, #tpu.memory_space<smem>>) -> (i32, i32) {
    %c1_i32 = arith.constant 1 : i32
    %0 = arith.muli %arg0, %c1_i32 : i32
    %1 = arith.addi %0, %arg1 : i32
    %2 = arith.index_cast %1 : i32 to index
    %3 = memref.load %arg2[%2] : memref<1xi32, #tpu.memory_space<smem>>
    %c0_i32 = arith.constant 0 : i32
    %4 = arith.cmpi ne, %3, %c0_i32 : i32
    %c0_i32_0 = arith.constant 0 : i32
    %5 = arith.select %4, %arg1, %c0_i32_0 : i32
    %c0_i32_1 = arith.constant 0 : i32
    %c0_i32_2 = arith.constant 0 : i32
    return %5, %c0_i32_1 : i32, i32
  }
  func.func @transform_5(%arg0: i32, %arg1: i32, %arg2: memref<1xi32, #tpu.memory_space<smem>>) -> (i32, i32) {
    %c1_i32 = arith.constant 1 : i32
    %0 = arith.muli %arg0, %c1_i32 : i32
    %1 = arith.addi %0, %arg1 : i32
    %2 = arith.index_cast %1 : i32 to index
    %3 = memref.load %arg2[%2] : memref<1xi32, #tpu.memory_space<smem>>
    %c0_i32 = arith.constant 0 : i32
    %4 = arith.cmpi ne, %3, %c0_i32 : i32
    %c0_i32_0 = arith.constant 0 : i32
    %5 = arith.select %4, %arg1, %c0_i32_0 : i32
    %c0_i32_1 = arith.constant 0 : i32
    return %arg0, %5 : i32, i32
  }
  func.func @transform_6(%arg0: i32, %arg1: i32, %arg2: memref<1xi32, #tpu.memory_space<smem>>) -> (i32, i32) {
    %c0_i32 = arith.constant 0 : i32
    %c0_i32_0 = arith.constant 0 : i32
    %c0_i32_1 = arith.constant 0 : i32
    return %c0_i32, %c0_i32_0 : i32, i32
  }
  func.func @transform_7(%arg0: i32, %arg1: i32, %arg2: memref<1xi32, #tpu.memory_space<smem>>) -> (i32, i32) {
    %c0_i32 = arith.constant 0 : i32
    %c0_i32_0 = arith.constant 0 : i32
    %c0_i32_1 = arith.constant 0 : i32
    return %c0_i32, %c0_i32_0 : i32, i32
  }
  func.func @transform_8(%arg0: i32, %arg1: i32, %arg2: memref<1xi32, #tpu.memory_space<smem>>) -> (i32, i32) {
    %c0_i32 = arith.constant 0 : i32
    %c0_i32_0 = arith.constant 0 : i32
    %c0_i32_1 = arith.constant 0 : i32
    return %c0_i32, %c0_i32_0 : i32, i32
  }
  func.func @transform_9(%arg0: i32, %arg1: i32, %arg2: memref<1xi32, #tpu.memory_space<smem>>) -> (i32, i32) {
    %c0_i32 = arith.constant 0 : i32
    %c0_i32_0 = arith.constant 0 : i32
    %c0_i32_1 = arith.constant 0 : i32
    return %c0_i32, %c0_i32_0 : i32, i32
  }
  func.func @transform_10(%arg0: i32, %arg1: i32, %arg2: memref<1xi32, #tpu.memory_space<smem>>) -> (i32, i32) {
    %c0_i32 = arith.constant 0 : i32
    %c0_i32_0 = arith.constant 0 : i32
    %c0_i32_1 = arith.constant 0 : i32
    return %c0_i32, %c0_i32_0 : i32, i32
  }
  func.func @transform_11(%arg0: i32, %arg1: i32, %arg2: memref<1xi32, #tpu.memory_space<smem>>) -> (i32, i32) {
    %c0_i32 = arith.constant 0 : i32
    %c0_i32_0 = arith.constant 0 : i32
    %c0_i32_1 = arith.constant 0 : i32
    return %c0_i32, %c0_i32_0 : i32, i32
  }
  func.func @transform_12(%arg0: i32, %arg1: i32, %arg2: memref<1xi32, #tpu.memory_space<smem>>) -> (i32, i32) {
    %c0_i32 = arith.constant 0 : i32
    %c0_i32_0 = arith.constant 0 : i32
    return %arg0, %c0_i32 : i32, i32
  }
}

</mosaic_0001>

<llo_original>
// kernel: _forward_impl.2
$region0: #{_forward_impl.2}
  #allocation0 [shape = 'u32[]', space=smem, size = 0x4, offset = 0x4, fixed_abs, tag = 'smem constant byte address 0x4 - core index']
  #allocation1 [shape = 'u32[144,128]{1,0:T(1,128)}', space=vmem, size = 0x12000, scoped, tag = 'internal scratch']
  %s0 = inlined_call_operand.vmem [shape: s32[64,1], index: 0, kind: input, shape index: {}]
  %s1 = inlined_call_operand.vmem [shape: f32[10,128], index: 1, kind: input, shape index: {}]
  %s2 = inlined_call_operand.vmem [shape: f32[128,384], index: 2, kind: input, shape index: {}]
  %s3 = inlined_call_operand.vmem [shape: f32[1,384], index: 3, kind: input, shape index: {}]
  %s4 = inlined_call_operand.vmem [shape: f32[64,128], index: 4, kind: output, shape index: {0}]
  %s5 = inlined_call_operand.vmem [shape: f32[128,64], index: 5, kind: output, shape index: {1}]
  %s6 = inlined_call_operand.vmem [shape: f32[64,128], index: 6, kind: output, shape index: {2}]
  %7 = xla_tuple %s4, %s5, %s6
  %s8 = sld [smem:[#allocation0]]
  $region42: #{_forward_impl.2} parent=0
    _
  %s10 = ssub.s32 1, %s8
  %s11 = scalar_select 0, %s10, %s8
  // Predicated region
  $region2: #{_forward_impl.2} parent=0 // pred_check
    _
  $region3: #{_forward_impl.2} parent=0 // pred_check_branch
    %13 = sbr.rel (0) target = $region5
  $region4: #{_forward_impl.2} parent=0 // pred_region
    _
  $region5: #{_forward_impl.2} parent=0 // pred_fallthru
    _
  // Predicated region
  $region6: #{_forward_impl.2} parent=0 // pred_check
    _
  $region7: #{_forward_impl.2} parent=0 // pred_check_branch
    %15 = sbr.rel (0) target = $region9
  $region8: #{_forward_impl.2} parent=0 // pred_region
    _
  $region9: #{_forward_impl.2} parent=0 // pred_fallthru
    _
  // Predicated region
  $region10: #{_forward_impl.2} parent=0 // pred_check
    _
  $region11: #{_forward_impl.2} parent=0 // pred_check_branch
    %17 = sbr.rel (0) target = $region13
  $region12: #{_forward_impl.2} parent=0 // pred_region
    _
  $region13: #{_forward_impl.2} parent=0 // pred_fallthru
    _
  // Predicated region
  $region14: #{_forward_impl.2} parent=0 // pred_check
    _
  $region15: #{_forward_impl.2} parent=0 // pred_check_branch
    %19 = sbr.rel (0) target = $region17
  $region16: #{_forward_impl.2} parent=0 // pred_region
    _
  $region17: #{_forward_impl.2} parent=0 // pred_fallthru
    _
  %v20 = vld [vmem:[%s0] sm:$0xff]
  %v21 = vld [vmem:[%s0 + $0x8] sm:$0xff]
  %v22 = vld [vmem:[%s0 + $0x10] sm:$0xff]
  %v23 = vld [vmem:[%s0 + $0x18] sm:$0xff]
  %v24 = vld [vmem:[%s0 + $0x20] sm:$0xff]
  %v25 = vld [vmem:[%s0 + $0x28] sm:$0xff]
  %v26 = vld [vmem:[%s0 + $0x30] sm:$0xff]
  %v27 = vld [vmem:[%s0 + $0x38] sm:$0xff]
  %v28 = vlaneseq
  %v29 = vand.u32 %v28, 127
  %30 = vset.pattern.permute.xlu0 0
  %31 = vperm.xlu0 %30, %v20
  %v32 = vpop.permute.xlu0 %31
  %33 = vset.pattern.permute.xlu0 0
  %34 = vperm.xlu0 %33, %v21
  %v35 = vpop.permute.xlu0 %34
  %36 = vset.pattern.permute.xlu0 0
  %37 = vperm.xlu0 %36, %v22
  %v38 = vpop.permute.xlu0 %37
  %39 = vset.pattern.permute.xlu0 0
  %40 = vperm.xlu0 %39, %v23
  %v41 = vpop.permute.xlu0 %40
  %42 = vset.pattern.permute.xlu0 0
  %43 = vperm.xlu0 %42, %v24
  %v44 = vpop.permute.xlu0 %43
  %45 = vset.pattern.permute.xlu0 0
  %46 = vperm.xlu0 %45, %v25
  %v47 = vpop.permute.xlu0 %46
  %48 = vset.pattern.permute.xlu0 0
  %49 = vperm.xlu0 %48, %v26
  %v50 = vpop.permute.xlu0 %49
  %51 = vset.pattern.permute.xlu0 0
  %52 = vperm.xlu0 %51, %v27
  %v53 = vpop.permute.xlu0 %52
  %vm54 = vcmp.eq.s32.totalorder %v32, %v29
  %vm55 = vcmp.eq.s32.totalorder %v35, %v29
  %vm56 = vcmp.eq.s32.totalorder %v38, %v29
  %vm57 = vcmp.eq.s32.totalorder %v41, %v29
  %vm58 = vcmp.eq.s32.totalorder %v44, %v29
  %vm59 = vcmp.eq.s32.totalorder %v47, %v29
  %vm60 = vcmp.eq.s32.totalorder %v50, %v29
  %vm61 = vcmp.eq.s32.totalorder %v53, %v29
  %v62 = vsel %vm54, 1, 0
  %v63 = vsel %vm55, 1, 0
  %v64 = vsel %vm56, 1, 0
  %v65 = vsel %vm57, 1, 0
  %v66 = vsel %vm58, 1, 0
  %v67 = vsel %vm59, 1, 0
  %v68 = vsel %vm60, 1, 0
  %v69 = vsel %vm61, 1, 0
  %v70 = vcvt.s32.f32 %v62
  %v71 = vcvt.s32.f32 %v63
  %v72 = vcvt.s32.f32 %v64
  %v73 = vcvt.s32.f32 %v65
  %v74 = vcvt.s32.f32 %v66
  %v75 = vcvt.s32.f32 %v67
  %v76 = vcvt.s32.f32 %v68
  %v77 = vcvt.s32.f32 %v69
  %v78 = vld [vmem:[%s1] sm:$0xff]
  %v79 = vld [vmem:[%s1 + $0x8] sm:$0x3]
  %vm80 = vcmask 80896
  %v82 = vsel %vm80, %v70, 0
  %v85 = vsel %vm80, %v71, 0
  %v88 = vsel %vm80, %v72, 0
  %v91 = vsel %vm80, %v73, 0
  %v94 = vsel %vm80, %v74, 0
  %v97 = vsel %vm80, %v75, 0
  %v100 = vsel %vm80, %v76, 0
  %v103 = vsel %vm80, %v77, 0
  %vm105 = vcmask 1041408
  %v107 = vsel %vm105, %v79, 0
  %109 = vmatprep.subr.mxu0 0.0
  %110 = vmatpush1.msra.mxu0 %v78
  %111 = vmatprep.subr.mxu0 0.0
  %112 = vmatpush1.msra.mxu0 %v107
  %113 = vmatprep.subr.mxu0 0.0
  %114 = vmatpush1.msra.mxu0 0.0
  %115 = vmatprep.subr.mxu0 0.0
  %116 = vmatpush1.msra.mxu0 0.0
  %117 = vmatprep.subr.mxu0 0.0
  %118 = vmatpush1.msra.mxu0 0.0
  %119 = vmatprep.subr.mxu0 0.0
  %120 = vmatpush1.msra.mxu0 0.0
  %121 = vmatprep.subr.mxu0 0.0
  %122 = vmatpush1.msra.mxu0 0.0
  %123 = vmatprep.subr.mxu0 0.0
  %124 = vmatpush1.msra.mxu0 0.0
  %125 = vmatprep.subr.mxu0 0.0
  %126 = vmatpush1.msra.mxu0 0.0
  %127 = vmatprep.subr.mxu0 0.0
  %128 = vmatpush1.msra.mxu0 0.0
  %129 = vmatprep.subr.mxu0 0.0
  %130 = vmatpush1.msra.mxu0 0.0
  %131 = vmatprep.subr.mxu0 0.0
  %132 = vmatpush1.msra.mxu0 0.0
  %133 = vmatprep.subr.mxu0 0.0
  %134 = vmatpush1.msra.mxu0 0.0
  %135 = vmatprep.subr.mxu0 0.0
  %136 = vmatpush1.msra.mxu0 0.0
  %137 = vmatprep.subr.mxu0 0.0
  %138 = vmatpush1.msra.mxu0 0.0
  %139 = vmatprep.subr.mxu0 0.0
  %140 = vmatpush1.msra.mxu0 0.0
  %141 = vmatprep.subr.mxu0 0.0
  %142 = vmatpush1.msra.mxu0 0.0
  %143 = vmatprep.subr.mxu0 0.0
  %144 = vmatpush1.msra.mxu0 0.0
  %145 = vmatprep.subr.mxu0 0.0
  %146 = vmatpush1.msra.mxu0 0.0
  %147 = vmatprep.subr.mxu0 0.0
  %148 = vmatpush1.msra.mxu0 0.0
  %149 = vmatprep.subr.mxu0 0.0
  %150 = vmatpush1.msra.mxu0 0.0
  %151 = vmatprep.subr.mxu0 0.0
  %152 = vmatpush1.msra.mxu0 0.0
  %153 = vmatprep.subr.mxu0 0.0
  %154 = vmatpush1.msra.mxu0 0.0
  %155 = vmatprep.subr.mxu0 0.0
  %156 = vmatpush1.msra.mxu0 0.0
  %157 = vmatprep.subr.mxu0 0.0
  %158 = vmatpush1.msra.mxu0 0.0
  %159 = vmatprep.subr.mxu0 0.0
  %160 = vmatpush1.msra.mxu0 0.0
  %161 = vmatprep.subr.mxu0 0.0
  %162 = vmatpush1.msra.mxu0 0.0
  %163 = vmatprep.subr.mxu0 0.0
  %164 = vmatpush1.msra.mxu0 0.0
  %165 = vmatprep.subr.mxu0 0.0
  %166 = vmatpush1.msra.mxu0 0.0
  %167 = vmatprep.subr.mxu0 0.0
  %168 = vmatpush1.msra.mxu0 0.0
  %169 = vmatprep.subr.mxu0 0.0
  %170 = vmatpush1.msra.mxu0 0.0
  %171 = vmatprep.subr.mxu0 0.0
  %172 = vmatpush1.msra.mxu0 0.0
  %173 = vmatprep.mubr.f32.mxu0 0.0
  %174 = vmatmul.mubr.f32.gmra.mrb[0].mxu0 %v82
  %v175 = vpop.f32.mrb[0].mxu0
  %v176 = vadd.f32 0.0, %v175
  %v177 = vpop.f32.mrb[0].mxu0
  %178 = vmatprep.mubr.f32.mxu0 0.0
  %179 = vmatmul.mubr.f32.gmra.mrb[0].mxu0 %v85
  %v180 = vpop.f32.mrb[0].mxu0
  %v181 = vadd.f32 0.0, %v180
  %v182 = vpop.f32.mrb[0].mxu0
  %183 = vmatprep.mubr.f32.mxu0 0.0
  %184 = vmatmul.mubr.f32.gmra.mrb[0].mxu0 %v88
  %v185 = vpop.f32.mrb[0].mxu0
  %v186 = vadd.f32 0.0, %v185
  %v187 = vpop.f32.mrb[0].mxu0
  %188 = vmatprep.mubr.f32.mxu0 0.0
  %189 = vmatmul.mubr.f32.gmra.mrb[0].mxu0 %v91
  %v190 = vpop.f32.mrb[0].mxu0
  %v191 = vadd.f32 0.0, %v190
  %v192 = vpop.f32.mrb[0].mxu0
  %193 = vmatprep.mubr.f32.mxu0 0.0
  %194 = vmatmul.mubr.f32.gmra.mrb[0].mxu0 %v94
  %v195 = vpop.f32.mrb[0].mxu0
  %v196 = vadd.f32 0.0, %v195
  %v197 = vpop.f32.mrb[0].mxu0
  %198 = vmatprep.mubr.f32.mxu0 0.0
  %199 = vmatmul.mubr.f32.gmra.mrb[0].mxu0 %v97
  %v200 = vpop.f32.mrb[0].mxu0
  %v201 = vadd.f32 0.0, %v200
  %v202 = vpop.f32.mrb[0].mxu0
  %203 = vmatprep.mubr.f32.mxu0 0.0
  %204 = vmatmul.mubr.f32.gmra.mrb[0].mxu0 %v100
  %v205 = vpop.f32.mrb[0].mxu0
  %v206 = vadd.f32 0.0, %v205
  %v207 = vpop.f32.mrb[0].mxu0
  %208 = vmatprep.mubr.f32.mxu0 0.0
  %209 = vmatmul.mubr.f32.gmra.mrb[0].mxu0 %v103
  %v210 = vpop.f32.mrb[0].mxu0
  %v211 = vadd.f32 0.0, %v210
  %v212 = vpop.f32.mrb[0].mxu0
  %213 = vdwg.mxu0
  %v214 = vld [vmem:[%s2] sm:$0xff]
  %v215 = vld [vmem:[%s2 + $0x8] sm:$0xff]
  %v216 = vld [vmem:[%s2 + $0x10] sm:$0xff]
  %v217 = vld [vmem:[%s2 + $0x18] sm:$0xff]
  %v218 = vld [vmem:[%s2 + $0x20] sm:$0xff]
  %v219 = vld [vmem:[%s2 + $0x28] sm:$0xff]
  %v220 = vld [vmem:[%s2 + $0x30] sm:$0xff]
  %v221 = vld [vmem:[%s2 + $0x38] sm:$0xff]
  %v222 = vld [vmem:[%s2 + $0x40] sm:$0xff]
  %v223 = vld [vmem:[%s2 + $0x48] sm:$0xff]
  %v224 = vld [vmem:[%s2 + $0x50] sm:$0xff]
  %v225 = vld [vmem:[%s2 + $0x58] sm:$0xff]
  %v226 = vld [vmem:[%s2 + $0x60] sm:$0xff]
  %v227 = vld [vmem:[%s2 + $0x68] sm:$0xff]
  %v228 = vld [vmem:[%s2 + $0x70] sm:$0xff]
  %v229 = vld [vmem:[%s2 + $0x78] sm:$0xff]
  %v230 = vld [vmem:[%s2 + $0x80] sm:$0xff]
  %v231 = vld [vmem:[%s2 + $0x88] sm:$0xff]
  %v232 = vld [vmem:[%s2 + $0x90] sm:$0xff]
  %v233 = vld [vmem:[%s2 + $0x98] sm:$0xff]
  %v234 = vld [vmem:[%s2 + $0xa0] sm:$0xff]
  %v235 = vld [vmem:[%s2 + $0xa8] sm:$0xff]
  %v236 = vld [vmem:[%s2 + $0xb0] sm:$0xff]
  %v237 = vld [vmem:[%s2 + $0xb8] sm:$0xff]
  %v238 = vld [vmem:[%s2 + $0xc0] sm:$0xff]
  %v239 = vld [vmem:[%s2 + $0xc8] sm:$0xff]
  %v240 = vld [vmem:[%s2 + $0xd0] sm:$0xff]
  %v241 = vld [vmem:[%s2 + $0xd8] sm:$0xff]
  %v242 = vld [vmem:[%s2 + $0xe0] sm:$0xff]
  %v243 = vld [vmem:[%s2 + $0xe8] sm:$0xff]
  %v244 = vld [vmem:[%s2 + $0xf0] sm:$0xff]
  %v245 = vld [vmem:[%s2 + $0xf8] sm:$0xff]
  %v246 = vld [vmem:[%s2 + $0x100] sm:$0xff]
  %v247 = vld [vmem:[%s2 + $0x108] sm:$0xff]
  %v248 = vld [vmem:[%s2 + $0x110] sm:$0xff]
  %v249 = vld [vmem:[%s2 + $0x118] sm:$0xff]
  %v250 = vld [vmem:[%s2 + $0x120] sm:$0xff]
  %v251 = vld [vmem:[%s2 + $0x128] sm:$0xff]
  %v252 = vld [vmem:[%s2 + $0x130] sm:$0xff]
  %v253 = vld [vmem:[%s2 + $0x138] sm:$0xff]
  %v254 = vld [vmem:[%s2 + $0x140] sm:$0xff]
  %v255 = vld [vmem:[%s2 + $0x148] sm:$0xff]
  %v256 = vld [vmem:[%s2 + $0x150] sm:$0xff]
  %v257 = vld [vmem:[%s2 + $0x158] sm:$0xff]
  %v258 = vld [vmem:[%s2 + $0x160] sm:$0xff]
  %v259 = vld [vmem:[%s2 + $0x168] sm:$0xff]
  %v260 = vld [vmem:[%s2 + $0x170] sm:$0xff]
  %v261 = vld [vmem:[%s2 + $0x178] sm:$0xff]
  %v262 = vld [vmem:[%s3] sm:$0x7]
  %v264 = vlaneseq
  %v265 = vshrl.u32 %v264, 7
  %v266 = vsub.s32 0, %v265
  %v267 = vrot.slane %v262, %v266
  %v268 = vlaneseq
  %v269 = vshrl.u32 %v268, 7
  %v270 = vsub.s32 1, %v269
  %v271 = vrot.slane %v262, %v270
  %v272 = vlaneseq
  %v273 = vshrl.u32 %v272, 7
  %v274 = vsub.s32 2, %v273
  %v275 = vrot.slane %v262, %v274
  %279 = vmatprep.subr.mxu0 %v215
  %280 = vmatpush1.msra.mxu0 %v214
  %281 = vmatprep.subr.mxu0 %v218
  %282 = vmatpush1.msra.mxu0 %v217
  %283 = vmatprep.subr.mxu0 %v221
  %284 = vmatpush1.msra.mxu0 %v220
  %285 = vmatprep.subr.mxu0 %v224
  %286 = vmatpush1.msra.mxu0 %v223
  %287 = vmatprep.subr.mxu0 %v227
  %288 = vmatpush1.msra.mxu0 %v226
  %289 = vmatprep.subr.mxu0 %v230
  %290 = vmatpush1.msra.mxu0 %v229
  %291 = vmatprep.subr.mxu0 %v233
  %292 = vmatpush1.msra.mxu0 %v232
  %293 = vmatprep.subr.mxu0 %v236
  %294 = vmatpush1.msra.mxu0 %v235
  %295 = vmatprep.subr.mxu0 %v239
  %296 = vmatpush1.msra.mxu0 %v238
  %297 = vmatprep.subr.mxu0 %v242
  %298 = vmatpush1.msra.mxu0 %v241
  %299 = vmatprep.subr.mxu0 %v245
  %300 = vmatpush1.msra.mxu0 %v244
  %301 = vmatprep.subr.mxu0 %v248
  %302 = vmatpush1.msra.mxu0 %v247
  %303 = vmatprep.subr.mxu0 %v251
  %304 = vmatpush1.msra.mxu0 %v250
  %305 = vmatprep.subr.mxu0 %v254
  %306 = vmatpush1.msra.mxu0 %v253
  %307 = vmatprep.subr.mxu0 %v257
  %308 = vmatpush1.msra.mxu0 %v256
  %309 = vmatprep.subr.mxu0 %v260
  %310 = vmatpush1.msra.mxu0 %v259
  %311 = vmatprep.subr.mxu0 0.0
  %312 = vmatpush1.msra.mxu0 0.0
  %313 = vmatprep.subr.mxu0 0.0
  %314 = vmatpush1.msra.mxu0 0.0
  %315 = vmatprep.subr.mxu0 0.0
  %316 = vmatpush1.msra.mxu0 0.0
  %317 = vmatprep.subr.mxu0 0.0
  %318 = vmatpush1.msra.mxu0 0.0
  %319 = vmatprep.subr.mxu0 0.0
  %320 = vmatpush1.msra.mxu0 0.0
  %321 = vmatprep.subr.mxu0 0.0
  %322 = vmatpush1.msra.mxu0 0.0
  %323 = vmatprep.subr.mxu0 0.0
  %324 = vmatpush1.msra.mxu0 0.0
  %325 = vmatprep.subr.mxu0 0.0
  %326 = vmatpush1.msra.mxu0 0.0
  %327 = vmatprep.subr.mxu0 0.0
  %328 = vmatpush1.msra.mxu0 0.0
  %329 = vmatprep.subr.mxu0 0.0
  %330 = vmatpush1.msra.mxu0 0.0
  %331 = vmatprep.subr.mxu0 0.0
  %332 = vmatpush1.msra.mxu0 0.0
  %333 = vmatprep.subr.mxu0 0.0
  %334 = vmatpush1.msra.mxu0 0.0
  %335 = vmatprep.subr.mxu0 0.0
  %336 = vmatpush1.msra.mxu0 0.0
  %337 = vmatprep.subr.mxu0 0.0
  %338 = vmatpush1.msra.mxu0 0.0
  %339 = vmatprep.subr.mxu0 0.0
  %340 = vmatpush1.msra.mxu0 0.0
  %341 = vmatprep.subr.mxu0 0.0
  %342 = vmatpush1.msra.mxu0 0.0
  %343 = vmatprep.mubr.f32.mxu0 0.0
  %344 = vmatmul.mubr.f32.gmra.mrb[0].mxu0 %v176
  %v345 = vpop.f32.mrb[0].mxu0
  %v346 = vadd.f32 %v267, %v345
  %v347 = vpop.f32.mrb[0].mxu0
  %v348 = vadd.f32 %v271, %v347
  %349 = vmatprep.mubr.f32.mxu0 0.0
  %350 = vmatmul.mubr.f32.gmra.mrb[0].mxu0 %v181
  %v351 = vpop.f32.mrb[0].mxu0
  %v352 = vadd.f32 %v267, %v351
  %v353 = vpop.f32.mrb[0].mxu0
  %v354 = vadd.f32 %v271, %v353
  %355 = vmatprep.mubr.f32.mxu0 0.0
  %356 = vmatmul.mubr.f32.gmra.mrb[0].mxu0 %v186
  %v357 = vpop.f32.mrb[0].mxu0
  %v358 = vadd.f32 %v267, %v357
  %v359 = vpop.f32.mrb[0].mxu0
  %v360 = vadd.f32 %v271, %v359
  %361 = vmatprep.mubr.f32.mxu0 0.0
  %362 = vmatmul.mubr.f32.gmra.mrb[0].mxu0 %v191
  %v363 = vpop.f32.mrb[0].mxu0
  %v364 = vadd.f32 %v267, %v363
  %v365 = vpop.f32.mrb[0].mxu0
  %v366 = vadd.f32 %v271, %v365
  %367 = vmatprep.mubr.f32.mxu0 0.0
  %368 = vmatmul.mubr.f32.gmra.mrb[0].mxu0 %v196
  %v369 = vpop.f32.mrb[0].mxu0
  %v370 = vadd.f32 %v267, %v369
  %v371 = vpop.f32.mrb[0].mxu0
  %v372 = vadd.f32 %v271, %v371
  %373 = vmatprep.mubr.f32.mxu0 0.0
  %374 = vmatmul.mubr.f32.gmra.mrb[0].mxu0 %v201
  %v375 = vpop.f32.mrb[0].mxu0
  %v376 = vadd.f32 %v267, %v375
  %v377 = vpop.f32.mrb[0].mxu0
  %v378 = vadd.f32 %v271, %v377
  %379 = vmatprep.mubr.f32.mxu0 0.0
  %380 = vmatmul.mubr.f32.gmra.mrb[0].mxu0 %v206
  %v381 = vpop.f32.mrb[0].mxu0
  %v382 = vadd.f32 %v267, %v381
  %v383 = vpop.f32.mrb[0].mxu0
  %v384 = vadd.f32 %v271, %v383
  %385 = vmatprep.mubr.f32.mxu0 0.0
  %386 = vmatmul.mubr.f32.gmra.mrb[0].mxu0 %v211
  %v387 = vpop.f32.mrb[0].mxu0
  %v388 = vadd.f32 %v267, %v387
  %v389 = vpop.f32.mrb[0].mxu0
  %v390 = vadd.f32 %v271, %v389
  %391 = vdwg.mxu0
  %392 = vmatprep.subr.mxu0 0.0
  %393 = vmatpush1.msra.mxu0 %v216
  %394 = vmatprep.subr.mxu0 0.0
  %395 = vmatpush1.msra.mxu0 %v219
  %396 = vmatprep.subr.mxu0 0.0
  %397 = vmatpush1.msra.mxu0 %v222
  %398 = vmatprep.subr.mxu0 0.0
  %399 = vmatpush1.msra.mxu0 %v225
  %400 = vmatprep.subr.mxu0 0.0
  %401 = vmatpush1.msra.mxu0 %v228
  %402 = vmatprep.subr.mxu0 0.0
  %403 = vmatpush1.msra.mxu0 %v231
  %404 = vmatprep.subr.mxu0 0.0
  %405 = vmatpush1.msra.mxu0 %v234
  %406 = vmatprep.subr.mxu0 0.0
  %407 = vmatpush1.msra.mxu0 %v237
  %408 = vmatprep.subr.mxu0 0.0
  %409 = vmatpush1.msra.mxu0 %v240
  %410 = vmatprep.subr.mxu0 0.0
  %411 = vmatpush1.msra.mxu0 %v243
  %412 = vmatprep.subr.mxu0 0.0
  %413 = vmatpush1.msra.mxu0 %v246
  %414 = vmatprep.subr.mxu0 0.0
  %415 = vmatpush1.msra.mxu0 %v249
  %416 = vmatprep.subr.mxu0 0.0
  %417 = vmatpush1.msra.mxu0 %v252
  %418 = vmatprep.subr.mxu0 0.0
  %419 = vmatpush1.msra.mxu0 %v255
  %420 = vmatprep.subr.mxu0 0.0
  %421 = vmatpush1.msra.mxu0 %v258
  %422 = vmatprep.subr.mxu0 0.0
  %423 = vmatpush1.msra.mxu0 %v261
  %424 = vmatprep.subr.mxu0 0.0
  %425 = vmatpush1.msra.mxu0 0.0
  %426 = vmatprep.subr.mxu0 0.0
  %427 = vmatpush1.msra.mxu0 0.0
  %428 = vmatprep.subr.mxu0 0.0
  %429 = vmatpush1.msra.mxu0 0.0
  %430 = vmatprep.subr.mxu0 0.0
  %431 = vmatpush1.msra.mxu0 0.0
  %432 = vmatprep.subr.mxu0 0.0
  %433 = vmatpush1.msra.mxu0 0.0
  %434 = vmatprep.subr.mxu0 0.0
  %435 = vmatpush1.msra.mxu0 0.0
  %436 = vmatprep.subr.mxu0 0.0
  %437 = vmatpush1.msra.mxu0 0.0
  %438 = vmatprep.subr.mxu0 0.0
  %439 = vmatpush1.msra.mxu0 0.0
  %440 = vmatprep.subr.mxu0 0.0
  %441 = vmatpush1.msra.mxu0 0.0
  %442 = vmatprep.subr.mxu0 0.0
  %443 = vmatpush1.msra.mxu0 0.0
  %444 = vmatprep.subr.mxu0 0.0
  %445 = vmatpush1.msra.mxu0 0.0
  %446 = vmatprep.subr.mxu0 0.0
  %447 = vmatpush1.msra.mxu0 0.0
  %448 = vmatprep.subr.mxu0 0.0
  %449 = vmatpush1.msra.mxu0 0.0
  %450 = vmatprep.subr.mxu0 0.0
  %451 = vmatpush1.msra.mxu0 0.0
  %452 = vmatprep.subr.mxu0 0.0
  %453 = vmatpush1.msra.mxu0 0.0
  %454 = vmatprep.subr.mxu0 0.0
  %455 = vmatpush1.msra.mxu0 0.0
  %456 = vmatprep.mubr.f32.mxu0 0.0
  %457 = vmatmul.mubr.f32.gmra.mrb[0].mxu0 %v176
  %v458 = vpop.f32.mrb[0].mxu0
  %v459 = vadd.f32 %v275, %v458
  %v460 = vpop.f32.mrb[0].mxu0
  %461 = vmatprep.mubr.f32.mxu0 0.0
  %462 = vmatmul.mubr.f32.gmra.mrb[0].mxu0 %v181
  %v463 = vpop.f32.mrb[0].mxu0
  %v464 = vadd.f32 %v275, %v463
  %v465 = vpop.f32.mrb[0].mxu0
  %466 = vmatprep.mubr.f32.mxu0 0.0
  %467 = vmatmul.mubr.f32.gmra.mrb[0].mxu0 %v186
  %v468 = vpop.f32.mrb[0].mxu0
  %v469 = vadd.f32 %v275, %v468
  %v470 = vpop.f32.mrb[0].mxu0
  %471 = vmatprep.mubr.f32.mxu0 0.0
  %472 = vmatmul.mubr.f32.gmra.mrb[0].mxu0 %v191
  %v473 = vpop.f32.mrb[0].mxu0
  %v474 = vadd.f32 %v275, %v473
  %v475 = vpop.f32.mrb[0].mxu0
  %476 = vmatprep.mubr.f32.mxu0 0.0
  %477 = vmatmul.mubr.f32.gmra.mrb[0].mxu0 %v196
  %v478 = vpop.f32.mrb[0].mxu0
  %v479 = vadd.f32 %v275, %v478
  %v480 = vpop.f32.mrb[0].mxu0
  %481 = vmatprep.mubr.f32.mxu0 0.0
  %482 = vmatmul.mubr.f32.gmra.mrb[0].mxu0 %v201
  %v483 = vpop.f32.mrb[0].mxu0
  %v484 = vadd.f32 %v275, %v483
  %v485 = vpop.f32.mrb[0].mxu0
  %486 = vmatprep.mubr.f32.mxu0 0.0
  %487 = vmatmul.mubr.f32.gmra.mrb[0].mxu0 %v206
  %v488 = vpop.f32.mrb[0].mxu0
  %v489 = vadd.f32 %v275, %v488
  %v490 = vpop.f32.mrb[0].mxu0
  %491 = vmatprep.mubr.f32.mxu0 0.0
  %492 = vmatmul.mubr.f32.gmra.mrb[0].mxu0 %v211
  %v493 = vpop.f32.mrb[0].mxu0
  %v494 = vadd.f32 %v275, %v493
  %v495 = vpop.f32.mrb[0].mxu0
  %496 = vdwg.mxu0
  %497 = vst [vmem:[%s4] sm:$0xff] %v346
  %498 = vst [vmem:[%s4 + $0x8] sm:$0xff] %v352
  %499 = vst [vmem:[%s4 + $0x10] sm:$0xff] %v358
  %500 = vst [vmem:[%s4 + $0x18] sm:$0xff] %v364
  %501 = vst [vmem:[%s4 + $0x20] sm:$0xff] %v370
  %502 = vst [vmem:[%s4 + $0x28] sm:$0xff] %v376
  %503 = vst [vmem:[%s4 + $0x30] sm:$0xff] %v382
  %504 = vst [vmem:[%s4 + $0x38] sm:$0xff] %v388
  %505 = vxpose.xlu0.b32.start [1/16] %v348, 128
  %506 = vxpose.xlu0.b32.cont [2/16] %v354, 128
  %507 = vxpose.xlu0.b32.cont [3/16] %v360, 128
  %508 = vxpose.xlu0.b32.cont [4/16] %v366, 128
  %509 = vxpose.xlu0.b32.cont [5/16] %v372, 128
  %510 = vxpose.xlu0.b32.cont [6/16] %v378, 128
  %511 = vxpose.xlu0.b32.cont [7/16] %v384, 128
  %512 = vxpose.xlu0.b32.cont [8/16] %v390, 128
  %513 = vxpose.xlu0.b32.cont [9/16] 0.0, 128
  %514 = vxpose.xlu0.b32.cont [10/16] 0.0, 128
  %515 = vxpose.xlu0.b32.cont [11/16] 0.0, 128
  %516 = vxpose.xlu0.b32.cont [12/16] 0.0, 128
  %517 = vxpose.xlu0.b32.cont [13/16] 0.0, 128
  %518 = vxpose.xlu0.b32.cont [14/16] 0.0, 128
  %519 = vxpose.xlu0.b32.cont [15/16] 0.0, 128
  %520 = vxpose.xlu0.b32.end [16/16] 0.0, 128
  %v521 = vpop.trf.xlu0
  %v522 = vpop.trf.xlu0
  %v523 = vpop.trf.xlu0
  %v524 = vpop.trf.xlu0
  %v525 = vpop.trf.xlu0
  %v526 = vpop.trf.xlu0
  %v527 = vpop.trf.xlu0
  %v528 = vpop.trf.xlu0
  %v529 = vpop.trf.xlu0
  %v530 = vpop.trf.xlu0
  %v531 = vpop.trf.xlu0
  %v532 = vpop.trf.xlu0
  %v533 = vpop.trf.xlu0
  %v534 = vpop.trf.xlu0
  %v535 = vpop.trf.xlu0
  %v536 = vpop.trf.xlu0
  %vm537 = vcmask 523264
  %538 = vst.msk [vmem:[%s5] sm:$0xff] %vm537, %v521
  %539 = vst.msk [vmem:[%s5 + $0x8] sm:$0xff] %vm537, %v522
  %540 = vst.msk [vmem:[%s5 + $0x10] sm:$0xff] %vm537, %v523
  %541 = vst.msk [vmem:[%s5 + $0x18] sm:$0xff] %vm537, %v524
  %542 = vst.msk [vmem:[%s5 + $0x20] sm:$0xff] %vm537, %v525
  %543 = vst.msk [vmem:[%s5 + $0x28] sm:$0xff] %vm537, %v526
  %544 = vst.msk [vmem:[%s5 + $0x30] sm:$0xff] %vm537, %v527
  %545 = vst.msk [vmem:[%s5 + $0x38] sm:$0xff] %vm537, %v528
  %546 = vst.msk [vmem:[%s5 + $0x40] sm:$0xff] %vm537, %v529
  %547 = vst.msk [vmem:[%s5 + $0x48] sm:$0xff] %vm537, %v530
  %548 = vst.msk [vmem:[%s5 + $0x50] sm:$0xff] %vm537, %v531
  %549 = vst.msk [vmem:[%s5 + $0x58] sm:$0xff] %vm537, %v532
  %550 = vst.msk [vmem:[%s5 + $0x60] sm:$0xff] %vm537, %v533
  %551 = vst.msk [vmem:[%s5 + $0x68] sm:$0xff] %vm537, %v534
  %552 = vst.msk [vmem:[%s5 + $0x70] sm:$0xff] %vm537, %v535
  %553 = vst.msk [vmem:[%s5 + $0x78] sm:$0xff] %vm537, %v536
  %554 = vst [vmem:[%s6] sm:$0xff] %v459
  %555 = vst [vmem:[%s6 + $0x8] sm:$0xff] %v464
  %556 = vst [vmem:[%s6 + $0x10] sm:$0xff] %v469
  %557 = vst [vmem:[%s6 + $0x18] sm:$0xff] %v474
  %558 = vst [vmem:[%s6 + $0x20] sm:$0xff] %v479
  %559 = vst [vmem:[%s6 + $0x28] sm:$0xff] %v484
  %560 = vst [vmem:[%s6 + $0x30] sm:$0xff] %v489
  %561 = vst [vmem:[%s6 + $0x38] sm:$0xff] %v494
  // Predicated region
  $region18: #{_forward_impl.2} parent=0 // pred_check
    _
  $region19: #{_forward_impl.2} parent=0 // pred_check_branch
    %563 = sbr.rel (0) target = $region21
  $region20: #{_forward_impl.2} parent=0 // pred_region
    _
  $region21: #{_forward_impl.2} parent=0 // pred_fallthru
    _
  // Predicated region
  $region22: #{_forward_impl.2} parent=0 // pred_check
    _
  $region23: #{_forward_impl.2} parent=0 // pred_check_branch
    %565 = sbr.rel (0) target = $region25
  $region24: #{_forward_impl.2} parent=0 // pred_region
    _
  $region25: #{_forward_impl.2} parent=0 // pred_fallthru
    _
  // Predicated region
  $region26: #{_forward_impl.2} parent=0 // pred_check
    _
  $region27: #{_forward_impl.2} parent=0 // pred_check_branch
    %567 = sbr.rel (0) target = $region29
  $region28: #{_forward_impl.2} parent=0 // pred_region
    _
  $region29: #{_forward_impl.2} parent=0 // pred_fallthru
    _
  // Predicated region
  $region30: #{_forward_impl.2} parent=0 // pred_check
    _
  $region31: #{_forward_impl.2} parent=0 // pred_check_branch
    %569 = sbr.rel (0) target = $region33
  $region32: #{_forward_impl.2} parent=0 // pred_region
    _
  $region33: #{_forward_impl.2} parent=0 // pred_fallthru
    _
  // Predicated region
  $region34: #{_forward_impl.2} parent=0 // pred_check
    _
  $region35: #{_forward_impl.2} parent=0 // pred_check_branch
    %571 = sbr.rel (0) target = $region37
  $region36: #{_forward_impl.2} parent=0 // pred_region
    _
  $region37: #{_forward_impl.2} parent=0 // pred_fallthru
    _
  // Predicated region
  $region38: #{_forward_impl.2} parent=0 // pred_check
    _
  $region39: #{_forward_impl.2} parent=0 // pred_check_branch
    %573 = sbr.rel (0) target = $region41
  $region40: #{_forward_impl.2} parent=0 // pred_region
    _
  $region41: #{_forward_impl.2} parent=0 // pred_fallthru
    _

// kernel: _forward_impl.3
$region0: #{_forward_impl.3}
  #allocation0 [shape = 'u32[]', space=smem, size = 0x4, offset = 0x4, fixed_abs, tag = 'smem constant byte address 0x4 - core index']
  #allocation1 [shape = 'u32[144,128]{1,0:T(1,128)}', space=vmem, size = 0x12000, scoped, tag = 'internal scratch']
  #allocation2 [shape = 'f32[64,1]{1,0:T(8,128)}', space=vmem, size = 0x8000, scoped, tag = 'scratch operand']
  #allocation3 [shape = 'f32[64,1]{1,0:T(8,128)}', space=vmem, size = 0x8000, scoped, tag = 'scratch operand']
  #allocation4 [shape = 'f32[64,128]{1,0:T(8,128)}', space=vmem, size = 0x8000, scoped, tag = 'scratch operand']
  #allocation5 [shape = 's32[1]{0}', space=sflag, size = 0x4, scoped, tag = 'scoped memory for _forward_impl.3']
  #allocation6 [shape = 's32[1]{0:T(128)S(6)}', space=smem, size = 0x200, scoped, tag = 'prefetched SMEM operand 0']
  %s0 = inlined_call_operand.<no memory space> [shape: s32[1], index: 0, kind: input, shape index: {}]
  %s1 = inlined_call_operand.vmem [shape: s32[64,1], index: 1, kind: input, shape index: {}]
  %s2 = inlined_call_operand.vmem [shape: f32[10,128], index: 2, kind: input, shape index: {}]
  %s3 = inlined_call_operand.vmem [shape: f32[64,128], index: 3, kind: input, shape index: {}]
  %s4 = inlined_call_operand.vmem [shape: f32[128,64], index: 4, kind: input, shape index: {}]
  %s5 = inlined_call_operand.vmem [shape: f32[64,128], index: 5, kind: input, shape index: {}]
  %s6 = inlined_call_operand.vmem [shape: s8[64,64], index: 6, kind: input, shape index: {}]
  %s7 = inlined_call_operand.vmem [shape: f32[1,128], index: 7, kind: input, shape index: {}]
  %s8 = inlined_call_operand.vmem [shape: f32[1,128], index: 8, kind: input, shape index: {}]
  %s9 = inlined_call_operand.vmem [shape: f32[128,128], index: 9, kind: input, shape index: {}]
  %s10 = inlined_call_operand.vmem [shape: f32[1,128], index: 10, kind: input, shape index: {}]
  %s11 = inlined_call_operand.vmem [shape: f32[128,128], index: 11, kind: input, shape index: {}]
  %s12 = inlined_call_operand.vmem [shape: f32[1,128], index: 12, kind: input, shape index: {}]
  %s13 = inlined_call_operand.hbm [shape: f32[64,128], index: 13, kind: output, shape index: {}]
  %s14 = sld [smem:[#allocation0]]
  $region70: #{_forward_impl.3} parent=0
    _
  %s16 = ssub.s32 1, %s14
  %s17 = scalar_select 0, %s16, %s14
  %18 = sst [smem:[#allocation6]] %s0
  $region1: #{_forward_impl.3} parent=0
    #allocation7 [shape = 'u8[32768]{0}', space=vmem, size = 0x8000, scoped, tag = 'output window, operand 0, single buffered']
    #allocation8 [shape = 's32[1]{0}', space=sflag, size = 0x4, scoped, tag = 'scoped memory for _forward_impl.3']
    %19 = vsyncpa [#allocation8], 0
    // Predicated region
    $region2: #{_forward_impl.3} parent=1 // pred_check
      _
    $region3: #{_forward_impl.3} parent=1 // pred_check_branch
      %21 = sbr.rel (0) target = $region5
    $region4: #{_forward_impl.3} parent=1 // pred_region
      _
    $region5: #{_forward_impl.3} parent=1 // pred_fallthru
      _
    // Predicated region
    $region6: #{_forward_impl.3} parent=1 // pred_check
      _
    $region7: #{_forward_impl.3} parent=1 // pred_check_branch
      %23 = sbr.rel (0) target = $region9
    $region8: #{_forward_impl.3} parent=1 // pred_region
      _
    $region9: #{_forward_impl.3} parent=1 // pred_fallthru
      _
    // Predicated region
    $region10: #{_forward_impl.3} parent=1 // pred_check
      _
    $region11: #{_forward_impl.3} parent=1 // pred_check_branch
      %25 = sbr.rel (0) target = $region13
    $region12: #{_forward_impl.3} parent=1 // pred_region
      _
    $region13: #{_forward_impl.3} parent=1 // pred_fallthru
      _
    // Predicated region
    $region14: #{_forward_impl.3} parent=1 // pred_check
      _
    $region15: #{_forward_impl.3} parent=1 // pred_check_branch
      %27 = sbr.rel (0) target = $region17
    $region16: #{_forward_impl.3} parent=1 // pred_region
      %s28 = sadd.s32 0, 0
      %s29 = sld [smem:[#allocation6 + %s28]]
      %p30 = scmp.ne.s32.totalorder %s29, 0
      %s31 = scalar_select %p30, 0, 0
      %p32 = scmp.lt.s32.totalorder %s31, 0
      %s33 = scalar_select %p32, %s31, 0
      %s34 = smul.addr %s33, 8
      %s35 = scalar_lea.vmem %s4, %s34
      %s36 = sadd.s32 0, 0
      %s37 = sld [smem:[#allocation6 + %s36]]
      %p38 = scmp.ne.s32.totalorder %s37, 0
      %s39 = scalar_select %p38, 0, 0
    $region17: #{_forward_impl.3} parent=1 // pred_fallthru
      _
    // Predicated region
    $region18: #{_forward_impl.3} parent=1 // pred_check
      _
    $region19: #{_forward_impl.3} parent=1 // pred_check_branch
      %41 = sbr.rel (0) target = $region21
    $region20: #{_forward_impl.3} parent=1 // pred_region
      %s42 = sadd.s32 0, 0
      %s43 = sld [smem:[#allocation6 + %s42]]
      %p44 = scmp.ne.s32.totalorder %s43, 0
      %s45 = scalar_select %p44, 0, 0
      %s46 = smul.u32 8, %s45
      %p47 = scmp.lt.s32.totalorder %s46, 7
      %s48 = scalar_select %p47, %s46, 7
      %s49 = smul.addr %s48, 8
      %s50 = scalar_lea.vmem %s5, %s49
      %s51 = sadd.s32 0, 0
      %s52 = sld [smem:[#allocation6 + %s51]]
      %p53 = scmp.ne.s32.totalorder %s52, 0
      %s54 = scalar_select %p53, 0, 0
      %s55 = smul.u32 8, %s54
    $region21: #{_forward_impl.3} parent=1 // pred_fallthru
      _
    // Predicated region
    $region22: #{_forward_impl.3} parent=1 // pred_check
      _
    $region23: #{_forward_impl.3} parent=1 // pred_check_branch
      %57 = sbr.rel (0) target = $region25
    $region24: #{_forward_impl.3} parent=1 // pred_region
      %s58 = sadd.s32 0, 0
      %s59 = sld [smem:[#allocation6 + %s58]]
      %p60 = scmp.ne.s32.totalorder %s59, 0
      %s61 = scalar_select %p60, 0, 0
      %p62 = scmp.lt.s32.totalorder %s61, 0
      %s63 = scalar_select %p62, %s61, 0
      %s64 = smul.addr %s63, 2
      %s65 = scalar_lea.vmem %s6, %s64
      %s66 = sadd.s32 0, 0
      %s67 = sld [smem:[#allocation6 + %s66]]
      %p68 = scmp.ne.s32.totalorder %s67, 0
      %s69 = scalar_select %p68, 0, 0
    $region25: #{_forward_impl.3} parent=1 // pred_fallthru
      _
    // Predicated region
    $region26: #{_forward_impl.3} parent=1 // pred_check
      _
    $region27: #{_forward_impl.3} parent=1 // pred_check_branch
      %71 = sbr.rel (0) target = $region29
    $region28: #{_forward_impl.3} parent=1 // pred_region
      _
    $region29: #{_forward_impl.3} parent=1 // pred_fallthru
      _
    // Predicated region
    $region30: #{_forward_impl.3} parent=1 // pred_check
      _
    $region31: #{_forward_impl.3} parent=1 // pred_check_branch
      %73 = sbr.rel (0) target = $region33
    $region32: #{_forward_impl.3} parent=1 // pred_region
      _
    $region33: #{_forward_impl.3} parent=1 // pred_fallthru
      _
    // Predicated region
    $region34: #{_forward_impl.3} parent=1 // pred_check
      _
    $region35: #{_forward_impl.3} parent=1 // pred_check_branch
      %75 = sbr.rel (0) target = $region37
    $region36: #{_forward_impl.3} parent=1 // pred_region
      _
    $region37: #{_forward_impl.3} parent=1 // pred_fallthru
      _
    // Predicated region
    $region38: #{_forward_impl.3} parent=1 // pred_check
      _
    $region39: #{_forward_impl.3} parent=1 // pred_check_branch
      %77 = sbr.rel (0) target = $region41
    $region40: #{_forward_impl.3} parent=1 // pred_region
      _
    $region41: #{_forward_impl.3} parent=1 // pred_fallthru
      _
    // Predicated region
    $region42: #{_forward_impl.3} parent=1 // pred_check
      _
    $region43: #{_forward_impl.3} parent=1 // pred_check_branch
      %79 = sbr.rel (0) target = $region45
    $region44: #{_forward_impl.3} parent=1 // pred_region
      _
    $region45: #{_forward_impl.3} parent=1 // pred_fallthru
      _
    // Predicated region
    $region46: #{_forward_impl.3} parent=1 // pred_check
      _
    $region47: #{_forward_impl.3} parent=1 // pred_check_branch
      %81 = sbr.rel (0) target = $region49
    $region48: #{_forward_impl.3} parent=1 // pred_region
      _
    $region49: #{_forward_impl.3} parent=1 // pred_fallthru
      _
    %s82 = sadd.s32 0, 0
    %s83 = sld [smem:[#allocation6 + %s82]]
    %p84 = scmp.ne.s32.totalorder %s83, 0
    %s85 = scalar_select %p84, 0, 0
    %p86 = scmp.lt.s32.totalorder %s85, 0
    %s87 = scalar_select %p86, %s85, 0
    %s88 = smul.addr %s87, 8
    %s89 = scalar_lea.vmem %s4, %s88
    %s90 = sadd.s32 0, 0
    %s91 = sld [smem:[#allocation6 + %s90]]
    %p92 = scmp.ne.s32.totalorder %s91, 0
    %s93 = scalar_select %p92, 0, 0
    %s94 = smul.u32 8, %s93
    %p95 = scmp.lt.s32.totalorder %s94, 7
    %s96 = scalar_select %p95, %s94, 7
    %s97 = smul.addr %s96, 8
    %s98 = scalar_lea.vmem %s5, %s97
    %s99 = sadd.s32 0, 0
    %s100 = sld [smem:[#allocation6 + %s99]]
    %p101 = scmp.ne.s32.totalorder %s100, 0
    %s102 = scalar_select %p101, 0, 0
    %p103 = scmp.lt.s32.totalorder %s102, 0
    %s104 = scalar_select %p103, %s102, 0
    %s105 = smul.addr %s104, 2
    %s106 = scalar_lea.vmem %s6, %s105
    %s107 = sadd.s32 0, 0
    %s108 = sld [smem:[#allocation6 + %s107]]
    %p109 = scmp.ne.s32.totalorder %s108, 0
    %s110 = scalar_select %p109, 0, 0
    %p111 = scmp.lt.s32.totalorder %s110, 0
    %s112 = scalar_select %p111, %s110, 0
    %s113 = smul.addr %s112, 8
    %s114 = scalar_lea.vmem %s4, %s113
    %s115 = sadd.s32 0, 0
    %s116 = sld [smem:[#allocation6 + %s115]]
    %p117 = scmp.ne.s32.totalorder %s116, 0
    %s118 = scalar_select %p117, 0, 0
    %s119 = sadd.s32 0, 0
    %s120 = sld [smem:[#allocation6 + %s119]]
    %p121 = scmp.ne.s32.totalorder %s120, 0
    %s122 = scalar_select %p121, 0, 0
    %s123 = smul.u32 8, %s122
    %p124 = scmp.lt.s32.totalorder %s123, 7
    %s125 = scalar_select %p124, %s123, 7
    %s126 = smul.addr %s125, 8
    %s127 = scalar_lea.vmem %s5, %s126
    %s128 = sadd.s32 0, 0
    %s129 = sld [smem:[#allocation6 + %s128]]
    %p130 = scmp.ne.s32.totalorder %s129, 0
    %s131 = scalar_select %p130, 0, 0
    %s132 = smul.u32 8, %s131
    %s133 = sadd.s32 0, 0
    %s134 = sld [smem:[#allocation6 + %s133]]
    %p135 = scmp.ne.s32.totalorder %s134, 0
    %s136 = scalar_select %p135, 0, 0
    %p137 = scmp.lt.s32.totalorder %s136, 0
    %s138 = scalar_select %p137, %s136, 0
    %s139 = smul.addr %s138, 2
    %s140 = scalar_lea.vmem %s6, %s139
    %s141 = sadd.s32 0, 0
    %s142 = sld [smem:[#allocation6 + %s141]]
    %p143 = scmp.ne.s32.totalorder %s142, 0
    %s144 = scalar_select %p143, 0, 0
    %p145 = scmp.eq.s32.totalorder 0, 0
    // Predicated region
    $region50: #{_forward_impl.3} parent=1 // pred_check
      %p146 = pneg %p145
    $region51: #{_forward_impl.3} parent=1 // pred_check_branch
      %148 = sbr.rel (%p146) target = $region53
    $region52: #{_forward_impl.3} parent=1 // pred_region
      %vm149 = vcmask 7168
      %150 = vst.msk [vmem:[#allocation2] sm:$0xff] %vm149, -1e+30
      %151 = vst.msk [vmem:[#allocation2 + $0x8] sm:$0xff] %vm149, -1e+30
      %152 = vst.msk [vmem:[#allocation2 + $0x10] sm:$0xff] %vm149, -1e+30
      %153 = vst.msk [vmem:[#allocation2 + $0x18] sm:$0xff] %vm149, -1e+30
      %154 = vst.msk [vmem:[#allocation2 + $0x20] sm:$0xff] %vm149, -1e+30
      %155 = vst.msk [vmem:[#allocation2 + $0x28] sm:$0xff] %vm149, -1e+30
      %156 = vst.msk [vmem:[#allocation2 + $0x30] sm:$0xff] %vm149, -1e+30
      %157 = vst.msk [vmem:[#allocation2 + $0x38] sm:$0xff] %vm149, -1e+30
      %158 = vst.msk [vmem:[#allocation3] sm:$0xff] %vm149, 0.0
      %159 = vst.msk [vmem:[#allocation3 + $0x8] sm:$0xff] %vm149, 0.0
      %160 = vst.msk [vmem:[#allocation3 + $0x10] sm:$0xff] %vm149, 0.0
      %161 = vst.msk [vmem:[#allocation3 + $0x18] sm:$0xff] %vm149, 0.0
      %162 = vst.msk [vmem:[#allocation3 + $0x20] sm:$0xff] %vm149, 0.0
      %163 = vst.msk [vmem:[#allocation3 + $0x28] sm:$0xff] %vm149, 0.0
      %164 = vst.msk [vmem:[#allocation3 + $0x30] sm:$0xff] %vm149, 0.0
      %165 = vst.msk [vmem:[#allocation3 + $0x38] sm:$0xff] %vm149, 0.0
      %166 = vst [vmem:[#allocation4] sm:$0xff] 0.0
      %167 = vst [vmem:[#allocation4 + $0x8] sm:$0xff] 0.0
      %168 = vst [vmem:[#allocation4 + $0x10] sm:$0xff] 0.0
      %169 = vst [vmem:[#allocation4 + $0x18] sm:$0xff] 0.0
      %170 = vst [vmem:[#allocation4 + $0x20] sm:$0xff] 0.0
      %171 = vst [vmem:[#allocation4 + $0x28] sm:$0xff] 0.0
      %172 = vst [vmem:[#allocation4 + $0x30] sm:$0xff] 0.0
      %173 = vst [vmem:[#allocation4 + $0x38] sm:$0xff] 0.0
    $region53: #{_forward_impl.3} parent=1 // pred_fallthru
      _
    %s174 = sadd.s32 0, 0
    %s175 = sld [smem:[#allocation6 + %s174]]
    %p176 = scmp.ne.s32.totalorder %s175, 0
    // Predicated region
    $region54: #{_forward_impl.3} parent=1 // pred_check
      %p177 = pneg %p176
    $region55: #{_forward_impl.3} parent=1 // pred_check_branch
      %179 = sbr.rel (%p177) target = $region57
    $region56: #{_forward_impl.3} parent=1 // pred_region
      %v180 = vld [vmem:[%s140] sm:$0x3]
      %v181 = vld [vmem:[%s140 + $0x2] sm:$0x3]
      %v182 = vld [vmem:[%s140 + $0x4] sm:$0x3]
      %v183 = vld [vmem:[%s140 + $0x6] sm:$0x3]
      %v184 = vld [vmem:[%s140 + $0x8] sm:$0x3]
      %v185 = vld [vmem:[%s140 + $0xa] sm:$0x3]
      %v186 = vld [vmem:[%s140 + $0xc] sm:$0x3]
      %v187 = vld [vmem:[%s140 + $0xe] sm:$0x3]
      %v188 = vunpack.c.0.s8 %v180
      %v189 = vunpack.c.0.s8 %v181
      %v190 = vunpack.c.0.s8 %v182
      %v191 = vunpack.c.0.s8 %v183
      %v192 = vunpack.c.0.s8 %v184
      %v193 = vunpack.c.0.s8 %v185
      %v194 = vunpack.c.0.s8 %v186
      %v195 = vunpack.c.0.s8 %v187
      %v196 = vcvt.s32.f32 %v188
      %v197 = vcvt.s32.f32 %v189
      %v198 = vcvt.s32.f32 %v190
      %v199 = vcvt.s32.f32 %v191
      %v200 = vcvt.s32.f32 %v192
      %v201 = vcvt.s32.f32 %v193
      %v202 = vcvt.s32.f32 %v194
      %v203 = vcvt.s32.f32 %v195
      %v204 = vld [vmem:[%s3] sm:$0xff]
      %v205 = vld [vmem:[%s3 + $0x8] sm:$0xff]
      %v206 = vld [vmem:[%s3 + $0x10] sm:$0xff]
      %v207 = vld [vmem:[%s3 + $0x18] sm:$0xff]
      %v208 = vld [vmem:[%s3 + $0x20] sm:$0xff]
      %v209 = vld [vmem:[%s3 + $0x28] sm:$0xff]
      %v210 = vld [vmem:[%s3 + $0x30] sm:$0xff]
      %v211 = vld [vmem:[%s3 + $0x38] sm:$0xff]
      %v212 = vld [vmem:[%s114] sm:$0xff]
      %v213 = vld [vmem:[%s114 + $0x8] sm:$0xff]
      %v214 = vld [vmem:[%s114 + $0x10] sm:$0xff]
      %v215 = vld [vmem:[%s114 + $0x18] sm:$0xff]
      %v216 = vld [vmem:[%s114 + $0x20] sm:$0xff]
      %v217 = vld [vmem:[%s114 + $0x28] sm:$0xff]
      %v218 = vld [vmem:[%s114 + $0x30] sm:$0xff]
      %v219 = vld [vmem:[%s114 + $0x38] sm:$0xff]
      %v220 = vld [vmem:[%s114 + $0x40] sm:$0xff]
      %v221 = vld [vmem:[%s114 + $0x48] sm:$0xff]
      %v222 = vld [vmem:[%s114 + $0x50] sm:$0xff]
      %v223 = vld [vmem:[%s114 + $0x58] sm:$0xff]
      %v224 = vld [vmem:[%s114 + $0x60] sm:$0xff]
      %v225 = vld [vmem:[%s114 + $0x68] sm:$0xff]
      %v226 = vld [vmem:[%s114 + $0x70] sm:$0xff]
      %v227 = vld [vmem:[%s114 + $0x78] sm:$0xff]
      %228 = vmatprep.subr.mxu0 0.0
      %229 = vmatpush1.msra.mxu0 %v212
      %230 = vmatprep.subr.mxu0 0.0
      %231 = vmatpush1.msra.mxu0 %v213
      %232 = vmatprep.subr.mxu0 0.0
      %233 = vmatpush1.msra.mxu0 %v214
      %234 = vmatprep.subr.mxu0 0.0
      %235 = vmatpush1.msra.mxu0 %v215
      %236 = vmatprep.subr.mxu0 0.0
      %237 = vmatpush1.msra.mxu0 %v216
      %238 = vmatprep.subr.mxu0 0.0
      %239 = vmatpush1.msra.mxu0 %v217
      %240 = vmatprep.subr.mxu0 0.0
      %241 = vmatpush1.msra.mxu0 %v218
      %242 = vmatprep.subr.mxu0 0.0
      %243 = vmatpush1.msra.mxu0 %v219
      %244 = vmatprep.subr.mxu0 0.0
      %245 = vmatpush1.msra.mxu0 %v220
      %246 = vmatprep.subr.mxu0 0.0
      %247 = vmatpush1.msra.mxu0 %v221
      %248 = vmatprep.subr.mxu0 0.0
      %249 = vmatpush1.msra.mxu0 %v222
      %250 = vmatprep.subr.mxu0 0.0
      %251 = vmatpush1.msra.mxu0 %v223
      %252 = vmatprep.subr.mxu0 0.0
      %253 = vmatpush1.msra.mxu0 %v224
      %254 = vmatprep.subr.mxu0 0.0
      %255 = vmatpush1.msra.mxu0 %v225
      %256 = vmatprep.subr.mxu0 0.0
      %257 = vmatpush1.msra.mxu0 %v226
      %258 = vmatprep.subr.mxu0 0.0
      %259 = vmatpush1.msra.mxu0 %v227
      %260 = vmatprep.subr.mxu0 0.0
      %261 = vmatpush1.msra.mxu0 0.0
      %262 = vmatprep.subr.mxu0 0.0
      %263 = vmatpush1.msra.mxu0 0.0
      %264 = vmatprep.subr.mxu0 0.0
      %265 = vmatpush1.msra.mxu0 0.0
      %266 = vmatprep.subr.mxu0 0.0
      %267 = vmatpush1.msra.mxu0 0.0
      %268 = vmatprep.subr.mxu0 0.0
      %269 = vmatpush1.msra.mxu0 0.0
      %270 = vmatprep.subr.mxu0 0.0
      %271 = vmatpush1.msra.mxu0 0.0
      %272 = vmatprep.subr.mxu0 0.0
      %273 = vmatpush1.msra.mxu0 0.0
      %274 = vmatprep.subr.mxu0 0.0
      %275 = vmatpush1.msra.mxu0 0.0
      %276 = vmatprep.subr.mxu0 0.0
      %277 = vmatpush1.msra.mxu0 0.0
      %278 = vmatprep.subr.mxu0 0.0
      %279 = vmatpush1.msra.mxu0 0.0
      %280 = vmatprep.subr.mxu0 0.0
      %281 = vmatpush1.msra.mxu0 0.0
      %282 = vmatprep.subr.mxu0 0.0
      %283 = vmatpush1.msra.mxu0 0.0
      %284 = vmatprep.subr.mxu0 0.0
      %285 = vmatpush1.msra.mxu0 0.0
      %286 = vmatprep.subr.mxu0 0.0
      %287 = vmatpush1.msra.mxu0 0.0
      %288 = vmatprep.subr.mxu0 0.0
      %289 = vmatpush1.msra.mxu0 0.0
      %290 = vmatprep.subr.mxu0 0.0
      %291 = vmatpush1.msra.mxu0 0.0
      %292 = vmatprep.mubr.f32.mxu0 0.0
      %293 = vmatmul.mubr.f32.gmra.mrb[0].mxu0 %v204
      %v294 = vpop.f32.mrb[0].mxu0
      %v295 = vadd.f32 0.0, %v294
      %v296 = vpop.f32.mrb[0].mxu0
      %297 = vmatprep.mubr.f32.mxu0 0.0
      %298 = vmatmul.mubr.f32.gmra.mrb[0].mxu0 %v205
      %v299 = vpop.f32.mrb[0].mxu0
      %v300 = vadd.f32 0.0, %v299
      %v301 = vpop.f32.mrb[0].mxu0
      %302 = vmatprep.mubr.f32.mxu0 0.0
      %303 = vmatmul.mubr.f32.gmra.mrb[0].mxu0 %v206
      %v304 = vpop.f32.mrb[0].mxu0
      %v305 = vadd.f32 0.0, %v304
      %v306 = vpop.f32.mrb[0].mxu0
      %307 = vmatprep.mubr.f32.mxu0 0.0
      %308 = vmatmul.mubr.f32.gmra.mrb[0].mxu0 %v207
      %v309 = vpop.f32.mrb[0].mxu0
      %v310 = vadd.f32 0.0, %v309
      %v311 = vpop.f32.mrb[0].mxu0
      %312 = vmatprep.mubr.f32.mxu0 0.0
      %313 = vmatmul.mubr.f32.gmra.mrb[0].mxu0 %v208
      %v314 = vpop.f32.mrb[0].mxu0
      %v315 = vadd.f32 0.0, %v314
      %v316 = vpop.f32.mrb[0].mxu0
      %317 = vmatprep.mubr.f32.mxu0 0.0
      %318 = vmatmul.mubr.f32.gmra.mrb[0].mxu0 %v209
      %v319 = vpop.f32.mrb[0].mxu0
      %v320 = vadd.f32 0.0, %v319
      %v321 = vpop.f32.mrb[0].mxu0
      %322 = vmatprep.mubr.f32.mxu0 0.0
      %323 = vmatmul.mubr.f32.gmra.mrb[0].mxu0 %v210
      %v324 = vpop.f32.mrb[0].mxu0
      %v325 = vadd.f32 0.0, %v324
      %v326 = vpop.f32.mrb[0].mxu0
      %327 = vmatprep.mubr.f32.mxu0 0.0
      %328 = vmatmul.mubr.f32.gmra.mrb[0].mxu0 %v211
      %v329 = vpop.f32.mrb[0].mxu0
      %v330 = vadd.f32 0.0, %v329
      %v331 = vpop.f32.mrb[0].mxu0
      %332 = vdwg.mxu0
      %v333 = vmul.f32 %v295, 0.088388346
      %v334 = vmul.f32 %v300, 0.088388346
      %v335 = vmul.f32 %v305, 0.088388346
      %v336 = vmul.f32 %v310, 0.088388346
      %v337 = vmul.f32 %v315, 0.088388346
      %v338 = vmul.f32 %v320, 0.088388346
      %v339 = vmul.f32 %v325, 0.088388346
      %v340 = vmul.f32 %v330, 0.088388346
      %vm341 = vcmp.gt.f32.partialorder %v196, 0.0
      %vm342 = vcmp.gt.f32.partialorder %v197, 0.0
      %vm343 = vcmp.gt.f32.partialorder %v198, 0.0
      %vm344 = vcmp.gt.f32.partialorder %v199, 0.0
      %vm345 = vcmp.gt.f32.partialorder %v200, 0.0
      %vm346 = vcmp.gt.f32.partialorder %v201, 0.0
      %vm347 = vcmp.gt.f32.partialorder %v202, 0.0
      %vm348 = vcmp.gt.f32.partialorder %v203, 0.0
      %v349 = vsel %vm341, %v333, -1e+30
      %v350 = vsel %vm342, %v334, -1e+30
      %v351 = vsel %vm343, %v335, -1e+30
      %v352 = vsel %vm344, %v336, -1e+30
      %v353 = vsel %vm345, %v337, -1e+30
      %v354 = vsel %vm346, %v338, -1e+30
      %v355 = vsel %vm347, %v339, -1e+30
      %v356 = vsel %vm348, %v340, -1e+30
      %v357 = vld [vmem:[#allocation2] sm:$0xff]
      %v358 = vld [vmem:[#allocation2 + $0x8] sm:$0xff]
      %v359 = vld [vmem:[#allocation2 + $0x10] sm:$0xff]
      %v360 = vld [vmem:[#allocation2 + $0x18] sm:$0xff]
      %v361 = vld [vmem:[#allocation2 + $0x20] sm:$0xff]
      %v362 = vld [vmem:[#allocation2 + $0x28] sm:$0xff]
      %v363 = vld [vmem:[#allocation2 + $0x30] sm:$0xff]
      %v364 = vld [vmem:[#allocation2 + $0x38] sm:$0xff]
      %vm365 = vcmask 523264
      %v366 = vsel %vm365, %v349, -inf
      %367 = vmax.xlane.f32.xlu0 %v366
      %v368 = vpop.xlane.xlu0 %367
      %v369 = vsel %vm365, %v350, -inf
      %370 = vmax.xlane.f32.xlu0 %v369
      %v371 = vpop.xlane.xlu0 %370
      %v372 = vsel %vm365, %v351, -inf
      %373 = vmax.xlane.f32.xlu0 %v372
      %v374 = vpop.xlane.xlu0 %373
      %v375 = vsel %vm365, %v352, -inf
      %376 = vmax.xlane.f32.xlu0 %v375
      %v377 = vpop.xlane.xlu0 %376
      %v378 = vsel %vm365, %v353, -inf
      %379 = vmax.xlane.f32.xlu0 %v378
      %v380 = vpop.xlane.xlu0 %379
      %v381 = vsel %vm365, %v354, -inf
      %382 = vmax.xlane.f32.xlu0 %v381
      %v383 = vpop.xlane.xlu0 %382
      %v384 = vsel %vm365, %v355, -inf
      %385 = vmax.xlane.f32.xlu0 %v384
      %v386 = vpop.xlane.xlu0 %385
      %v387 = vsel %vm365, %v356, -inf
      %388 = vmax.xlane.f32.xlu0 %v387
      %v389 = vpop.xlane.xlu0 %388
      %v390 = vmax.f32 %v357, %v368
      %v391 = vmax.f32 %v358, %v371
      %v392 = vmax.f32 %v359, %v374
      %v393 = vmax.f32 %v360, %v377
      %v394 = vmax.f32 %v361, %v380
      %v395 = vmax.f32 %v362, %v383
      %v396 = vmax.f32 %v363, %v386
      %v397 = vmax.f32 %v364, %v389
      %v398 = vsub.f32 %v357, %v390
      %v399 = vsub.f32 %v358, %v391
      %v400 = vsub.f32 %v359, %v392
      %v401 = vsub.f32 %v360, %v393
      %v402 = vsub.f32 %v361, %v394
      %v403 = vsub.f32 %v362, %v395
      %v404 = vsub.f32 %v363, %v396
      %v405 = vsub.f32 %v364, %v397
      %v406 = vmul.f32 %v398, 1.442695
      %v407 = vpow.pop %v406
      %v408 = vmul.f32 %v399, 1.442695
      %v409 = vpow.pop %v408
      %v410 = vmul.f32 %v400, 1.442695
      %v411 = vpow.pop %v410
      %v412 = vmul.f32 %v401, 1.442695
      %v413 = vpow.pop %v412
      %v414 = vmul.f32 %v402, 1.442695
      %v415 = vpow.pop %v414
      %v416 = vmul.f32 %v403, 1.442695
      %v417 = vpow.pop %v416
      %v418 = vmul.f32 %v404, 1.442695
      %v419 = vpow.pop %v418
      %v420 = vmul.f32 %v405, 1.442695
      %v421 = vpow.pop %v420
      %423 = vset.pattern.permute.xlu0 0
      %424 = vperm.xlu0 %423, %v390
      %v425 = vpop.permute.xlu0 %424
      %428 = vset.pattern.permute.xlu0 0
      %429 = vperm.xlu0 %428, %v391
      %v430 = vpop.permute.xlu0 %429
      %433 = vset.pattern.permute.xlu0 0
      %434 = vperm.xlu0 %433, %v392
      %v435 = vpop.permute.xlu0 %434
      %438 = vset.pattern.permute.xlu0 0
      %439 = vperm.xlu0 %438, %v393
      %v440 = vpop.permute.xlu0 %439
      %443 = vset.pattern.permute.xlu0 0
      %444 = vperm.xlu0 %443, %v394
      %v445 = vpop.permute.xlu0 %444
      %448 = vset.pattern.permute.xlu0 0
      %449 = vperm.xlu0 %448, %v395
      %v450 = vpop.permute.xlu0 %449
      %453 = vset.pattern.permute.xlu0 0
      %454 = vperm.xlu0 %453, %v396
      %v455 = vpop.permute.xlu0 %454
      %458 = vset.pattern.permute.xlu0 0
      %459 = vperm.xlu0 %458, %v397
      %v460 = vpop.permute.xlu0 %459
      %v462 = vsub.f32 %v349, %v425
      %v463 = vsub.f32 %v350, %v430
      %v464 = vsub.f32 %v351, %v435
      %v465 = vsub.f32 %v352, %v440
      %v466 = vsub.f32 %v353, %v445
      %v467 = vsub.f32 %v354, %v450
      %v468 = vsub.f32 %v355, %v455
      %v469 = vsub.f32 %v356, %v460
      %v470 = vmul.f32 %v462, 1.442695
      %v471 = vpow.pop %v470
      %v472 = vmul.f32 %v463, 1.442695
      %v473 = vpow.pop %v472
      %v474 = vmul.f32 %v464, 1.442695
      %v475 = vpow.pop %v474
      %v476 = vmul.f32 %v465, 1.442695
      %v477 = vpow.pop %v476
      %v478 = vmul.f32 %v466, 1.442695
      %v479 = vpow.pop %v478
      %v480 = vmul.f32 %v467, 1.442695
      %v481 = vpow.pop %v480
      %v482 = vmul.f32 %v468, 1.442695
      %v483 = vpow.pop %v482
      %v484 = vmul.f32 %v469, 1.442695
      %v485 = vpow.pop %v484
      %v486 = vmul.f32 %v471, %v196
      %v487 = vmul.f32 %v473, %v197
      %v488 = vmul.f32 %v475, %v198
      %v489 = vmul.f32 %v477, %v199
      %v490 = vmul.f32 %v479, %v200
      %v491 = vmul.f32 %v481, %v201
      %v492 = vmul.f32 %v483, %v202
      %v493 = vmul.f32 %v485, %v203
      %v494 = vld [vmem:[#allocation3] sm:$0xff]
      %v495 = vld [vmem:[#allocation3 + $0x8] sm:$0xff]
      %v496 = vld [vmem:[#allocation3 + $0x10] sm:$0xff]
      %v497 = vld [vmem:[#allocation3 + $0x18] sm:$0xff]
      %v498 = vld [vmem:[#allocation3 + $0x20] sm:$0xff]
      %v499 = vld [vmem:[#allocation3 + $0x28] sm:$0xff]
      %v500 = vld [vmem:[#allocation3 + $0x30] sm:$0xff]
      %v501 = vld [vmem:[#allocation3 + $0x38] sm:$0xff]
      %v502 = vmul.f32 %v407, %v494
      %v503 = vmul.f32 %v409, %v495
      %v504 = vmul.f32 %v411, %v496
      %v505 = vmul.f32 %v413, %v497
      %v506 = vmul.f32 %v415, %v498
      %v507 = vmul.f32 %v417, %v499
      %v508 = vmul.f32 %v419, %v500
      %v509 = vmul.f32 %v421, %v501
      %v510 = vsel %vm365, %v486, 0.0
      %511 = vadd.xlane.f32.xlu0 %v510
      %v512 = vpop.xlane.xlu0 %511
      %v513 = vsel %vm365, %v487, 0.0
      %514 = vadd.xlane.f32.xlu0 %v513
      %v515 = vpop.xlane.xlu0 %514
      %v516 = vsel %vm365, %v488, 0.0
      %517 = vadd.xlane.f32.xlu0 %v516
      %v518 = vpop.xlane.xlu0 %517
      %v519 = vsel %vm365, %v489, 0.0
      %520 = vadd.xlane.f32.xlu0 %v519
      %v521 = vpop.xlane.xlu0 %520
      %v522 = vsel %vm365, %v490, 0.0
      %523 = vadd.xlane.f32.xlu0 %v522
      %v524 = vpop.xlane.xlu0 %523
      %v525 = vsel %vm365, %v491, 0.0
      %526 = vadd.xlane.f32.xlu0 %v525
      %v527 = vpop.xlane.xlu0 %526
      %v528 = vsel %vm365, %v492, 0.0
      %529 = vadd.xlane.f32.xlu0 %v528
      %v530 = vpop.xlane.xlu0 %529
      %v531 = vsel %vm365, %v493, 0.0
      %532 = vadd.xlane.f32.xlu0 %v531
      %v533 = vpop.xlane.xlu0 %532
      %v534 = vadd.f32 %v502, %v512
      %v535 = vadd.f32 %v503, %v515
      %v536 = vadd.f32 %v504, %v518
      %v537 = vadd.f32 %v505, %v521
      %v538 = vadd.f32 %v506, %v524
      %v539 = vadd.f32 %v507, %v527
      %v540 = vadd.f32 %v508, %v530
      %v541 = vadd.f32 %v509, %v533
      %vm542 = vcmask 7168
      %543 = vst.msk [vmem:[#allocation3] sm:$0xff] %vm542, %v534
      %544 = vst.msk [vmem:[#allocation3 + $0x8] sm:$0xff] %vm542, %v535
      %545 = vst.msk [vmem:[#allocation3 + $0x10] sm:$0xff] %vm542, %v536
      %546 = vst.msk [vmem:[#allocation3 + $0x18] sm:$0xff] %vm542, %v537
      %547 = vst.msk [vmem:[#allocation3 + $0x20] sm:$0xff] %vm542, %v538
      %548 = vst.msk [vmem:[#allocation3 + $0x28] sm:$0xff] %vm542, %v539
      %549 = vst.msk [vmem:[#allocation3 + $0x30] sm:$0xff] %vm542, %v540
      %550 = vst.msk [vmem:[#allocation3 + $0x38] sm:$0xff] %vm542, %v541
      %v551 = vld [vmem:[#allocation4] sm:$0xff]
      %v552 = vld [vmem:[#allocation4 + $0x8] sm:$0xff]
      %v553 = vld [vmem:[#allocation4 + $0x10] sm:$0xff]
      %v554 = vld [vmem:[#allocation4 + $0x18] sm:$0xff]
      %v555 = vld [vmem:[#allocation4 + $0x20] sm:$0xff]
      %v556 = vld [vmem:[#allocation4 + $0x28] sm:$0xff]
      %v557 = vld [vmem:[#allocation4 + $0x30] sm:$0xff]
      %v558 = vld [vmem:[#allocation4 + $0x38] sm:$0xff]
      %560 = vset.pattern.permute.xlu0 0
      %561 = vperm.xlu0 %560, %v407
      %v562 = vpop.permute.xlu0 %561
      %565 = vset.pattern.permute.xlu0 0
      %566 = vperm.xlu0 %565, %v409
      %v567 = vpop.permute.xlu0 %566
      %570 = vset.pattern.permute.xlu0 0
      %571 = vperm.xlu0 %570, %v411
      %v572 = vpop.permute.xlu0 %571
      %575 = vset.pattern.permute.xlu0 0
      %576 = vperm.xlu0 %575, %v413
      %v577 = vpop.permute.xlu0 %576
      %580 = vset.pattern.permute.xlu0 0
      %581 = vperm.xlu0 %580, %v415
      %v582 = vpop.permute.xlu0 %581
      %585 = vset.pattern.permute.xlu0 0
      %586 = vperm.xlu0 %585, %v417
      %v587 = vpop.permute.xlu0 %586
      %590 = vset.pattern.permute.xlu0 0
      %591 = vperm.xlu0 %590, %v419
      %v592 = vpop.permute.xlu0 %591
      %595 = vset.pattern.permute.xlu0 0
      %596 = vperm.xlu0 %595, %v421
      %v597 = vpop.permute.xlu0 %596
      %v599 = vmul.f32 %v562, %v551
      %v600 = vmul.f32 %v567, %v552
      %v601 = vmul.f32 %v572, %v553
      %v602 = vmul.f32 %v577, %v554
      %v603 = vmul.f32 %v582, %v555
      %v604 = vmul.f32 %v587, %v556
      %v605 = vmul.f32 %v592, %v557
      %v606 = vmul.f32 %v597, %v558
      %v607 = vld [vmem:[%s127] sm:$0xff]
      %v608 = vld [vmem:[%s127 + $0x8] sm:$0xff]
      %v609 = vld [vmem:[%s127 + $0x10] sm:$0xff]
      %v610 = vld [vmem:[%s127 + $0x18] sm:$0xff]
      %v611 = vld [vmem:[%s127 + $0x20] sm:$0xff]
      %v612 = vld [vmem:[%s127 + $0x28] sm:$0xff]
      %v613 = vld [vmem:[%s127 + $0x30] sm:$0xff]
      %v614 = vld [vmem:[%s127 + $0x38] sm:$0xff]
      %v616 = vsel %vm365, %v486, 0
      %v619 = vsel %vm365, %v487, 0
      %v622 = vsel %vm365, %v488, 0
      %v625 = vsel %vm365, %v489, 0
      %v628 = vsel %vm365, %v490, 0
      %v631 = vsel %vm365, %v491, 0
      %v634 = vsel %vm365, %v492, 0
      %v637 = vsel %vm365, %v493, 0
      %639 = vmatprep.subr.mxu0 0.0
      %640 = vmatpush1.msra.mxu0 %v607
      %641 = vmatprep.subr.mxu0 0.0
      %642 = vmatpush1.msra.mxu0 %v608
      %643 = vmatprep.subr.mxu0 0.0
      %644 = vmatpush1.msra.mxu0 %v609
      %645 = vmatprep.subr.mxu0 0.0
      %646 = vmatpush1.msra.mxu0 %v610
      %647 = vmatprep.subr.mxu0 0.0
      %648 = vmatpush1.msra.mxu0 %v611
      %649 = vmatprep.subr.mxu0 0.0
      %650 = vmatpush1.msra.mxu0 %v612
      %651 = vmatprep.subr.mxu0 0.0
      %652 = vmatpush1.msra.mxu0 %v613
      %653 = vmatprep.subr.mxu0 0.0
      %654 = vmatpush1.msra.mxu0 %v614
      %655 = vmatprep.subr.mxu0 0.0
      %656 = vmatpush1.msra.mxu0 0.0
      %657 = vmatprep.subr.mxu0 0.0
      %658 = vmatpush1.msra.mxu0 0.0
      %659 = vmatprep.subr.mxu0 0.0
      %660 = vmatpush1.msra.mxu0 0.0
      %661 = vmatprep.subr.mxu0 0.0
      %662 = vmatpush1.msra.mxu0 0.0
      %663 = vmatprep.subr.mxu0 0.0
      %664 = vmatpush1.msra.mxu0 0.0
      %665 = vmatprep.subr.mxu0 0.0
      %666 = vmatpush1.msra.mxu0 0.0
      %667 = vmatprep.subr.mxu0 0.0
      %668 = vmatpush1.msra.mxu0 0.0
      %669 = vmatprep.subr.mxu0 0.0
      %670 = vmatpush1.msra.mxu0 0.0
      %671 = vmatprep.subr.mxu0 0.0
      %672 = vmatpush1.msra.mxu0 0.0
      %673 = vmatprep.subr.mxu0 0.0
      %674 = vmatpush1.msra.mxu0 0.0
      %675 = vmatprep.subr.mxu0 0.0
      %676 = vmatpush1.msra.mxu0 0.0
      %677 = vmatprep.subr.mxu0 0.0
      %678 = vmatpush1.msra.mxu0 0.0
      %679 = vmatprep.subr.mxu0 0.0
      %680 = vmatpush1.msra.mxu0 0.0
      %681 = vmatprep.subr.mxu0 0.0
      %682 = vmatpush1.msra.mxu0 0.0
      %683 = vmatprep.subr.mxu0 0.0
      %684 = vmatpush1.msra.mxu0 0.0
      %685 = vmatprep.subr.mxu0 0.0
      %686 = vmatpush1.msra.mxu0 0.0
      %687 = vmatprep.subr.mxu0 0.0
      %688 = vmatpush1.msra.mxu0 0.0
      %689 = vmatprep.subr.mxu0 0.0
      %690 = vmatpush1.msra.mxu0 0.0
      %691 = vmatprep.subr.mxu0 0.0
      %692 = vmatpush1.msra.mxu0 0.0
      %693 = vmatprep.subr.mxu0 0.0
      %694 = vmatpush1.msra.mxu0 0.0
      %695 = vmatprep.subr.mxu0 0.0
      %696 = vmatpush1.msra.mxu0 0.0
      %697 = vmatprep.subr.mxu0 0.0
      %698 = vmatpush1.msra.mxu0 0.0
      %699 = vmatprep.subr.mxu0 0.0
      %700 = vmatpush1.msra.mxu0 0.0
      %701 = vmatprep.subr.mxu0 0.0
      %702 = vmatpush1.msra.mxu0 0.0
      %703 = vmatprep.mubr.f32.mxu0 0.0
      %704 = vmatmul.mubr.f32.gmra.mrb[0].mxu0 %v616
      %v705 = vpop.f32.mrb[0].mxu0
      %v706 = vadd.f32 0.0, %v705
      %v707 = vpop.f32.mrb[0].mxu0
      %708 = vmatprep.mubr.f32.mxu0 0.0
      %709 = vmatmul.mubr.f32.gmra.mrb[0].mxu0 %v619
      %v710 = vpop.f32.mrb[0].mxu0
      %v711 = vadd.f32 0.0, %v710
      %v712 = vpop.f32.mrb[0].mxu0
      %713 = vmatprep.mubr.f32.mxu0 0.0
      %714 = vmatmul.mubr.f32.gmra.mrb[0].mxu0 %v622
      %v715 = vpop.f32.mrb[0].mxu0
      %v716 = vadd.f32 0.0, %v715
      %v717 = vpop.f32.mrb[0].mxu0
      %718 = vmatprep.mubr.f32.mxu0 0.0
      %719 = vmatmul.mubr.f32.gmra.mrb[0].mxu0 %v625
      %v720 = vpop.f32.mrb[0].mxu0
      %v721 = vadd.f32 0.0, %v720
      %v722 = vpop.f32.mrb[0].mxu0
      %723 = vmatprep.mubr.f32.mxu0 0.0
      %724 = vmatmul.mubr.f32.gmra.mrb[0].mxu0 %v628
      %v725 = vpop.f32.mrb[0].mxu0
      %v726 = vadd.f32 0.0, %v725
      %v727 = vpop.f32.mrb[0].mxu0
      %728 = vmatprep.mubr.f32.mxu0 0.0
      %729 = vmatmul.mubr.f32.gmra.mrb[0].mxu0 %v631
      %v730 = vpop.f32.mrb[0].mxu0
      %v731 = vadd.f32 0.0, %v730
      %v732 = vpop.f32.mrb[0].mxu0
      %733 = vmatprep.mubr.f32.mxu0 0.0
      %734 = vmatmul.mubr.f32.gmra.mrb[0].mxu0 %v634
      %v735 = vpop.f32.mrb[0].mxu0
      %v736 = vadd.f32 0.0, %v735
      %v737 = vpop.f32.mrb[0].mxu0
      %738 = vmatprep.mubr.f32.mxu0 0.0
      %739 = vmatmul.mubr.f32.gmra.mrb[0].mxu0 %v637
      %v740 = vpop.f32.mrb[0].mxu0
      %v741 = vadd.f32 0.0, %v740
      %v742 = vpop.f32.mrb[0].mxu0
      %743 = vdwg.mxu0
      %v744 = vadd.f32 %v599, %v706
      %v745 = vadd.f32 %v600, %v711
      %v746 = vadd.f32 %v601, %v716
      %v747 = vadd.f32 %v602, %v721
      %v748 = vadd.f32 %v603, %v726
      %v749 = vadd.f32 %v604, %v731
      %v750 = vadd.f32 %v605, %v736
      %v751 = vadd.f32 %v606, %v741
      %752 = vst [vmem:[#allocation4] sm:$0xff] %v744
      %753 = vst [vmem:[#allocation4 + $0x8] sm:$0xff] %v745
      %754 = vst [vmem:[#allocation4 + $0x10] sm:$0xff] %v746
      %755 = vst [vmem:[#allocation4 + $0x18] sm:$0xff] %v747
      %756 = vst [vmem:[#allocation4 + $0x20] sm:$0xff] %v748
      %757 = vst [vmem:[#allocation4 + $0x28] sm:$0xff] %v749
      %758 = vst [vmem:[#allocation4 + $0x30] sm:$0xff] %v750
      %759 = vst [vmem:[#allocation4 + $0x38] sm:$0xff] %v751
      %760 = vst.msk [vmem:[#allocation2] sm:$0xff] %vm542, %v390
      %761 = vst.msk [vmem:[#allocation2 + $0x8] sm:$0xff] %vm542, %v391
      %762 = vst.msk [vmem:[#allocation2 + $0x10] sm:$0xff] %vm542, %v392
      %763 = vst.msk [vmem:[#allocation2 + $0x18] sm:$0xff] %vm542, %v393
      %764 = vst.msk [vmem:[#allocation2 + $0x20] sm:$0xff] %vm542, %v394
      %765 = vst.msk [vmem:[#allocation2 + $0x28] sm:$0xff] %vm542, %v395
      %766 = vst.msk [vmem:[#allocation2 + $0x30] sm:$0xff] %vm542, %v396
      %767 = vst.msk [vmem:[#allocation2 + $0x38] sm:$0xff] %vm542, %v397
    $region57: #{_forward_impl.3} parent=1 // pred_fallthru
      _
    // Predicated region
    $region58: #{_forward_impl.3} parent=1 // pred_check
      %p768 = pneg %p145
    $region59: #{_forward_impl.3} parent=1 // pred_check_branch
      %770 = sbr.rel (%p768) target = $region61
    $region60: #{_forward_impl.3} parent=1 // pred_region
      %v771 = vlaneseq
      %v772 = vand.u32 %v771, 127
      %v773 = vld [vmem:[%s1] sm:$0xff]
      %v774 = vld [vmem:[%s1 + $0x8] sm:$0xff]
      %v775 = vld [vmem:[%s1 + $0x10] sm:$0xff]
      %v776 = vld [vmem:[%s1 + $0x18] sm:$0xff]
      %v777 = vld [vmem:[%s1 + $0x20] sm:$0xff]
      %v778 = vld [vmem:[%s1 + $0x28] sm:$0xff]
      %v779 = vld [vmem:[%s1 + $0x30] sm:$0xff]
      %v780 = vld [vmem:[%s1 + $0x38] sm:$0xff]
      %781 = vset.pattern.permute.xlu0 0
      %782 = vperm.xlu0 %781, %v773
      %v783 = vpop.permute.xlu0 %782
      %784 = vset.pattern.permute.xlu0 0
      %785 = vperm.xlu0 %784, %v774
      %v786 = vpop.permute.xlu0 %785
      %787 = vset.pattern.permute.xlu0 0
      %788 = vperm.xlu0 %787, %v775
      %v789 = vpop.permute.xlu0 %788
      %790 = vset.pattern.permute.xlu0 0
      %791 = vperm.xlu0 %790, %v776
      %v792 = vpop.permute.xlu0 %791
      %793 = vset.pattern.permute.xlu0 0
      %794 = vperm.xlu0 %793, %v777
      %v795 = vpop.permute.xlu0 %794
      %796 = vset.pattern.permute.xlu0 0
      %797 = vperm.xlu0 %796, %v778
      %v798 = vpop.permute.xlu0 %797
      %799 = vset.pattern.permute.xlu0 0
      %800 = vperm.xlu0 %799, %v779
      %v801 = vpop.permute.xlu0 %800
      %802 = vset.pattern.permute.xlu0 0
      %803 = vperm.xlu0 %802, %v780
      %v804 = vpop.permute.xlu0 %803
      %vm805 = vcmp.eq.s32.totalorder %v783, %v772
      %vm806 = vcmp.eq.s32.totalorder %v786, %v772
      %vm807 = vcmp.eq.s32.totalorder %v789, %v772
      %vm808 = vcmp.eq.s32.totalorder %v792, %v772
      %vm809 = vcmp.eq.s32.totalorder %v795, %v772
      %vm810 = vcmp.eq.s32.totalorder %v798, %v772
      %vm811 = vcmp.eq.s32.totalorder %v801, %v772
      %vm812 = vcmp.eq.s32.totalorder %v804, %v772
      %v813 = vsel %vm805, 1, 0
      %v814 = vsel %vm806, 1, 0
      %v815 = vsel %vm807, 1, 0
      %v816 = vsel %vm808, 1, 0
      %v817 = vsel %vm809, 1, 0
      %v818 = vsel %vm810, 1, 0
      %v819 = vsel %vm811, 1, 0
      %v820 = vsel %vm812, 1, 0
      %v821 = vcvt.s32.f32 %v813
      %v822 = vcvt.s32.f32 %v814
      %v823 = vcvt.s32.f32 %v815
      %v824 = vcvt.s32.f32 %v816
      %v825 = vcvt.s32.f32 %v817
      %v826 = vcvt.s32.f32 %v818
      %v827 = vcvt.s32.f32 %v819
      %v828 = vcvt.s32.f32 %v820
      %v829 = vld [vmem:[%s2] sm:$0xff]
      %v830 = vld [vmem:[%s2 + $0x8] sm:$0x3]
      %v831 = vld [vmem:[#allocation3] sm:$0xff]
      %v832 = vld [vmem:[#allocation3 + $0x8] sm:$0xff]
      %v833 = vld [vmem:[#allocation3 + $0x10] sm:$0xff]
      %v834 = vld [vmem:[#allocation3 + $0x18] sm:$0xff]
      %v835 = vld [vmem:[#allocation3 + $0x20] sm:$0xff]
      %v836 = vld [vmem:[#allocation3 + $0x28] sm:$0xff]
      %v837 = vld [vmem:[#allocation3 + $0x30] sm:$0xff]
      %v838 = vld [vmem:[#allocation3 + $0x38] sm:$0xff]
      %v839 = vmax.f32 %v831, 1e-30
      %v840 = vmax.f32 %v832, 1e-30
      %v841 = vmax.f32 %v833, 1e-30
      %v842 = vmax.f32 %v834, 1e-30
      %v843 = vmax.f32 %v835, 1e-30
      %v844 = vmax.f32 %v836, 1e-30
      %v845 = vmax.f32 %v837, 1e-30
      %v846 = vmax.f32 %v838, 1e-30
      %v847 = vrcp.pop %v839
      %v848 = vrcp.pop %v840
      %v849 = vrcp.pop %v841
      %v850 = vrcp.pop %v842
      %v851 = vrcp.pop %v843
      %v852 = vrcp.pop %v844
      %v853 = vrcp.pop %v845
      %v854 = vrcp.pop %v846
      %v855 = vld [vmem:[#allocation4] sm:$0xff]
      %v856 = vld [vmem:[#allocation4 + $0x8] sm:$0xff]
      %v857 = vld [vmem:[#allocation4 + $0x10] sm:$0xff]
      %v858 = vld [vmem:[#allocation4 + $0x18] sm:$0xff]
      %v859 = vld [vmem:[#allocation4 + $0x20] sm:$0xff]
      %v860 = vld [vmem:[#allocation4 + $0x28] sm:$0xff]
      %v861 = vld [vmem:[#allocation4 + $0x30] sm:$0xff]
      %v862 = vld [vmem:[#allocation4 + $0x38] sm:$0xff]
      %864 = vset.pattern.permute.xlu0 0
      %865 = vperm.xlu0 %864, %v847
      %v866 = vpop.permute.xlu0 %865
      %869 = vset.pattern.permute.xlu0 0
      %870 = vperm.xlu0 %869, %v848
      %v871 = vpop.permute.xlu0 %870
      %874 = vset.pattern.permute.xlu0 0
      %875 = vperm.xlu0 %874, %v849
      %v876 = vpop.permute.xlu0 %875
      %879 = vset.pattern.permute.xlu0 0
      %880 = vperm.xlu0 %879, %v850
      %v881 = vpop.permute.xlu0 %880
      %884 = vset.pattern.permute.xlu0 0
      %885 = vperm.xlu0 %884, %v851
      %v886 = vpop.permute.xlu0 %885
      %889 = vset.pattern.permute.xlu0 0
      %890 = vperm.xlu0 %889, %v852
      %v891 = vpop.permute.xlu0 %890
      %894 = vset.pattern.permute.xlu0 0
      %895 = vperm.xlu0 %894, %v853
      %v896 = vpop.permute.xlu0 %895
      %899 = vset.pattern.permute.xlu0 0
      %900 = vperm.xlu0 %899, %v854
      %v901 = vpop.permute.xlu0 %900
      %v903 = vmul.f32 %v855, %v866
      %v904 = vmul.f32 %v856, %v871
      %v905 = vmul.f32 %v857, %v876
      %v906 = vmul.f32 %v858, %v881
      %v907 = vmul.f32 %v859, %v886
      %v908 = vmul.f32 %v860, %v891
      %v909 = vmul.f32 %v861, %v896
      %v910 = vmul.f32 %v862, %v901
      %vm911 = vcmask 80896
      %v913 = vsel %vm911, %v821, 0
      %v916 = vsel %vm911, %v822, 0
      %v919 = vsel %vm911, %v823, 0
      %v922 = vsel %vm911, %v824, 0
      %v925 = vsel %vm911, %v825, 0
      %v928 = vsel %vm911, %v826, 0
      %v931 = vsel %vm911, %v827, 0
      %v934 = vsel %vm911, %v828, 0
      %vm936 = vcmask 1041408
      %v938 = vsel %vm936, %v830, 0
      %940 = vmatprep.subr.mxu0 0.0
      %941 = vmatpush1.msra.mxu0 %v829
      %942 = vmatprep.subr.mxu0 0.0
      %943 = vmatpush1.msra.mxu0 %v938
      %944 = vmatprep.subr.mxu0 0.0
      %945 = vmatpush1.msra.mxu0 0.0
      %946 = vmatprep.subr.mxu0 0.0
      %947 = vmatpush1.msra.mxu0 0.0
      %948 = vmatprep.subr.mxu0 0.0
      %949 = vmatpush1.msra.mxu0 0.0
      %950 = vmatprep.subr.mxu0 0.0
      %951 = vmatpush1.msra.mxu0 0.0
      %952 = vmatprep.subr.mxu0 0.0
      %953 = vmatpush1.msra.mxu0 0.0
      %954 = vmatprep.subr.mxu0 0.0
      %955 = vmatpush1.msra.mxu0 0.0
      %956 = vmatprep.subr.mxu0 0.0
      %957 = vmatpush1.msra.mxu0 0.0
      %958 = vmatprep.subr.mxu0 0.0
      %959 = vmatpush1.msra.mxu0 0.0
      %960 = vmatprep.subr.mxu0 0.0
      %961 = vmatpush1.msra.mxu0 0.0
      %962 = vmatprep.subr.mxu0 0.0
      %963 = vmatpush1.msra.mxu0 0.0
      %964 = vmatprep.subr.mxu0 0.0
      %965 = vmatpush1.msra.mxu0 0.0
      %966 = vmatprep.subr.mxu0 0.0
      %967 = vmatpush1.msra.mxu0 0.0
      %968 = vmatprep.subr.mxu0 0.0
      %969 = vmatpush1.msra.mxu0 0.0
      %970 = vmatprep.subr.mxu0 0.0
      %971 = vmatpush1.msra.mxu0 0.0
      %972 = vmatprep.subr.mxu0 0.0
      %973 = vmatpush1.msra.mxu0 0.0
      %974 = vmatprep.subr.mxu0 0.0
      %975 = vmatpush1.msra.mxu0 0.0
      %976 = vmatprep.subr.mxu0 0.0
      %977 = vmatpush1.msra.mxu0 0.0
      %978 = vmatprep.subr.mxu0 0.0
      %979 = vmatpush1.msra.mxu0 0.0
      %980 = vmatprep.subr.mxu0 0.0
      %981 = vmatpush1.msra.mxu0 0.0
      %982 = vmatprep.subr.mxu0 0.0
      %983 = vmatpush1.msra.mxu0 0.0
      %984 = vmatprep.subr.mxu0 0.0
      %985 = vmatpush1.msra.mxu0 0.0
      %986 = vmatprep.subr.mxu0 0.0
      %987 = vmatpush1.msra.mxu0 0.0
      %988 = vmatprep.subr.mxu0 0.0
      %989 = vmatpush1.msra.mxu0 0.0
      %990 = vmatprep.subr.mxu0 0.0
      %991 = vmatpush1.msra.mxu0 0.0
      %992 = vmatprep.subr.mxu0 0.0
      %993 = vmatpush1.msra.mxu0 0.0
      %994 = vmatprep.subr.mxu0 0.0
      %995 = vmatpush1.msra.mxu0 0.0
      %996 = vmatprep.subr.mxu0 0.0
      %997 = vmatpush1.msra.mxu0 0.0
      %998 = vmatprep.subr.mxu0 0.0
      %999 = vmatpush1.msra.mxu0 0.0
      %1000 = vmatprep.subr.mxu0 0.0
      %1001 = vmatpush1.msra.mxu0 0.0
      %1002 = vmatprep.subr.mxu0 0.0
      %1003 = vmatpush1.msra.mxu0 0.0
      %1004 = vmatprep.mubr.f32.mxu0 0.0
      %1005 = vmatmul.mubr.f32.gmra.mrb[0].mxu0 %v913
      %v1006 = vpop.f32.mrb[0].mxu0
      %v1007 = vadd.f32 %v903, %v1006
      %v1008 = vpop.f32.mrb[0].mxu0
      %1009 = vmatprep.mubr.f32.mxu0 0.0
      %1010 = vmatmul.mubr.f32.gmra.mrb[0].mxu0 %v916
      %v1011 = vpop.f32.mrb[0].mxu0
      %v1012 = vadd.f32 %v904, %v1011
      %v1013 = vpop.f32.mrb[0].mxu0
      %1014 = vmatprep.mubr.f32.mxu0 0.0
      %1015 = vmatmul.mubr.f32.gmra.mrb[0].mxu0 %v919
      %v1016 = vpop.f32.mrb[0].mxu0
      %v1017 = vadd.f32 %v905, %v1016
      %v1018 = vpop.f32.mrb[0].mxu0
      %1019 = vmatprep.mubr.f32.mxu0 0.0
      %1020 = vmatmul.mubr.f32.gmra.mrb[0].mxu0 %v922
      %v1021 = vpop.f32.mrb[0].mxu0
      %v1022 = vadd.f32 %v906, %v1021
      %v1023 = vpop.f32.mrb[0].mxu0
      %1024 = vmatprep.mubr.f32.mxu0 0.0
      %1025 = vmatmul.mubr.f32.gmra.mrb[0].mxu0 %v925
      %v1026 = vpop.f32.mrb[0].mxu0
      %v1027 = vadd.f32 %v907, %v1026
      %v1028 = vpop.f32.mrb[0].mxu0
      %1029 = vmatprep.mubr.f32.mxu0 0.0
      %1030 = vmatmul.mubr.f32.gmra.mrb[0].mxu0 %v928
      %v1031 = vpop.f32.mrb[0].mxu0
      %v1032 = vadd.f32 %v908, %v1031
      %v1033 = vpop.f32.mrb[0].mxu0
      %1034 = vmatprep.mubr.f32.mxu0 0.0
      %1035 = vmatmul.mubr.f32.gmra.mrb[0].mxu0 %v931
      %v1036 = vpop.f32.mrb[0].mxu0
      %v1037 = vadd.f32 %v909, %v1036
      %v1038 = vpop.f32.mrb[0].mxu0
      %1039 = vmatprep.mubr.f32.mxu0 0.0
      %1040 = vmatmul.mubr.f32.gmra.mrb[0].mxu0 %v934
      %v1041 = vpop.f32.mrb[0].mxu0
      %v1042 = vadd.f32 %v910, %v1041
      %v1043 = vpop.f32.mrb[0].mxu0
      %1044 = vdwg.mxu0
      %1045 = vadd.xlane.f32.xlu0 %v1007
      %v1046 = vpop.xlane.xlu0 %1045
      %1047 = vadd.xlane.f32.xlu0 %v1012
      %v1048 = vpop.xlane.xlu0 %1047
      %1049 = vadd.xlane.f32.xlu0 %v1017
      %v1050 = vpop.xlane.xlu0 %1049
      %1051 = vadd.xlane.f32.xlu0 %v1022
      %v1052 = vpop.xlane.xlu0 %1051
      %1053 = vadd.xlane.f32.xlu0 %v1027
      %v1054 = vpop.xlane.xlu0 %1053
      %1055 = vadd.xlane.f32.xlu0 %v1032
      %v1056 = vpop.xlane.xlu0 %1055
      %1057 = vadd.xlane.f32.xlu0 %v1037
      %v1058 = vpop.xlane.xlu0 %1057
      %1059 = vadd.xlane.f32.xlu0 %v1042
      %v1060 = vpop.xlane.xlu0 %1059
      %v1061 = vrcp.pop 128.0
      %v1062 = vmul.f32 %v1046, %v1061
      %v1063 = vmul.f32 %v1048, %v1061
      %v1064 = vmul.f32 %v1050, %v1061
      %v1065 = vmul.f32 %v1052, %v1061
      %v1066 = vmul.f32 %v1054, %v1061
      %v1067 = vmul.f32 %v1056, %v1061
      %v1068 = vmul.f32 %v1058, %v1061
      %v1069 = vmul.f32 %v1060, %v1061
      %v1070 = vsub.f32 %v1007, %v1062
      %v1071 = vsub.f32 %v1012, %v1063
      %v1072 = vsub.f32 %v1017, %v1064
      %v1073 = vsub.f32 %v1022, %v1065
      %v1074 = vsub.f32 %v1027, %v1066
      %v1075 = vsub.f32 %v1032, %v1067
      %v1076 = vsub.f32 %v1037, %v1068
      %v1077 = vsub.f32 %v1042, %v1069
      %v1078 = vmul.f32 %v1070, %v1070
      %v1079 = vmul.f32 %v1071, %v1071
      %v1080 = vmul.f32 %v1072, %v1072
      %v1081 = vmul.f32 %v1073, %v1073
      %v1082 = vmul.f32 %v1074, %v1074
      %v1083 = vmul.f32 %v1075, %v1075
      %v1084 = vmul.f32 %v1076, %v1076
      %v1085 = vmul.f32 %v1077, %v1077
      %1086 = vadd.xlane.f32.xlu0 %v1078
      %v1087 = vpop.xlane.xlu0 %1086
      %1088 = vadd.xlane.f32.xlu0 %v1079
      %v1089 = vpop.xlane.xlu0 %1088
      %1090 = vadd.xlane.f32.xlu0 %v1080
      %v1091 = vpop.xlane.xlu0 %1090
      %1092 = vadd.xlane.f32.xlu0 %v1081
      %v1093 = vpop.xlane.xlu0 %1092
      %1094 = vadd.xlane.f32.xlu0 %v1082
      %v1095 = vpop.xlane.xlu0 %1094
      %1096 = vadd.xlane.f32.xlu0 %v1083
      %v1097 = vpop.xlane.xlu0 %1096
      %1098 = vadd.xlane.f32.xlu0 %v1084
      %v1099 = vpop.xlane.xlu0 %1098
      %1100 = vadd.xlane.f32.xlu0 %v1085
      %v1101 = vpop.xlane.xlu0 %1100
      %v1102 = vmul.f32 %v1087, %v1061
      %v1103 = vmul.f32 %v1089, %v1061
      %v1104 = vmul.f32 %v1091, %v1061
      %v1105 = vmul.f32 %v1093, %v1061
      %v1106 = vmul.f32 %v1095, %v1061
      %v1107 = vmul.f32 %v1097, %v1061
      %v1108 = vmul.f32 %v1099, %v1061
      %v1109 = vmul.f32 %v1101, %v1061
      %v1110 = vadd.f32 %v1102, 1e-05
      %v1111 = vadd.f32 %v1103, 1e-05
      %v1112 = vadd.f32 %v1104, 1e-05
      %v1113 = vadd.f32 %v1105, 1e-05
      %v1114 = vadd.f32 %v1106, 1e-05
      %v1115 = vadd.f32 %v1107, 1e-05
      %v1116 = vadd.f32 %v1108, 1e-05
      %v1117 = vadd.f32 %v1109, 1e-05
      %v1118 = vrsqrt.pop %v1110
      %v1119 = vrsqrt.pop %v1111
      %v1120 = vrsqrt.pop %v1112
      %v1121 = vrsqrt.pop %v1113
      %v1122 = vrsqrt.pop %v1114
      %v1123 = vrsqrt.pop %v1115
      %v1124 = vrsqrt.pop %v1116
      %v1125 = vrsqrt.pop %v1117
      %v1126 = vmul.f32 %v1070, %v1118
      %v1127 = vmul.f32 %v1071, %v1119
      %v1128 = vmul.f32 %v1072, %v1120
      %v1129 = vmul.f32 %v1073, %v1121
      %v1130 = vmul.f32 %v1074, %v1122
      %v1131 = vmul.f32 %v1075, %v1123
      %v1132 = vmul.f32 %v1076, %v1124
      %v1133 = vmul.f32 %v1077, %v1125
      %v1134 = vld [vmem:[%s7] sm:$0x1]
      %v1136 = vlaneseq
      %v1137 = vshrl.u32 %v1136, 7
      %v1138 = vsub.s32 0, %v1137
      %v1139 = vrot.slane %v1134, %v1138
      %v1141 = vmul.f32 %v1126, %v1139
      %v1142 = vmul.f32 %v1127, %v1139
      %v1143 = vmul.f32 %v1128, %v1139
      %v1144 = vmul.f32 %v1129, %v1139
      %v1145 = vmul.f32 %v1130, %v1139
      %v1146 = vmul.f32 %v1131, %v1139
      %v1147 = vmul.f32 %v1132, %v1139
      %v1148 = vmul.f32 %v1133, %v1139
      %v1149 = vld [vmem:[%s8] sm:$0x1]
      %v1151 = vlaneseq
      %v1152 = vshrl.u32 %v1151, 7
      %v1153 = vsub.s32 0, %v1152
      %v1154 = vrot.slane %v1149, %v1153
      %v1156 = vadd.f32 %v1141, %v1154
      %v1157 = vadd.f32 %v1142, %v1154
      %v1158 = vadd.f32 %v1143, %v1154
      %v1159 = vadd.f32 %v1144, %v1154
      %v1160 = vadd.f32 %v1145, %v1154
      %v1161 = vadd.f32 %v1146, %v1154
      %v1162 = vadd.f32 %v1147, %v1154
      %v1163 = vadd.f32 %v1148, %v1154
      %v1164 = vld [vmem:[%s9] sm:$0xff]
      %v1165 = vld [vmem:[%s9 + $0x8] sm:$0xff]
      %v1166 = vld [vmem:[%s9 + $0x10] sm:$0xff]
      %v1167 = vld [vmem:[%s9 + $0x18] sm:$0xff]
      %v1168 = vld [vmem:[%s9 + $0x20] sm:$0xff]
      %v1169 = vld [vmem:[%s9 + $0x28] sm:$0xff]
      %v1170 = vld [vmem:[%s9 + $0x30] sm:$0xff]
      %v1171 = vld [vmem:[%s9 + $0x38] sm:$0xff]
      %v1172 = vld [vmem:[%s9 + $0x40] sm:$0xff]
      %v1173 = vld [vmem:[%s9 + $0x48] sm:$0xff]
      %v1174 = vld [vmem:[%s9 + $0x50] sm:$0xff]
      %v1175 = vld [vmem:[%s9 + $0x58] sm:$0xff]
      %v1176 = vld [vmem:[%s9 + $0x60] sm:$0xff]
      %v1177 = vld [vmem:[%s9 + $0x68] sm:$0xff]
      %v1178 = vld [vmem:[%s9 + $0x70] sm:$0xff]
      %v1179 = vld [vmem:[%s9 + $0x78] sm:$0xff]
      %v1180 = vld [vmem:[%s10] sm:$0x1]
      %v1182 = vlaneseq
      %v1183 = vshrl.u32 %v1182, 7
      %v1184 = vsub.s32 0, %v1183
      %v1185 = vrot.slane %v1180, %v1184
      %1187 = vmatprep.subr.mxu0 0.0
      %1188 = vmatpush1.msra.mxu0 %v1164
      %1189 = vmatprep.subr.mxu0 0.0
      %1190 = vmatpush1.msra.mxu0 %v1165
      %1191 = vmatprep.subr.mxu0 0.0
      %1192 = vmatpush1.msra.mxu0 %v1166
      %1193 = vmatprep.subr.mxu0 0.0
      %1194 = vmatpush1.msra.mxu0 %v1167
      %1195 = vmatprep.subr.mxu0 0.0
      %1196 = vmatpush1.msra.mxu0 %v1168
      %1197 = vmatprep.subr.mxu0 0.0
      %1198 = vmatpush1.msra.mxu0 %v1169
      %1199 = vmatprep.subr.mxu0 0.0
      %1200 = vmatpush1.msra.mxu0 %v1170
      %1201 = vmatprep.subr.mxu0 0.0
      %1202 = vmatpush1.msra.mxu0 %v1171
      %1203 = vmatprep.subr.mxu0 0.0
      %1204 = vmatpush1.msra.mxu0 %v1172
      %1205 = vmatprep.subr.mxu0 0.0
      %1206 = vmatpush1.msra.mxu0 %v1173
      %1207 = vmatprep.subr.mxu0 0.0
      %1208 = vmatpush1.msra.mxu0 %v1174
      %1209 = vmatprep.subr.mxu0 0.0
      %1210 = vmatpush1.msra.mxu0 %v1175
      %1211 = vmatprep.subr.mxu0 0.0
      %1212 = vmatpush1.msra.mxu0 %v1176
      %1213 = vmatprep.subr.mxu0 0.0
      %1214 = vmatpush1.msra.mxu0 %v1177
      %1215 = vmatprep.subr.mxu0 0.0
      %1216 = vmatpush1.msra.mxu0 %v1178
      %1217 = vmatprep.subr.mxu0 0.0
      %1218 = vmatpush1.msra.mxu0 %v1179
      %1219 = vmatprep.subr.mxu0 0.0
      %1220 = vmatpush1.msra.mxu0 0.0
      %1221 = vmatprep.subr.mxu0 0.0
      %1222 = vmatpush1.msra.mxu0 0.0
      %1223 = vmatprep.subr.mxu0 0.0
      %1224 = vmatpush1.msra.mxu0 0.0
      %1225 = vmatprep.subr.mxu0 0.0
      %1226 = vmatpush1.msra.mxu0 0.0
      %1227 = vmatprep.subr.mxu0 0.0
      %1228 = vmatpush1.msra.mxu0 0.0
      %1229 = vmatprep.subr.mxu0 0.0
      %1230 = vmatpush1.msra.mxu0 0.0
      %1231 = vmatprep.subr.mxu0 0.0
      %1232 = vmatpush1.msra.mxu0 0.0
      %1233 = vmatprep.subr.mxu0 0.0
      %1234 = vmatpush1.msra.mxu0 0.0
      %1235 = vmatprep.subr.mxu0 0.0
      %1236 = vmatpush1.msra.mxu0 0.0
      %1237 = vmatprep.subr.mxu0 0.0
      %1238 = vmatpush1.msra.mxu0 0.0
      %1239 = vmatprep.subr.mxu0 0.0
      %1240 = vmatpush1.msra.mxu0 0.0
      %1241 = vmatprep.subr.mxu0 0.0
      %1242 = vmatpush1.msra.mxu0 0.0
      %1243 = vmatprep.subr.mxu0 0.0
      %1244 = vmatpush1.msra.mxu0 0.0
      %1245 = vmatprep.subr.mxu0 0.0
      %1246 = vmatpush1.msra.mxu0 0.0
      %1247 = vmatprep.subr.mxu0 0.0
      %1248 = vmatpush1.msra.mxu0 0.0
      %1249 = vmatprep.subr.mxu0 0.0
      %1250 = vmatpush1.msra.mxu0 0.0
      %1251 = vmatprep.mubr.f32.mxu0 0.0
      %1252 = vmatmul.mubr.f32.gmra.mrb[0].mxu0 %v1156
      %v1253 = vpop.f32.mrb[0].mxu0
      %v1254 = vadd.f32 %v1185, %v1253
      %v1255 = vpop.f32.mrb[0].mxu0
      %1256 = vmatprep.mubr.f32.mxu0 0.0
      %1257 = vmatmul.mubr.f32.gmra.mrb[0].mxu0 %v1157
      %v1258 = vpop.f32.mrb[0].mxu0
      %v1259 = vadd.f32 %v1185, %v1258
      %v1260 = vpop.f32.mrb[0].mxu0
      %1261 = vmatprep.mubr.f32.mxu0 0.0
      %1262 = vmatmul.mubr.f32.gmra.mrb[0].mxu0 %v1158
      %v1263 = vpop.f32.mrb[0].mxu0
      %v1264 = vadd.f32 %v1185, %v1263
      %v1265 = vpop.f32.mrb[0].mxu0
      %1266 = vmatprep.mubr.f32.mxu0 0.0
      %1267 = vmatmul.mubr.f32.gmra.mrb[0].mxu0 %v1159
      %v1268 = vpop.f32.mrb[0].mxu0
      %v1269 = vadd.f32 %v1185, %v1268
      %v1270 = vpop.f32.mrb[0].mxu0
      %1271 = vmatprep.mubr.f32.mxu0 0.0
      %1272 = vmatmul.mubr.f32.gmra.mrb[0].mxu0 %v1160
      %v1273 = vpop.f32.mrb[0].mxu0
      %v1274 = vadd.f32 %v1185, %v1273
      %v1275 = vpop.f32.mrb[0].mxu0
      %1276 = vmatprep.mubr.f32.mxu0 0.0
      %1277 = vmatmul.mubr.f32.gmra.mrb[0].mxu0 %v1161
      %v1278 = vpop.f32.mrb[0].mxu0
      %v1279 = vadd.f32 %v1185, %v1278
      %v1280 = vpop.f32.mrb[0].mxu0
      %1281 = vmatprep.mubr.f32.mxu0 0.0
      %1282 = vmatmul.mubr.f32.gmra.mrb[0].mxu0 %v1162
      %v1283 = vpop.f32.mrb[0].mxu0
      %v1284 = vadd.f32 %v1185, %v1283
      %v1285 = vpop.f32.mrb[0].mxu0
      %1286 = vmatprep.mubr.f32.mxu0 0.0
      %1287 = vmatmul.mubr.f32.gmra.mrb[0].mxu0 %v1163
      %v1288 = vpop.f32.mrb[0].mxu0
      %v1289 = vadd.f32 %v1185, %v1288
      %v1290 = vpop.f32.mrb[0].mxu0
      %1291 = vdwg.mxu0
      %v1292 = vxor.u32 %v1254, 2147483648
      %v1293 = vxor.u32 %v1259, 2147483648
      %v1294 = vxor.u32 %v1264, 2147483648
      %v1295 = vxor.u32 %v1269, 2147483648
      %v1296 = vxor.u32 %v1274, 2147483648
      %v1297 = vxor.u32 %v1279, 2147483648
      %v1298 = vxor.u32 %v1284, 2147483648
      %v1299 = vxor.u32 %v1289, 2147483648
      %v1300 = vmul.f32 %v1292, 1.442695
      %v1301 = vpow.pop %v1300
      %v1302 = vmul.f32 %v1293, 1.442695
      %v1303 = vpow.pop %v1302
      %v1304 = vmul.f32 %v1294, 1.442695
      %v1305 = vpow.pop %v1304
      %v1306 = vmul.f32 %v1295, 1.442695
      %v1307 = vpow.pop %v1306
      %v1308 = vmul.f32 %v1296, 1.442695
      %v1309 = vpow.pop %v1308
      %v1310 = vmul.f32 %v1297, 1.442695
      %v1311 = vpow.pop %v1310
      %v1312 = vmul.f32 %v1298, 1.442695
      %v1313 = vpow.pop %v1312
      %v1314 = vmul.f32 %v1299, 1.442695
      %v1315 = vpow.pop %v1314
      %v1316 = vadd.f32 %v1301, 1.0
      %v1317 = vadd.f32 %v1303, 1.0
      %v1318 = vadd.f32 %v1305, 1.0
      %v1319 = vadd.f32 %v1307, 1.0
      %v1320 = vadd.f32 %v1309, 1.0
      %v1321 = vadd.f32 %v1311, 1.0
      %v1322 = vadd.f32 %v1313, 1.0
      %v1323 = vadd.f32 %v1315, 1.0
      %v1324 = vrcp.pop %v1316
      %v1325 = vmul.f32 1.0, %v1324
      %v1326 = vrcp.pop %v1317
      %v1327 = vmul.f32 1.0, %v1326
      %v1328 = vrcp.pop %v1318
      %v1329 = vmul.f32 1.0, %v1328
      %v1330 = vrcp.pop %v1319
      %v1331 = vmul.f32 1.0, %v1330
      %v1332 = vrcp.pop %v1320
      %v1333 = vmul.f32 1.0, %v1332
      %v1334 = vrcp.pop %v1321
      %v1335 = vmul.f32 1.0, %v1334
      %v1336 = vrcp.pop %v1322
      %v1337 = vmul.f32 1.0, %v1336
      %v1338 = vrcp.pop %v1323
      %v1339 = vmul.f32 1.0, %v1338
      %v1340 = vmul.f32 %v1254, %v1325
      %v1341 = vmul.f32 %v1259, %v1327
      %v1342 = vmul.f32 %v1264, %v1329
      %v1343 = vmul.f32 %v1269, %v1331
      %v1344 = vmul.f32 %v1274, %v1333
      %v1345 = vmul.f32 %v1279, %v1335
      %v1346 = vmul.f32 %v1284, %v1337
      %v1347 = vmul.f32 %v1289, %v1339
      %v1348 = vld [vmem:[%s11] sm:$0xff]
      %v1349 = vld [vmem:[%s11 + $0x8] sm:$0xff]
      %v1350 = vld [vmem:[%s11 + $0x10] sm:$0xff]
      %v1351 = vld [vmem:[%s11 + $0x18] sm:$0xff]
      %v1352 = vld [vmem:[%s11 + $0x20] sm:$0xff]
      %v1353 = vld [vmem:[%s11 + $0x28] sm:$0xff]
      %v1354 = vld [vmem:[%s11 + $0x30] sm:$0xff]
      %v1355 = vld [vmem:[%s11 + $0x38] sm:$0xff]
      %v1356 = vld [vmem:[%s11 + $0x40] sm:$0xff]
      %v1357 = vld [vmem:[%s11 + $0x48] sm:$0xff]
      %v1358 = vld [vmem:[%s11 + $0x50] sm:$0xff]
      %v1359 = vld [vmem:[%s11 + $0x58] sm:$0xff]
      %v1360 = vld [vmem:[%s11 + $0x60] sm:$0xff]
      %v1361 = vld [vmem:[%s11 + $0x68] sm:$0xff]
      %v1362 = vld [vmem:[%s11 + $0x70] sm:$0xff]
      %v1363 = vld [vmem:[%s11 + $0x78] sm:$0xff]
      %v1364 = vld [vmem:[%s12] sm:$0x1]
      %v1366 = vlaneseq
      %v1367 = vshrl.u32 %v1366, 7
      %v1368 = vsub.s32 0, %v1367
      %v1369 = vrot.slane %v1364, %v1368
      %1371 = vmatprep.subr.mxu0 0.0
      %1372 = vmatpush1.msra.mxu0 %v1348
      %1373 = vmatprep.subr.mxu0 0.0
      %1374 = vmatpush1.msra.mxu0 %v1349
      %1375 = vmatprep.subr.mxu0 0.0
      %1376 = vmatpush1.msra.mxu0 %v1350
      %1377 = vmatprep.subr.mxu0 0.0
      %1378 = vmatpush1.msra.mxu0 %v1351
      %1379 = vmatprep.subr.mxu0 0.0
      %1380 = vmatpush1.msra.mxu0 %v1352
      %1381 = vmatprep.subr.mxu0 0.0
      %1382 = vmatpush1.msra.mxu0 %v1353
      %1383 = vmatprep.subr.mxu0 0.0
      %1384 = vmatpush1.msra.mxu0 %v1354
      %1385 = vmatprep.subr.mxu0 0.0
      %1386 = vmatpush1.msra.mxu0 %v1355
      %1387 = vmatprep.subr.mxu0 0.0
      %1388 = vmatpush1.msra.mxu0 %v1356
      %1389 = vmatprep.subr.mxu0 0.0
      %1390 = vmatpush1.msra.mxu0 %v1357
      %1391 = vmatprep.subr.mxu0 0.0
      %1392 = vmatpush1.msra.mxu0 %v1358
      %1393 = vmatprep.subr.mxu0 0.0
      %1394 = vmatpush1.msra.mxu0 %v1359
      %1395 = vmatprep.subr.mxu0 0.0
      %1396 = vmatpush1.msra.mxu0 %v1360
      %1397 = vmatprep.subr.mxu0 0.0
      %1398 = vmatpush1.msra.mxu0 %v1361
      %1399 = vmatprep.subr.mxu0 0.0
      %1400 = vmatpush1.msra.mxu0 %v1362
      %1401 = vmatprep.subr.mxu0 0.0
      %1402 = vmatpush1.msra.mxu0 %v1363
      %1403 = vmatprep.subr.mxu0 0.0
      %1404 = vmatpush1.msra.mxu0 0.0
      %1405 = vmatprep.subr.mxu0 0.0
      %1406 = vmatpush1.msra.mxu0 0.0
      %1407 = vmatprep.subr.mxu0 0.0
      %1408 = vmatpush1.msra.mxu0 0.0
      %1409 = vmatprep.subr.mxu0 0.0
      %1410 = vmatpush1.msra.mxu0 0.0
      %1411 = vmatprep.subr.mxu0 0.0
      %1412 = vmatpush1.msra.mxu0 0.0
      %1413 = vmatprep.subr.mxu0 0.0
      %1414 = vmatpush1.msra.mxu0 0.0
      %1415 = vmatprep.subr.mxu0 0.0
      %1416 = vmatpush1.msra.mxu0 0.0
      %1417 = vmatprep.subr.mxu0 0.0
      %1418 = vmatpush1.msra.mxu0 0.0
      %1419 = vmatprep.subr.mxu0 0.0
      %1420 = vmatpush1.msra.mxu0 0.0
      %1421 = vmatprep.subr.mxu0 0.0
      %1422 = vmatpush1.msra.mxu0 0.0
      %1423 = vmatprep.subr.mxu0 0.0
      %1424 = vmatpush1.msra.mxu0 0.0
      %1425 = vmatprep.subr.mxu0 0.0
      %1426 = vmatpush1.msra.mxu0 0.0
      %1427 = vmatprep.subr.mxu0 0.0
      %1428 = vmatpush1.msra.mxu0 0.0
      %1429 = vmatprep.subr.mxu0 0.0
      %1430 = vmatpush1.msra.mxu0 0.0
      %1431 = vmatprep.subr.mxu0 0.0
      %1432 = vmatpush1.msra.mxu0 0.0
      %1433 = vmatprep.subr.mxu0 0.0
      %1434 = vmatpush1.msra.mxu0 0.0
      %1435 = vmatprep.mubr.f32.mxu0 0.0
      %1436 = vmatmul.mubr.f32.gmra.mrb[0].mxu0 %v1340
      %v1437 = vpop.f32.mrb[0].mxu0
      %v1438 = vadd.f32 %v1369, %v1437
      %v1439 = vpop.f32.mrb[0].mxu0
      %1440 = vmatprep.mubr.f32.mxu0 0.0
      %1441 = vmatmul.mubr.f32.gmra.mrb[0].mxu0 %v1341
      %v1442 = vpop.f32.mrb[0].mxu0
      %v1443 = vadd.f32 %v1369, %v1442
      %v1444 = vpop.f32.mrb[0].mxu0
      %1445 = vmatprep.mubr.f32.mxu0 0.0
      %1446 = vmatmul.mubr.f32.gmra.mrb[0].mxu0 %v1342
      %v1447 = vpop.f32.mrb[0].mxu0
      %v1448 = vadd.f32 %v1369, %v1447
      %v1449 = vpop.f32.mrb[0].mxu0
      %1450 = vmatprep.mubr.f32.mxu0 0.0
      %1451 = vmatmul.mubr.f32.gmra.mrb[0].mxu0 %v1343
      %v1452 = vpop.f32.mrb[0].mxu0
      %v1453 = vadd.f32 %v1369, %v1452
      %v1454 = vpop.f32.mrb[0].mxu0
      %1455 = vmatprep.mubr.f32.mxu0 0.0
      %1456 = vmatmul.mubr.f32.gmra.mrb[0].mxu0 %v1344
      %v1457 = vpop.f32.mrb[0].mxu0
      %v1458 = vadd.f32 %v1369, %v1457
      %v1459 = vpop.f32.mrb[0].mxu0
      %1460 = vmatprep.mubr.f32.mxu0 0.0
      %1461 = vmatmul.mubr.f32.gmra.mrb[0].mxu0 %v1345
      %v1462 = vpop.f32.mrb[0].mxu0
      %v1463 = vadd.f32 %v1369, %v1462
      %v1464 = vpop.f32.mrb[0].mxu0
      %1465 = vmatprep.mubr.f32.mxu0 0.0
      %1466 = vmatmul.mubr.f32.gmra.mrb[0].mxu0 %v1346
      %v1467 = vpop.f32.mrb[0].mxu0
      %v1468 = vadd.f32 %v1369, %v1467
      %v1469 = vpop.f32.mrb[0].mxu0
      %1470 = vmatprep.mubr.f32.mxu0 0.0
      %1471 = vmatmul.mubr.f32.gmra.mrb[0].mxu0 %v1347
      %v1472 = vpop.f32.mrb[0].mxu0
      %v1473 = vadd.f32 %v1369, %v1472
      %v1474 = vpop.f32.mrb[0].mxu0
      %1475 = vdwg.mxu0
      %v1476 = vxor.u32 %v1438, 2147483648
      %v1477 = vxor.u32 %v1443, 2147483648
      %v1478 = vxor.u32 %v1448, 2147483648
      %v1479 = vxor.u32 %v1453, 2147483648
      %v1480 = vxor.u32 %v1458, 2147483648
      %v1481 = vxor.u32 %v1463, 2147483648
      %v1482 = vxor.u32 %v1468, 2147483648
      %v1483 = vxor.u32 %v1473, 2147483648
      %v1484 = vmul.f32 %v1476, 1.442695
      %v1485 = vpow.pop %v1484
      %v1486 = vmul.f32 %v1477, 1.442695
      %v1487 = vpow.pop %v1486
      %v1488 = vmul.f32 %v1478, 1.442695
      %v1489 = vpow.pop %v1488
      %v1490 = vmul.f32 %v1479, 1.442695
      %v1491 = vpow.pop %v1490
      %v1492 = vmul.f32 %v1480, 1.442695
      %v1493 = vpow.pop %v1492
      %v1494 = vmul.f32 %v1481, 1.442695
      %v1495 = vpow.pop %v1494
      %v1496 = vmul.f32 %v1482, 1.442695
      %v1497 = vpow.pop %v1496
      %v1498 = vmul.f32 %v1483, 1.442695
      %v1499 = vpow.pop %v1498
      %v1500 = vadd.f32 %v1485, 1.0
      %v1501 = vadd.f32 %v1487, 1.0
      %v1502 = vadd.f32 %v1489, 1.0
      %v1503 = vadd.f32 %v1491, 1.0
      %v1504 = vadd.f32 %v1493, 1.0
      %v1505 = vadd.f32 %v1495, 1.0
      %v1506 = vadd.f32 %v1497, 1.0
      %v1507 = vadd.f32 %v1499, 1.0
      %v1508 = vrcp.pop %v1500
      %v1509 = vmul.f32 1.0, %v1508
      %v1510 = vrcp.pop %v1501
      %v1511 = vmul.f32 1.0, %v1510
      %v1512 = vrcp.pop %v1502
      %v1513 = vmul.f32 1.0, %v1512
      %v1514 = vrcp.pop %v1503
      %v1515 = vmul.f32 1.0, %v1514
      %v1516 = vrcp.pop %v1504
      %v1517 = vmul.f32 1.0, %v1516
      %v1518 = vrcp.pop %v1505
      %v1519 = vmul.f32 1.0, %v1518
      %v1520 = vrcp.pop %v1506
      %v1521 = vmul.f32 1.0, %v1520
      %v1522 = vrcp.pop %v1507
      %v1523 = vmul.f32 1.0, %v1522
      %v1524 = vmul.f32 %v1438, %v1509
      %v1525 = vmul.f32 %v1443, %v1511
      %v1526 = vmul.f32 %v1448, %v1513
      %v1527 = vmul.f32 %v1453, %v1515
      %v1528 = vmul.f32 %v1458, %v1517
      %v1529 = vmul.f32 %v1463, %v1519
      %v1530 = vmul.f32 %v1468, %v1521
      %v1531 = vmul.f32 %v1473, %v1523
      %1532 = vst [vmem:[#allocation7] sm:$0xff] %v1524
      %1533 = vst [vmem:[#allocation7 + $0x8] sm:$0xff] %v1525
      %1534 = vst [vmem:[#allocation7 + $0x10] sm:$0xff] %v1526
      %1535 = vst [vmem:[#allocation7 + $0x18] sm:$0xff] %v1527
      %1536 = vst [vmem:[#allocation7 + $0x20] sm:$0xff] %v1528
      %1537 = vst [vmem:[#allocation7 + $0x28] sm:$0xff] %v1529
      %1538 = vst [vmem:[#allocation7 + $0x30] sm:$0xff] %v1530
      %1539 = vst [vmem:[#allocation7 + $0x38] sm:$0xff] %v1531
    $region61: #{_forward_impl.3} parent=1 // pred_fallthru
      _
    // Predicated region
    $region62: #{_forward_impl.3} parent=1 // pred_check
      _
    $region63: #{_forward_impl.3} parent=1 // pred_check_branch
      %1541 = sbr.rel (0) target = $region65
    $region64: #{_forward_impl.3} parent=1 // pred_region
      %s1543 = ssub.s32 1024, 1024
      %1544 = vsyncadd [#allocation8], %s1543
      %s1545 = sshll.u32 [#allocation7], 4
      %s1546 = int_to_ptr.vmem [resolvable:$true] %s1545
      %1551 = dma.vmem_to_hbm [thread:$0]  %s1546, 1024, %s13, [#allocation8], 128, 128, 8
    $region65: #{_forward_impl.3} parent=1 // pred_fallthru
      _
    // Predicated region
    $region66: #{_forward_impl.3} parent=1 // pred_check
      _
    $region67: #{_forward_impl.3} parent=1 // pred_check_branch
      %1553 = sbr.rel (0) target = $region69
    $region68: #{_forward_impl.3} parent=1 // pred_region
      %1554 = dma.done [#allocation8], 1024
    $region69: #{_forward_impl.3} parent=1 // pred_fallthru
      _
    %1555 = vsyncpa [#allocation8], 1

// kernel: _forward_impl.2
$region0: #{_forward_impl.2}
  #allocation0 [shape = 'u32[]', space=smem, size = 0x4, offset = 0x4, fixed_abs, tag = 'smem constant byte address 0x4 - core index']
  #allocation1 [shape = 'u32[144,128]{1,0:T(1,128)}', space=vmem, size = 0x12000, scoped, tag = 'internal scratch']
  %s0 = inlined_call_operand.vmem [shape: s32[64,1], index: 0, kind: input, shape index: {}]
  %s1 = inlined_call_operand.vmem [shape: f32[10,128], index: 1, kind: input, shape index: {}]
  %s2 = inlined_call_operand.vmem [shape: f32[128,384], index: 2, kind: input, shape index: {}]
  %s3 = inlined_call_operand.vmem [shape: f32[1,384], index: 3, kind: input, shape index: {}]
  %s4 = inlined_call_operand.vmem [shape: f32[64,128], index: 4, kind: output, shape index: {0}]
  %s5 = inlined_call_operand.vmem [shape: f32[128,64], index: 5, kind: output, shape index: {1}]
  %s6 = inlined_call_operand.vmem [shape: f32[64,128], index: 6, kind: output, shape index: {2}]
  %7 = xla_tuple %s4, %s5, %s6
  %s8 = sld [smem:[#allocation0]]
  $region42: #{_forward_impl.2} parent=0
    _
  %s10 = ssub.s32 1, %s8
  %s11 = scalar_select 0, %s10, %s8
  // Predicated region
  $region2: #{_forward_impl.2} parent=0 // pred_check
    _
  $region3: #{_forward_impl.2} parent=0 // pred_check_branch
    %13 = sbr.rel (0) target = $region5
  $region4: #{_forward_impl.2} parent=0 // pred_region
    _
  $region5: #{_forward_impl.2} parent=0 // pred_fallthru
    _
  // Predicated region
  $region6: #{_forward_impl.2} parent=0 // pred_check
    _
  $region7: #{_forward_impl.2} parent=0 // pred_check_branch
    %15 = sbr.rel (0) target = $region9
  $region8: #{_forward_impl.2} parent=0 // pred_region
    _
  $region9: #{_forward_impl.2} parent=0 // pred_fallthru
    _
  // Predicated region
  $region10: #{_forward_impl.2} parent=0 // pred_check
    _
  $region11: #{_forward_impl.2} parent=0 // pred_check_branch
    %17 = sbr.rel (0) target = $region13
  $region12: #{_forward_impl.2} parent=0 // pred_region
    _
  $region13: #{_forward_impl.2} parent=0 // pred_fallthru
    _
  // Predicated region
  $region14: #{_forward_impl.2} parent=0 // pred_check
    _
  $region15: #{_forward_impl.2} parent=0 // pred_check_branch
    %19 = sbr.rel (0) target = $region17
  $region16: #{_forward_impl.2} parent=0 // pred_region
    _
  $region17: #{_forward_impl.2} parent=0 // pred_fallthru
    _
  %v20 = vld [vmem:[%s0] sm:$0xff]
  %v21 = vld [vmem:[%s0 + $0x8] sm:$0xff]
  %v22 = vld [vmem:[%s0 + $0x10] sm:$0xff]
  %v23 = vld [vmem:[%s0 + $0x18] sm:$0xff]
  %v24 = vld [vmem:[%s0 + $0x20] sm:$0xff]
  %v25 = vld [vmem:[%s0 + $0x28] sm:$0xff]
  %v26 = vld [vmem:[%s0 + $0x30] sm:$0xff]
  %v27 = vld [vmem:[%s0 + $0x38] sm:$0xff]
  %v28 = vlaneseq
  %v29 = vand.u32 %v28, 127
  %30 = vset.pattern.permute.xlu0 0
  %31 = vperm.xlu0 %30, %v20
  %v32 = vpop.permute.xlu0 %31
  %33 = vset.pattern.permute.xlu0 0
  %34 = vperm.xlu0 %33, %v21
  %v35 = vpop.permute.xlu0 %34
  %36 = vset.pattern.permute.xlu0 0
  %37 = vperm.xlu0 %36, %v22
  %v38 = vpop.permute.xlu0 %37
  %39 = vset.pattern.permute.xlu0 0
  %40 = vperm.xlu0 %39, %v23
  %v41 = vpop.permute.xlu0 %40
  %42 = vset.pattern.permute.xlu0 0
  %43 = vperm.xlu0 %42, %v24
  %v44 = vpop.permute.xlu0 %43
  %45 = vset.pattern.permute.xlu0 0
  %46 = vperm.xlu0 %45, %v25
  %v47 = vpop.permute.xlu0 %46
  %48 = vset.pattern.permute.xlu0 0
  %49 = vperm.xlu0 %48, %v26
  %v50 = vpop.permute.xlu0 %49
  %51 = vset.pattern.permute.xlu0 0
  %52 = vperm.xlu0 %51, %v27
  %v53 = vpop.permute.xlu0 %52
  %vm54 = vcmp.eq.s32.totalorder %v32, %v29
  %vm55 = vcmp.eq.s32.totalorder %v35, %v29
  %vm56 = vcmp.eq.s32.totalorder %v38, %v29
  %vm57 = vcmp.eq.s32.totalorder %v41, %v29
  %vm58 = vcmp.eq.s32.totalorder %v44, %v29
  %vm59 = vcmp.eq.s32.totalorder %v47, %v29
  %vm60 = vcmp.eq.s32.totalorder %v50, %v29
  %vm61 = vcmp.eq.s32.totalorder %v53, %v29
  %v62 = vsel %vm54, 1, 0
  %v63 = vsel %vm55, 1, 0
  %v64 = vsel %vm56, 1, 0
  %v65 = vsel %vm57, 1, 0
  %v66 = vsel %vm58, 1, 0
  %v67 = vsel %vm59, 1, 0
  %v68 = vsel %vm60, 1, 0
  %v69 = vsel %vm61, 1, 0
  %v70 = vcvt.s32.f32 %v62
  %v71 = vcvt.s32.f32 %v63
  %v72 = vcvt.s32.f32 %v64
  %v73 = vcvt.s32.f32 %v65
  %v74 = vcvt.s32.f32 %v66
  %v75 = vcvt.s32.f32 %v67
  %v76 = vcvt.s32.f32 %v68
  %v77 = vcvt.s32.f32 %v69
  %v78 = vld [vmem:[%s1] sm:$0xff]
  %v79 = vld [vmem:[%s1 + $0x8] sm:$0x3]
  %vm80 = vcmask 80896
  %v82 = vsel %vm80, %v70, 0
  %v85 = vsel %vm80, %v71, 0
  %v88 = vsel %vm80, %v72, 0
  %v91 = vsel %vm80, %v73, 0
  %v94 = vsel %vm80, %v74, 0
  %v97 = vsel %vm80, %v75, 0
  %v100 = vsel %vm80, %v76, 0
  %v103 = vsel %vm80, %v77, 0
  %vm105 = vcmask 1041408
  %v107 = vsel %vm105, %v79, 0
  %109 = vmatprep.subr.mxu0 0.0
  %110 = vmatpush1.msra.mxu0 %v78
  %111 = vmatprep.subr.mxu0 0.0
  %112 = vmatpush1.msra.mxu0 %v107
  %113 = vmatprep.subr.mxu0 0.0
  %114 = vmatpush1.msra.mxu0 0.0
  %115 = vmatprep.subr.mxu0 0.0
  %116 = vmatpush1.msra.mxu0 0.0
  %117 = vmatprep.subr.mxu0 0.0
  %118 = vmatpush1.msra.mxu0 0.0
  %119 = vmatprep.subr.mxu0 0.0
  %120 = vmatpush1.msra.mxu0 0.0
  %121 = vmatprep.subr.mxu0 0.0
  %122 = vmatpush1.msra.mxu0 0.0
  %123 = vmatprep.subr.mxu0 0.0
  %124 = vmatpush1.msra.mxu0 0.0
  %125 = vmatprep.subr.mxu0 0.0
  %126 = vmatpush1.msra.mxu0 0.0
  %127 = vmatprep.subr.mxu0 0.0
  %128 = vmatpush1.msra.mxu0 0.0
  %129 = vmatprep.subr.mxu0 0.0
  %130 = vmatpush1.msra.mxu0 0.0
  %131 = vmatprep.subr.mxu0 0.0
  %132 = vmatpush1.msra.mxu0 0.0
  %133 = vmatprep.subr.mxu0 0.0
  %134 = vmatpush1.msra.mxu0 0.0
  %135 = vmatprep.subr.mxu0 0.0
  %136 = vmatpush1.msra.mxu0 0.0
  %137 = vmatprep.subr.mxu0 0.0
  %138 = vmatpush1.msra.mxu0 0.0
  %139 = vmatprep.subr.mxu0 0.0
  %140 = vmatpush1.msra.mxu0 0.0
  %141 = vmatprep.subr.mxu0 0.0
  %142 = vmatpush1.msra.mxu0 0.0
  %143 = vmatprep.subr.mxu0 0.0
  %144 = vmatpush1.msra.mxu0 0.0
  %145 = vmatprep.subr.mxu0 0.0
  %146 = vmatpush1.msra.mxu0 0.0
  %147 = vmatprep.subr.mxu0 0.0
  %148 = vmatpush1.msra.mxu0 0.0
  %149 = vmatprep.subr.mxu0 0.0
  %150 = vmatpush1.msra.mxu0 0.0
  %151 = vmatprep.subr.mxu0 0.0
  %152 = vmatpush1.msra.mxu0 0.0
  %153 = vmatprep.subr.mxu0 0.0
  %154 = vmatpush1.msra.mxu0 0.0
  %155 = vmatprep.subr.mxu0 0.0
  %156 = vmatpush1.msra.mxu0 0.0
  %157 = vmatprep.subr.mxu0 0.0
  %158 = vmatpush1.msra.mxu0 0.0
  %159 = vmatprep.subr.mxu0 0.0
  %160 = vmatpush1.msra.mxu0 0.0
  %161 = vmatprep.subr.mxu0 0.0
  %162 = vmatpush1.msra.mxu0 0.0
  %163 = vmatprep.subr.mxu0 0.0
  %164 = vmatpush1.msra.mxu0 0.0
  %165 = vmatprep.subr.mxu0 0.0
  %166 = vmatpush1.msra.mxu0 0.0
  %167 = vmatprep.subr.mxu0 0.0
  %168 = vmatpush1.msra.mxu0 0.0
  %169 = vmatprep.subr.mxu0 0.0
  %170 = vmatpush1.msra.mxu0 0.0
  %171 = vmatprep.subr.mxu0 0.0
  %172 = vmatpush1.msra.mxu0 0.0
  %173 = vmatprep.mubr.f32.mxu0 0.0
  %174 = vmatmul.mubr.f32.gmra.mrb[0].mxu0 %v82
  %v175 = vpop.f32.mrb[0].mxu0
  %v176 = vadd.f32 0.0, %v175
  %v177 = vpop.f32.mrb[0].mxu0
  %178 = vmatprep.mubr.f32.mxu0 0.0
  %179 = vmatmul.mubr.f32.gmra.mrb[0].mxu0 %v85
  %v180 = vpop.f32.mrb[0].mxu0
  %v181 = vadd.f32 0.0, %v180
  %v182 = vpop.f32.mrb[0].mxu0
  %183 = vmatprep.mubr.f32.mxu0 0.0
  %184 = vmatmul.mubr.f32.gmra.mrb[0].mxu0 %v88
  %v185 = vpop.f32.mrb[0].mxu0
  %v186 = vadd.f32 0.0, %v185
  %v187 = vpop.f32.mrb[0].mxu0
  %188 = vmatprep.mubr.f32.mxu0 0.0
  %189 = vmatmul.mubr.f32.gmra.mrb[0].mxu0 %v91
  %v190 = vpop.f32.mrb[0].mxu0
  %v191 = vadd.f32 0.0, %v190
  %v192 = vpop.f32.mrb[0].mxu0
  %193 = vmatprep.mubr.f32.mxu0 0.0
  %194 = vmatmul.mubr.f32.gmra.mrb[0].mxu0 %v94
  %v195 = vpop.f32.mrb[0].mxu0
  %v196 = vadd.f32 0.0, %v195
  %v197 = vpop.f32.mrb[0].mxu0
  %198 = vmatprep.mubr.f32.mxu0 0.0
  %199 = vmatmul.mubr.f32.gmra.mrb[0].mxu0 %v97
  %v200 = vpop.f32.mrb[0].mxu0
  %v201 = vadd.f32 0.0, %v200
  %v202 = vpop.f32.mrb[0].mxu0
  %203 = vmatprep.mubr.f32.mxu0 0.0
  %204 = vmatmul.mubr.f32.gmra.mrb[0].mxu0 %v100
  %v205 = vpop.f32.mrb[0].mxu0
  %v206 = vadd.f32 0.0, %v205
  %v207 = vpop.f32.mrb[0].mxu0
  %208 = vmatprep.mubr.f32.mxu0 0.0
  %209 = vmatmul.mubr.f32.gmra.mrb[0].mxu0 %v103
  %v210 = vpop.f32.mrb[0].mxu0
  %v211 = vadd.f32 0.0, %v210
  %v212 = vpop.f32.mrb[0].mxu0
  %213 = vdwg.mxu0
  %v214 = vld [vmem:[%s2] sm:$0xff]
  %v215 = vld [vmem:[%s2 + $0x8] sm:$0xff]
  %v216 = vld [vmem:[%s2 + $0x10] sm:$0xff]
  %v217 = vld [vmem:[%s2 + $0x18] sm:$0xff]
  %v218 = vld [vmem:[%s2 + $0x20] sm:$0xff]
  %v219 = vld [vmem:[%s2 + $0x28] sm:$0xff]
  %v220 = vld [vmem:[%s2 + $0x30] sm:$0xff]
  %v221 = vld [vmem:[%s2 + $0x38] sm:$0xff]
  %v222 = vld [vmem:[%s2 + $0x40] sm:$0xff]
  %v223 = vld [vmem:[%s2 + $0x48] sm:$0xff]
  %v224 = vld [vmem:[%s2 + $0x50] sm:$0xff]
  %v225 = vld [vmem:[%s2 + $0x58] sm:$0xff]
  %v226 = vld [vmem:[%s2 + $0x60] sm:$0xff]
  %v227 = vld [vmem:[%s2 + $0x68] sm:$0xff]
  %v228 = vld [vmem:[%s2 + $0x70] sm:$0xff]
  %v229 = vld [vmem:[%s2 + $0x78] sm:$0xff]
  %v230 = vld [vmem:[%s2 + $0x80] sm:$0xff]
  %v231 = vld [vmem:[%s2 + $0x88] sm:$0xff]
  %v232 = vld [vmem:[%s2 + $0x90] sm:$0xff]
  %v233 = vld [vmem:[%s2 + $0x98] sm:$0xff]
  %v234 = vld [vmem:[%s2 + $0xa0] sm:$0xff]
  %v235 = vld [vmem:[%s2 + $0xa8] sm:$0xff]
  %v236 = vld [vmem:[%s2 + $0xb0] sm:$0xff]
  %v237 = vld [vmem:[%s2 + $0xb8] sm:$0xff]
  %v238 = vld [vmem:[%s2 + $0xc0] sm:$0xff]
  %v239 = vld [vmem:[%s2 + $0xc8] sm:$0xff]
  %v240 = vld [vmem:[%s2 + $0xd0] sm:$0xff]
  %v241 = vld [vmem:[%s2 + $0xd8] sm:$0xff]
  %v242 = vld [vmem:[%s2 + $0xe0] sm:$0xff]
  %v243 = vld [vmem:[%s2 + $0xe8] sm:$0xff]
  %v244 = vld [vmem:[%s2 + $0xf0] sm:$0xff]
  %v245 = vld [vmem:[%s2 + $0xf8] sm:$0xff]
  %v246 = vld [vmem:[%s2 + $0x100] sm:$0xff]
  %v247 = vld [vmem:[%s2 + $0x108] sm:$0xff]
  %v248 = vld [vmem:[%s2 + $0x110] sm:$0xff]
  %v249 = vld [vmem:[%s2 + $0x118] sm:$0xff]
  %v250 = vld [vmem:[%s2 + $0x120] sm:$0xff]
  %v251 = vld [vmem:[%s2 + $0x128] sm:$0xff]
  %v252 = vld [vmem:[%s2 + $0x130] sm:$0xff]
  %v253 = vld [vmem:[%s2 + $0x138] sm:$0xff]
  %v254 = vld [vmem:[%s2 + $0x140] sm:$0xff]
  %v255 = vld [vmem:[%s2 + $0x148] sm:$0xff]
  %v256 = vld [vmem:[%s2 + $0x150] sm:$0xff]
  %v257 = vld [vmem:[%s2 + $0x158] sm:$0xff]
  %v258 = vld [vmem:[%s2 + $0x160] sm:$0xff]
  %v259 = vld [vmem:[%s2 + $0x168] sm:$0xff]
  %v260 = vld [vmem:[%s2 + $0x170] sm:$0xff]
  %v261 = vld [vmem:[%s2 + $0x178] sm:$0xff]
  %v262 = vld [vmem:[%s3] sm:$0x7]
  %v264 = vlaneseq
  %v265 = vshrl.u32 %v264, 7
  %v266 = vsub.s32 0, %v265
  %v267 = vrot.slane %v262, %v266
  %v268 = vlaneseq
  %v269 = vshrl.u32 %v268, 7
  %v270 = vsub.s32 1, %v269
  %v271 = vrot.slane %v262, %v270
  %v272 = vlaneseq
  %v273 = vshrl.u32 %v272, 7
  %v274 = vsub.s32 2, %v273
  %v275 = vrot.slane %v262, %v274
  %279 = vmatprep.subr.mxu0 %v215
  %280 = vmatpush1.msra.mxu0 %v214
  %281 = vmatprep.subr.mxu0 %v218
  %282 = vmatpush1.msra.mxu0 %v217
  %283 = vmatprep.subr.mxu0 %v221
  %284 = vmatpush1.msra.mxu0 %v220
  %285 = vmatprep.subr.mxu0 %v224
  %286 = vmatpush1.msra.mxu0 %v223
  %287 = vmatprep.subr.mxu0 %v227
  %288 = vmatpush1.msra.mxu0 %v226
  %289 = vmatprep.subr.mxu0 %v230
  %290 = vmatpush1.msra.mxu0 %v229
  %291 = vmatprep.subr.mxu0 %v233
  %292 = vmatpush1.msra.mxu0 %v232
  %293 = vmatprep.subr.mxu0 %v236
  %294 = vmatpush1.msra.mxu0 %v235
  %295 = vmatprep.subr.mxu0 %v239
  %296 = vmatpush1.msra.mxu0 %v238
  %297 = vmatprep.subr.mxu0 %v242
  %298 = vmatpush1.msra.mxu0 %v241
  %299 = vmatprep.subr.mxu0 %v245
  %300 = vmatpush1.msra.mxu0 %v244
  %301 = vmatprep.subr.mxu0 %v248
  %302 = vmatpush1.msra.mxu0 %v247
  %303 = vmatprep.subr.mxu0 %v251
  %304 = vmatpush1.msra.mxu0 %v250
  %305 = vmatprep.subr.mxu0 %v254
  %306 = vmatpush1.msra.mxu0 %v253
  %307 = vmatprep.subr.mxu0 %v257
  %308 = vmatpush1.msra.mxu0 %v256
  %309 = vmatprep.subr.mxu0 %v260
  %310 = vmatpush1.msra.mxu0 %v259
  %311 = vmatprep.subr.mxu0 0.0
  %312 = vmatpush1.msra.mxu0 0.0
  %313 = vmatprep.subr.mxu0 0.0
  %314 = vmatpush1.msra.mxu0 0.0
  %315 = vmatprep.subr.mxu0 0.0
  %316 = vmatpush1.msra.mxu0 0.0
  %317 = vmatprep.subr.mxu0 0.0
  %318 = vmatpush1.msra.mxu0 0.0
  %319 = vmatprep.subr.mxu0 0.0
  %320 = vmatpush1.msra.mxu0 0.0
  %321 = vmatprep.subr.mxu0 0.0
  %322 = vmatpush1.msra.mxu0 0.0
  %323 = vmatprep.subr.mxu0 0.0
  %324 = vmatpush1.msra.mxu0 0.0
  %325 = vmatprep.subr.mxu0 0.0
  %326 = vmatpush1.msra.mxu0 0.0
  %327 = vmatprep.subr.mxu0 0.0
  %328 = vmatpush1.msra.mxu0 0.0
  %329 = vmatprep.subr.mxu0 0.0
  %330 = vmatpush1.msra.mxu0 0.0
  %331 = vmatprep.subr.mxu0 0.0
  %332 = vmatpush1.msra.mxu0 0.0
  %333 = vmatprep.subr.mxu0 0.0
  %334 = vmatpush1.msra.mxu0 0.0
  %335 = vmatprep.subr.mxu0 0.0
  %336 = vmatpush1.msra.mxu0 0.0
  %337 = vmatprep.subr.mxu0 0.0
  %338 = vmatpush1.msra.mxu0 0.0
  %339 = vmatprep.subr.mxu0 0.0
  %340 = vmatpush1.msra.mxu0 0.0
  %341 = vmatprep.subr.mxu0 0.0
  %342 = vmatpush1.msra.mxu0 0.0
  %343 = vmatprep.mubr.f32.mxu0 0.0
  %344 = vmatmul.mubr.f32.gmra.mrb[0].mxu0 %v176
  %v345 = vpop.f32.mrb[0].mxu0
  %v346 = vadd.f32 %v267, %v345
  %v347 = vpop.f32.mrb[0].mxu0
  %v348 = vadd.f32 %v271, %v347
  %349 = vmatprep.mubr.f32.mxu0 0.0
  %350 = vmatmul.mubr.f32.gmra.mrb[0].mxu0 %v181
  %v351 = vpop.f32.mrb[0].mxu0
  %v352 = vadd.f32 %v267, %v351
  %v353 = vpop.f32.mrb[0].mxu0
  %v354 = vadd.f32 %v271, %v353
  %355 = vmatprep.mubr.f32.mxu0 0.0
  %356 = vmatmul.mubr.f32.gmra.mrb[0].mxu0 %v186
  %v357 = vpop.f32.mrb[0].mxu0
  %v358 = vadd.f32 %v267, %v357
  %v359 = vpop.f32.mrb[0].mxu0
  %v360 = vadd.f32 %v271, %v359
  %361 = vmatprep.mubr.f32.mxu0 0.0
  %362 = vmatmul.mubr.f32.gmra.mrb[0].mxu0 %v191
  %v363 = vpop.f32.mrb[0].mxu0
  %v364 = vadd.f32 %v267, %v363
  %v365 = vpop.f32.mrb[0].mxu0
  %v366 = vadd.f32 %v271, %v365
  %367 = vmatprep.mubr.f32.mxu0 0.0
  %368 = vmatmul.mubr.f32.gmra.mrb[0].mxu0 %v196
  %v369 = vpop.f32.mrb[0].mxu0
  %v370 = vadd.f32 %v267, %v369
  %v371 = vpop.f32.mrb[0].mxu0
  %v372 = vadd.f32 %v271, %v371
  %373 = vmatprep.mubr.f32.mxu0 0.0
  %374 = vmatmul.mubr.f32.gmra.mrb[0].mxu0 %v201
  %v375 = vpop.f32.mrb[0].mxu0
  %v376 = vadd.f32 %v267, %v375
  %v377 = vpop.f32.mrb[0].mxu0
  %v378 = vadd.f32 %v271, %v377
  %379 = vmatprep.mubr.f32.mxu0 0.0
  %380 = vmatmul.mubr.f32.gmra.mrb[0].mxu0 %v206
  %v381 = vpop.f32.mrb[0].mxu0
  %v382 = vadd.f32 %v267, %v381
  %v383 = vpop.f32.mrb[0].mxu0
  %v384 = vadd.f32 %v271, %v383
  %385 = vmatprep.mubr.f32.mxu0 0.0
  %386 = vmatmul.mubr.f32.gmra.mrb[0].mxu0 %v211
  %v387 = vpop.f32.mrb[0].mxu0
  %v388 = vadd.f32 %v267, %v387
  %v389 = vpop.f32.mrb[0].mxu0
  %v390 = vadd.f32 %v271, %v389
  %391 = vdwg.mxu0
  %392 = vmatprep.subr.mxu0 0.0
  %393 = vmatpush1.msra.mxu0 %v216
  %394 = vmatprep.subr.mxu0 0.0
  %395 = vmatpush1.msra.mxu0 %v219
  %396 = vmatprep.subr.mxu0 0.0
  %397 = vmatpush1.msra.mxu0 %v222
  %398 = vmatprep.subr.mxu0 0.0
  %399 = vmatpush1.msra.mxu0 %v225
  %400 = vmatprep.subr.mxu0 0.0
  %401 = vmatpush1.msra.mxu0 %v228
  %402 = vmatprep.subr.mxu0 0.0
  %403 = vmatpush1.msra.mxu0 %v231
  %404 = vmatprep.subr.mxu0 0.0
  %405 = vmatpush1.msra.mxu0 %v234
  %406 = vmatprep.subr.mxu0 0.0
  %407 = vmatpush1.msra.mxu0 %v237
  %408 = vmatprep.subr.mxu0 0.0
  %409 = vmatpush1.msra.mxu0 %v240
  %410 = vmatprep.subr.mxu0 0.0
  %411 = vmatpush1.msra.mxu0 %v243
  %412 = vmatprep.subr.mxu0 0.0
  %413 = vmatpush1.msra.mxu0 %v246
  %414 = vmatprep.subr.mxu0 0.0
  %415 = vmatpush1.msra.mxu0 %v249
  %416 = vmatprep.subr.mxu0 0.0
  %417 = vmatpush1.msra.mxu0 %v252
  %418 = vmatprep.subr.mxu0 0.0
  %419 = vmatpush1.msra.mxu0 %v255
  %420 = vmatprep.subr.mxu0 0.0
  %421 = vmatpush1.msra.mxu0 %v258
  %422 = vmatprep.subr.mxu0 0.0
  %423 = vmatpush1.msra.mxu0 %v261
  %424 = vmatprep.subr.mxu0 0.0
  %425 = vmatpush1.msra.mxu0 0.0
  %426 = vmatprep.subr.mxu0 0.0
  %427 = vmatpush1.msra.mxu0 0.0
  %428 = vmatprep.subr.mxu0 0.0
  %429 = vmatpush1.msra.mxu0 0.0
  %430 = vmatprep.subr.mxu0 0.0
  %431 = vmatpush1.msra.mxu0 0.0
  %432 = vmatprep.subr.mxu0 0.0
  %433 = vmatpush1.msra.mxu0 0.0
  %434 = vmatprep.subr.mxu0 0.0
  %435 = vmatpush1.msra.mxu0 0.0
  %436 = vmatprep.subr.mxu0 0.0
  %437 = vmatpush1.msra.mxu0 0.0
  %438 = vmatprep.subr.mxu0 0.0
  %439 = vmatpush1.msra.mxu0 0.0
  %440 = vmatprep.subr.mxu0 0.0
  %441 = vmatpush1.msra.mxu0 0.0
  %442 = vmatprep.subr.mxu0 0.0
  %443 = vmatpush1.msra.mxu0 0.0
  %444 = vmatprep.subr.mxu0 0.0
  %445 = vmatpush1.msra.mxu0 0.0
  %446 = vmatprep.subr.mxu0 0.0
  %447 = vmatpush1.msra.mxu0 0.0
  %448 = vmatprep.subr.mxu0 0.0
  %449 = vmatpush1.msra.mxu0 0.0
  %450 = vmatprep.subr.mxu0 0.0
  %451 = vmatpush1.msra.mxu0 0.0
  %452 = vmatprep.subr.mxu0 0.0
  %453 = vmatpush1.msra.mxu0 0.0
  %454 = vmatprep.subr.mxu0 0.0
  %455 = vmatpush1.msra.mxu0 0.0
  %456 = vmatprep.mubr.f32.mxu0 0.0
  %457 = vmatmul.mubr.f32.gmra.mrb[0].mxu0 %v176
  %v458 = vpop.f32.mrb[0].mxu0
  %v459 = vadd.f32 %v275, %v458
  %v460 = vpop.f32.mrb[0].mxu0
  %461 = vmatprep.mubr.f32.mxu0 0.0
  %462 = vmatmul.mubr.f32.gmra.mrb[0].mxu0 %v181
  %v463 = vpop.f32.mrb[0].mxu0
  %v464 = vadd.f32 %v275, %v463
  %v465 = vpop.f32.mrb[0].mxu0
  %466 = vmatprep.mubr.f32.mxu0 0.0
  %467 = vmatmul.mubr.f32.gmra.mrb[0].mxu0 %v186
  %v468 = vpop.f32.mrb[0].mxu0
  %v469 = vadd.f32 %v275, %v468
  %v470 = vpop.f32.mrb[0].mxu0
  %471 = vmatprep.mubr.f32.mxu0 0.0
  %472 = vmatmul.mubr.f32.gmra.mrb[0].mxu0 %v191
  %v473 = vpop.f32.mrb[0].mxu0
  %v474 = vadd.f32 %v275, %v473
  %v475 = vpop.f32.mrb[0].mxu0
  %476 = vmatprep.mubr.f32.mxu0 0.0
  %477 = vmatmul.mubr.f32.gmra.mrb[0].mxu0 %v196
  %v478 = vpop.f32.mrb[0].mxu0
  %v479 = vadd.f32 %v275, %v478
  %v480 = vpop.f32.mrb[0].mxu0
  %481 = vmatprep.mubr.f32.mxu0 0.0
  %482 = vmatmul.mubr.f32.gmra.mrb[0].mxu0 %v201
  %v483 = vpop.f32.mrb[0].mxu0
  %v484 = vadd.f32 %v275, %v483
  %v485 = vpop.f32.mrb[0].mxu0
  %486 = vmatprep.mubr.f32.mxu0 0.0
  %487 = vmatmul.mubr.f32.gmra.mrb[0].mxu0 %v206
  %v488 = vpop.f32.mrb[0].mxu0
  %v489 = vadd.f32 %v275, %v488
  %v490 = vpop.f32.mrb[0].mxu0
  %491 = vmatprep.mubr.f32.mxu0 0.0
  %492 = vmatmul.mubr.f32.gmra.mrb[0].mxu0 %v211
  %v493 = vpop.f32.mrb[0].mxu0
  %v494 = vadd.f32 %v275, %v493
  %v495 = vpop.f32.mrb[0].mxu0
  %496 = vdwg.mxu0
  %497 = vst [vmem:[%s4] sm:$0xff] %v346
  %498 = vst [vmem:[%s4 + $0x8] sm:$0xff] %v352
  %499 = vst [vmem:[%s4 + $0x10] sm:$0xff] %v358
  %500 = vst [vmem:[%s4 + $0x18] sm:$0xff] %v364
  %501 = vst [vmem:[%s4 + $0x20] sm:$0xff] %v370
  %502 = vst [vmem:[%s4 + $0x28] sm:$0xff] %v376
  %503 = vst [vmem:[%s4 + $0x30] sm:$0xff] %v382
  %504 = vst [vmem:[%s4 + $0x38] sm:$0xff] %v388
  %505 = vxpose.xlu0.b32.start [1/16] %v348, 128
  %506 = vxpose.xlu0.b32.cont [2/16] %v354, 128
  %507 = vxpose.xlu0.b32.cont [3/16] %v360, 128
  %508 = vxpose.xlu0.b32.cont [4/16] %v366, 128
  %509 = vxpose.xlu0.b32.cont [5/16] %v372, 128
  %510 = vxpose.xlu0.b32.cont [6/16] %v378, 128
  %511 = vxpose.xlu0.b32.cont [7/16] %v384, 128
  %512 = vxpose.xlu0.b32.cont [8/16] %v390, 128
  %513 = vxpose.xlu0.b32.cont [9/16] 0.0, 128
  %514 = vxpose.xlu0.b32.cont [10/16] 0.0, 128
  %515 = vxpose.xlu0.b32.cont [11/16] 0.0, 128
  %516 = vxpose.xlu0.b32.cont [12/16] 0.0, 128
  %517 = vxpose.xlu0.b32.cont [13/16] 0.0, 128
  %518 = vxpose.xlu0.b32.cont [14/16] 0.0, 128
  %519 = vxpose.xlu0.b32.cont [15/16] 0.0, 128
  %520 = vxpose.xlu0.b32.end [16/16] 0.0, 128
  %v521 = vpop.trf.xlu0
  %v522 = vpop.trf.xlu0
  %v523 = vpop.trf.xlu0
  %v524 = vpop.trf.xlu0
  %v525 = vpop.trf.xlu0
  %v526 = vpop.trf.xlu0
  %v527 = vpop.trf.xlu0
  %v528 = vpop.trf.xlu0
  %v529 = vpop.trf.xlu0
  %v530 = vpop.trf.xlu0
  %v531 = vpop.trf.xlu0
  %v532 = vpop.trf.xlu0
  %v533 = vpop.trf.xlu0
  %v534 = vpop.trf.xlu0
  %v535 = vpop.trf.xlu0
  %v536 = vpop.trf.xlu0
  %vm537 = vcmask 523264
  %538 = vst.msk [vmem:[%s5] sm:$0xff] %vm537, %v521
  %539 = vst.msk [vmem:[%s5 + $0x8] sm:$0xff] %vm537, %v522
  %540 = vst.msk [vmem:[%s5 + $0x10] sm:$0xff] %vm537, %v523
  %541 = vst.msk [vmem:[%s5 + $0x18] sm:$0xff] %vm537, %v524
  %542 = vst.msk [vmem:[%s5 + $0x20] sm:$0xff] %vm537, %v525
  %543 = vst.msk [vmem:[%s5 + $0x28] sm:$0xff] %vm537, %v526
  %544 = vst.msk [vmem:[%s5 + $0x30] sm:$0xff] %vm537, %v527
  %545 = vst.msk [vmem:[%s5 + $0x38] sm:$0xff] %vm537, %v528
  %546 = vst.msk [vmem:[%s5 + $0x40] sm:$0xff] %vm537, %v529
  %547 = vst.msk [vmem:[%s5 + $0x48] sm:$0xff] %vm537, %v530
  %548 = vst.msk [vmem:[%s5 + $0x50] sm:$0xff] %vm537, %v531
  %549 = vst.msk [vmem:[%s5 + $0x58] sm:$0xff] %vm537, %v532
  %550 = vst.msk [vmem:[%s5 + $0x60] sm:$0xff] %vm537, %v533
  %551 = vst.msk [vmem:[%s5 + $0x68] sm:$0xff] %vm537, %v534
  %552 = vst.msk [vmem:[%s5 + $0x70] sm:$0xff] %vm537, %v535
  %553 = vst.msk [vmem:[%s5 + $0x78] sm:$0xff] %vm537, %v536
  %554 = vst [vmem:[%s6] sm:$0xff] %v459
  %555 = vst [vmem:[%s6 + $0x8] sm:$0xff] %v464
  %556 = vst [vmem:[%s6 + $0x10] sm:$0xff] %v469
  %557 = vst [vmem:[%s6 + $0x18] sm:$0xff] %v474
  %558 = vst [vmem:[%s6 + $0x20] sm:$0xff] %v479
  %559 = vst [vmem:[%s6 + $0x28] sm:$0xff] %v484
  %560 = vst [vmem:[%s6 + $0x30] sm:$0xff] %v489
  %561 = vst [vmem:[%s6 + $0x38] sm:$0xff] %v494
  // Predicated region
  $region18: #{_forward_impl.2} parent=0 // pred_check
    _
  $region19: #{_forward_impl.2} parent=0 // pred_check_branch
    %563 = sbr.rel (0) target = $region21
  $region20: #{_forward_impl.2} parent=0 // pred_region
    _
  $region21: #{_forward_impl.2} parent=0 // pred_fallthru
    _
  // Predicated region
  $region22: #{_forward_impl.2} parent=0 // pred_check
    _
  $region23: #{_forward_impl.2} parent=0 // pred_check_branch
    %565 = sbr.rel (0) target = $region25
  $region24: #{_forward_impl.2} parent=0 // pred_region
    _
  $region25: #{_forward_impl.2} parent=0 // pred_fallthru
    _
  // Predicated region
  $region26: #{_forward_impl.2} parent=0 // pred_check
    _
  $region27: #{_forward_impl.2} parent=0 // pred_check_branch
    %567 = sbr.rel (0) target = $region29
  $region28: #{_forward_impl.2} parent=0 // pred_region
    _
  $region29: #{_forward_impl.2} parent=0 // pred_fallthru
    _
  // Predicated region
  $region30: #{_forward_impl.2} parent=0 // pred_check
    _
  $region31: #{_forward_impl.2} parent=0 // pred_check_branch
    %569 = sbr.rel (0) target = $region33
  $region32: #{_forward_impl.2} parent=0 // pred_region
    _
  $region33: #{_forward_impl.2} parent=0 // pred_fallthru
    _
  // Predicated region
  $region34: #{_forward_impl.2} parent=0 // pred_check
    _
  $region35: #{_forward_impl.2} parent=0 // pred_check_branch
    %571 = sbr.rel (0) target = $region37
  $region36: #{_forward_impl.2} parent=0 // pred_region
    _
  $region37: #{_forward_impl.2} parent=0 // pred_fallthru
    _
  // Predicated region
  $region38: #{_forward_impl.2} parent=0 // pred_check
    _
  $region39: #{_forward_impl.2} parent=0 // pred_check_branch
    %573 = sbr.rel (0) target = $region41
  $region40: #{_forward_impl.2} parent=0 // pred_region
    _
  $region41: #{_forward_impl.2} parent=0 // pred_fallthru
    _

// kernel: _forward_impl.3
$region0: #{_forward_impl.3}
  #allocation0 [shape = 'u32[]', space=smem, size = 0x4, offset = 0x4, fixed_abs, tag = 'smem constant byte address 0x4 - core index']
  #allocation1 [shape = 'u32[144,128]{1,0:T(1,128)}', space=vmem, size = 0x12000, scoped, tag = 'internal scratch']
  #allocation2 [shape = 'f32[64,1]{1,0:T(8,128)}', space=vmem, size = 0x8000, scoped, tag = 'scratch operand']
  #allocation3 [shape = 'f32[64,1]{1,0:T(8,128)}', space=vmem, size = 0x8000, scoped, tag = 'scratch operand']
  #allocation4 [shape = 'f32[64,128]{1,0:T(8,128)}', space=vmem, size = 0x8000, scoped, tag = 'scratch operand']
  #allocation5 [shape = 's32[1]{0}', space=sflag, size = 0x4, scoped, tag = 'scoped memory for _forward_impl.3']
  #allocation6 [shape = 's32[1]{0:T(128)S(6)}', space=smem, size = 0x200, scoped, tag = 'prefetched SMEM operand 0']
  %s0 = inlined_call_operand.<no memory space> [shape: s32[1], index: 0, kind: input, shape index: {}]
  %s1 = inlined_call_operand.vmem [shape: s32[64,1], index: 1, kind: input, shape index: {}]
  %s2 = inlined_call_operand.vmem [shape: f32[10,128], index: 2, kind: input, shape index: {}]
  %s3 = inlined_call_operand.vmem [shape: f32[64,128], index: 3, kind: input, shape index: {}]
  %s4 = inlined_call_operand.vmem [shape: f32[128,64], index: 4, kind: input, shape index: {}]
  %s5 = inlined_call_operand.vmem [shape: f32[64,128], index: 5, kind: input, shape index: {}]
  %s6 = inlined_call_operand.vmem [shape: s8[64,64], index: 6, kind: input, shape index: {}]
  %s7 = inlined_call_operand.vmem [shape: f32[1,128], index: 7, kind: input, shape index: {}]
  %s8 = inlined_call_operand.vmem [shape: f32[1,128], index: 8, kind: input, shape index: {}]
  %s9 = inlined_call_operand.vmem [shape: f32[128,128], index: 9, kind: input, shape index: {}]
  %s10 = inlined_call_operand.vmem [shape: f32[1,128], index: 10, kind: input, shape index: {}]
  %s11 = inlined_call_operand.vmem [shape: f32[128,128], index: 11, kind: input, shape index: {}]
  %s12 = inlined_call_operand.vmem [shape: f32[1,128], index: 12, kind: input, shape index: {}]
  %s13 = inlined_call_operand.hbm [shape: f32[64,128], index: 13, kind: output, shape index: {}]
  %s14 = sld [smem:[#allocation0]]
  $region70: #{_forward_impl.3} parent=0
    _
  %s16 = ssub.s32 1, %s14
  %s17 = scalar_select 0, %s16, %s14
  %18 = sst [smem:[#allocation6]] %s0
  $region1: #{_forward_impl.3} parent=0
    #allocation7 [shape = 'u8[32768]{0}', space=vmem, size = 0x8000, scoped, tag = 'output window, operand 0, single buffered']
    #allocation8 [shape = 's32[1]{0}', space=sflag, size = 0x4, scoped, tag = 'scoped memory for _forward_impl.3']
    %19 = vsyncpa [#allocation8], 0
    // Predicated region
    $region2: #{_forward_impl.3} parent=1 // pred_check
      _
    $region3: #{_forward_impl.3} parent=1 // pred_check_branch
      %21 = sbr.rel (0) target = $region5
    $region4: #{_forward_impl.3} parent=1 // pred_region
      _
    $region5: #{_forward_impl.3} parent=1 // pred_fallthru
      _
    // Predicated region
    $region6: #{_forward_impl.3} parent=1 // pred_check
      _
    $region7: #{_forward_impl.3} parent=1 // pred_check_branch
      %23 = sbr.rel (0) target = $region9
    $region8: #{_forward_impl.3} parent=1 // pred_region
      _
    $region9: #{_forward_impl.3} parent=1 // pred_fallthru
      _
    // Predicated region
    $region10: #{_forward_impl.3} parent=1 // pred_check
      _
    $region11: #{_forward_impl.3} parent=1 // pred_check_branch
      %25 = sbr.rel (0) target = $region13
    $region12: #{_forward_impl.3} parent=1 // pred_region
      _
    $region13: #{_forward_impl.3} parent=1 // pred_fallthru
      _
    // Predicated region
    $region14: #{_forward_impl.3} parent=1 // pred_check
      _
    $region15: #{_forward_impl.3} parent=1 // pred_check_branch
      %27 = sbr.rel (0) target = $region17
    $region16: #{_forward_impl.3} parent=1 // pred_region
      %s28 = sadd.s32 0, 0
      %s29 = sld [smem:[#allocation6 + %s28]]
      %p30 = scmp.ne.s32.totalorder %s29, 0
      %s31 = scalar_select %p30, 0, 0
      %p32 = scmp.lt.s32.totalorder %s31, 0
      %s33 = scalar_select %p32, %s31, 0
      %s34 = smul.addr %s33, 8
      %s35 = scalar_lea.vmem %s4, %s34
      %s36 = sadd.s32 0, 0
      %s37 = sld [smem:[#allocation6 + %s36]]
      %p38 = scmp.ne.s32.totalorder %s37, 0
      %s39 = scalar_select %p38, 0, 0
    $region17: #{_forward_impl.3} parent=1 // pred_fallthru
      _
    // Predicated region
    $region18: #{_forward_impl.3} parent=1 // pred_check
      _
    $region19: #{_forward_impl.3} parent=1 // pred_check_branch
      %41 = sbr.rel (0) target = $region21
    $region20: #{_forward_impl.3} parent=1 // pred_region
      %s42 = sadd.s32 0, 0
      %s43 = sld [smem:[#allocation6 + %s42]]
      %p44 = scmp.ne.s32.totalorder %s43, 0
      %s45 = scalar_select %p44, 0, 0
      %s46 = smul.u32 8, %s45
      %p47 = scmp.lt.s32.totalorder %s46, 7
      %s48 = scalar_select %p47, %s46, 7
      %s49 = smul.addr %s48, 8
      %s50 = scalar_lea.vmem %s5, %s49
      %s51 = sadd.s32 0, 0
      %s52 = sld [smem:[#allocation6 + %s51]]
      %p53 = scmp.ne.s32.totalorder %s52, 0
      %s54 = scalar_select %p53, 0, 0
      %s55 = smul.u32 8, %s54
    $region21: #{_forward_impl.3} parent=1 // pred_fallthru
      _
    // Predicated region
    $region22: #{_forward_impl.3} parent=1 // pred_check
      _
    $region23: #{_forward_impl.3} parent=1 // pred_check_branch
      %57 = sbr.rel (0) target = $region25
    $region24: #{_forward_impl.3} parent=1 // pred_region
      %s58 = sadd.s32 0, 0
      %s59 = sld [smem:[#allocation6 + %s58]]
      %p60 = scmp.ne.s32.totalorder %s59, 0
      %s61 = scalar_select %p60, 0, 0
      %p62 = scmp.lt.s32.totalorder %s61, 0
      %s63 = scalar_select %p62, %s61, 0
      %s64 = smul.addr %s63, 2
      %s65 = scalar_lea.vmem %s6, %s64
      %s66 = sadd.s32 0, 0
      %s67 = sld [smem:[#allocation6 + %s66]]
      %p68 = scmp.ne.s32.totalorder %s67, 0
      %s69 = scalar_select %p68, 0, 0
    $region25: #{_forward_impl.3} parent=1 // pred_fallthru
      _
    // Predicated region
    $region26: #{_forward_impl.3} parent=1 // pred_check
      _
    $region27: #{_forward_impl.3} parent=1 // pred_check_branch
      %71 = sbr.rel (0) target = $region29
    $region28: #{_forward_impl.3} parent=1 // pred_region
      _
    $region29: #{_forward_impl.3} parent=1 // pred_fallthru
      _
    // Predicated region
    $region30: #{_forward_impl.3} parent=1 // pred_check
      _
    $region31: #{_forward_impl.3} parent=1 // pred_check_branch
      %73 = sbr.rel (0) target = $region33
    $region32: #{_forward_impl.3} parent=1 // pred_region
      _
    $region33: #{_forward_impl.3} parent=1 // pred_fallthru
      _
    // Predicated region
    $region34: #{_forward_impl.3} parent=1 // pred_check
      _
    $region35: #{_forward_impl.3} parent=1 // pred_check_branch
      %75 = sbr.rel (0) target = $region37
    $region36: #{_forward_impl.3} parent=1 // pred_region
      _
    $region37: #{_forward_impl.3} parent=1 // pred_fallthru
      _
    // Predicated region
    $region38: #{_forward_impl.3} parent=1 // pred_check
      _
    $region39: #{_forward_impl.3} parent=1 // pred_check_branch
      %77 = sbr.rel (0) target = $region41
    $region40: #{_forward_impl.3} parent=1 // pred_region
      _
    $region41: #{_forward_impl.3} parent=1 // pred_fallthru
      _
    // Predicated region
    $region42: #{_forward_impl.3} parent=1 // pred_check
      _
    $region43: #{_forward_impl.3} parent=1 // pred_check_branch
      %79 = sbr.rel (0) target = $region45
    $region44: #{_forward_impl.3} parent=1 // pred_region
      _
    $region45: #{_forward_impl.3} parent=1 // pred_fallthru
      _
    // Predicated region
    $region46: #{_forward_impl.3} parent=1 // pred_check
      _
    $region47: #{_forward_impl.3} parent=1 // pred_check_branch
      %81 = sbr.rel (0) target = $region49
    $region48: #{_forward_impl.3} parent=1 // pred_region
      _
    $region49: #{_forward_impl.3} parent=1 // pred_fallthru
      _
    %s82 = sadd.s32 0, 0
    %s83 = sld [smem:[#allocation6 + %s82]]
    %p84 = scmp.ne.s32.totalorder %s83, 0
    %s85 = scalar_select %p84, 0, 0
    %p86 = scmp.lt.s32.totalorder %s85, 0
    %s87 = scalar_select %p86, %s85, 0
    %s88 = smul.addr %s87, 8
    %s89 = scalar_lea.vmem %s4, %s88
    %s90 = sadd.s32 0, 0
    %s91 = sld [smem:[#allocation6 + %s90]]
    %p92 = scmp.ne.s32.totalorder %s91, 0
    %s93 = scalar_select %p92, 0, 0
    %s94 = smul.u32 8, %s93
    %p95 = scmp.lt.s32.totalorder %s94, 7
    %s96 = scalar_select %p95, %s94, 7
    %s97 = smul.addr %s96, 8
    %s98 = scalar_lea.vmem %s5, %s97
    %s99 = sadd.s32 0, 0
    %s100 = sld [smem:[#allocation6 + %s99]]
    %p101 = scmp.ne.s32.totalorder %s100, 0
    %s102 = scalar_select %p101, 0, 0
    %p103 = scmp.lt.s32.totalorder %s102, 0
    %s104 = scalar_select %p103, %s102, 0
    %s105 = smul.addr %s104, 2
    %s106 = scalar_lea.vmem %s6, %s105
    %s107 = sadd.s32 0, 0
    %s108 = sld [smem:[#allocation6 + %s107]]
    %p109 = scmp.ne.s32.totalorder %s108, 0
    %s110 = scalar_select %p109, 0, 0
    %p111 = scmp.lt.s32.totalorder %s110, 0
    %s112 = scalar_select %p111, %s110, 0
    %s113 = smul.addr %s112, 8
    %s114 = scalar_lea.vmem %s4, %s113
    %s115 = sadd.s32 0, 0
    %s116 = sld [smem:[#allocation6 + %s115]]
    %p117 = scmp.ne.s32.totalorder %s116, 0
    %s118 = scalar_select %p117, 0, 0
    %s119 = sadd.s32 0, 0
    %s120 = sld [smem:[#allocation6 + %s119]]
    %p121 = scmp.ne.s32.totalorder %s120, 0
    %s122 = scalar_select %p121, 0, 0
    %s123 = smul.u32 8, %s122
    %p124 = scmp.lt.s32.totalorder %s123, 7
    %s125 = scalar_select %p124, %s123, 7
    %s126 = smul.addr %s125, 8
    %s127 = scalar_lea.vmem %s5, %s126
    %s128 = sadd.s32 0, 0
    %s129 = sld [smem:[#allocation6 + %s128]]
    %p130 = scmp.ne.s32.totalorder %s129, 0
    %s131 = scalar_select %p130, 0, 0
    %s132 = smul.u32 8, %s131
    %s133 = sadd.s32 0, 0
    %s134 = sld [smem:[#allocation6 + %s133]]
    %p135 = scmp.ne.s32.totalorder %s134, 0
    %s136 = scalar_select %p135, 0, 0
    %p137 = scmp.lt.s32.totalorder %s136, 0
    %s138 = scalar_select %p137, %s136, 0
    %s139 = smul.addr %s138, 2
    %s140 = scalar_lea.vmem %s6, %s139
    %s141 = sadd.s32 0, 0
    %s142 = sld [smem:[#allocation6 + %s141]]
    %p143 = scmp.ne.s32.totalorder %s142, 0
    %s144 = scalar_select %p143, 0, 0
    %p145 = scmp.eq.s32.totalorder 0, 0
    // Predicated region
    $region50: #{_forward_impl.3} parent=1 // pred_check
      %p146 = pneg %p145
    $region51: #{_forward_impl.3} parent=1 // pred_check_branch
      %148 = sbr.rel (%p146) target = $region53
    $region52: #{_forward_impl.3} parent=1 // pred_region
      %vm149 = vcmask 7168
      %150 = vst.msk [vmem:[#allocation2] sm:$0xff] %vm149, -1e+30
      %151 = vst.msk [vmem:[#allocation2 + $0x8] sm:$0xff] %vm149, -1e+30
      %152 = vst.msk [vmem:[#allocation2 + $0x10] sm:$0xff] %vm149, -1e+30
      %153 = vst.msk [vmem:[#allocation2 + $0x18] sm:$0xff] %vm149, -1e+30
      %154 = vst.msk [vmem:[#allocation2 + $0x20] sm:$0xff] %vm149, -1e+30
      %155 = vst.msk [vmem:[#allocation2 + $0x28] sm:$0xff] %vm149, -1e+30
      %156 = vst.msk [vmem:[#allocation2 + $0x30] sm:$0xff] %vm149, -1e+30
      %157 = vst.msk [vmem:[#allocation2 + $0x38] sm:$0xff] %vm149, -1e+30
      %158 = vst.msk [vmem:[#allocation3] sm:$0xff] %vm149, 0.0
      %159 = vst.msk [vmem:[#allocation3 + $0x8] sm:$0xff] %vm149, 0.0
      %160 = vst.msk [vmem:[#allocation3 + $0x10] sm:$0xff] %vm149, 0.0
      %161 = vst.msk [vmem:[#allocation3 + $0x18] sm:$0xff] %vm149, 0.0
      %162 = vst.msk [vmem:[#allocation3 + $0x20] sm:$0xff] %vm149, 0.0
      %163 = vst.msk [vmem:[#allocation3 + $0x28] sm:$0xff] %vm149, 0.0
      %164 = vst.msk [vmem:[#allocation3 + $0x30] sm:$0xff] %vm149, 0.0
      %165 = vst.msk [vmem:[#allocation3 + $0x38] sm:$0xff] %vm149, 0.0
      %166 = vst [vmem:[#allocation4] sm:$0xff] 0.0
      %167 = vst [vmem:[#allocation4 + $0x8] sm:$0xff] 0.0
      %168 = vst [vmem:[#allocation4 + $0x10] sm:$0xff] 0.0
      %169 = vst [vmem:[#allocation4 + $0x18] sm:$0xff] 0.0
      %170 = vst [vmem:[#allocation4 + $0x20] sm:$0xff] 0.0
      %171 = vst [vmem:[#allocation4 + $0x28] sm:$0xff] 0.0
      %172 = vst [vmem:[#allocation4 + $0x30] sm:$0xff] 0.0
      %173 = vst [vmem:[#allocation4 + $0x38] sm:$0xff] 0.0
    $region53: #{_forward_impl.3} parent=1 // pred_fallthru
      _
    %s174 = sadd.s32 0, 0
    %s175 = sld [smem:[#allocation6 + %s174]]
    %p176 = scmp.ne.s32.totalorder %s175, 0
    // Predicated region
    $region54: #{_forward_impl.3} parent=1 // pred_check
      %p177 = pneg %p176
    $region55: #{_forward_impl.3} parent=1 // pred_check_branch
      %179 = sbr.rel (%p177) target = $region57
    $region56: #{_forward_impl.3} parent=1 // pred_region
      %v180 = vld [vmem:[%s140] sm:$0x3]
      %v181 = vld [vmem:[%s140 + $0x2] sm:$0x3]
      %v182 = vld [vmem:[%s140 + $0x4] sm:$0x3]
      %v183 = vld [vmem:[%s140 + $0x6] sm:$0x3]
      %v184 = vld [vmem:[%s140 + $0x8] sm:$0x3]
      %v185 = vld [vmem:[%s140 + $0xa] sm:$0x3]
      %v186 = vld [vmem:[%s140 + $0xc] sm:$0x3]
      %v187 = vld [vmem:[%s140 + $0xe] sm:$0x3]
      %v188 = vunpack.c.0.s8 %v180
      %v189 = vunpack.c.0.s8 %v181
      %v190 = vunpack.c.0.s8 %v182
      %v191 = vunpack.c.0.s8 %v183
      %v192 = vunpack.c.0.s8 %v184
      %v193 = vunpack.c.0.s8 %v185
      %v194 = vunpack.c.0.s8 %v186
      %v195 = vunpack.c.0.s8 %v187
      %v196 = vcvt.s32.f32 %v188
      %v197 = vcvt.s32.f32 %v189
      %v198 = vcvt.s32.f32 %v190
      %v199 = vcvt.s32.f32 %v191
      %v200 = vcvt.s32.f32 %v192
      %v201 = vcvt.s32.f32 %v193
      %v202 = vcvt.s32.f32 %v194
      %v203 = vcvt.s32.f32 %v195
      %v204 = vld [vmem:[%s3] sm:$0xff]
      %v205 = vld [vmem:[%s3 + $0x8] sm:$0xff]
      %v206 = vld [vmem:[%s3 + $0x10] sm:$0xff]
      %v207 = vld [vmem:[%s3 + $0x18] sm:$0xff]
      %v208 = vld [vmem:[%s3 + $0x20] sm:$0xff]
      %v209 = vld [vmem:[%s3 + $0x28] sm:$0xff]
      %v210 = vld [vmem:[%s3 + $0x30] sm:$0xff]
      %v211 = vld [vmem:[%s3 + $0x38] sm:$0xff]
      %v212 = vld [vmem:[%s114] sm:$0xff]
      %v213 = vld [vmem:[%s114 + $0x8] sm:$0xff]
      %v214 = vld [vmem:[%s114 + $0x10] sm:$0xff]
      %v215 = vld [vmem:[%s114 + $0x18] sm:$0xff]
      %v216 = vld [vmem:[%s114 + $0x20] sm:$0xff]
      %v217 = vld [vmem:[%s114 + $0x28] sm:$0xff]
      %v218 = vld [vmem:[%s114 + $0x30] sm:$0xff]
      %v219 = vld [vmem:[%s114 + $0x38] sm:$0xff]
      %v220 = vld [vmem:[%s114 + $0x40] sm:$0xff]
      %v221 = vld [vmem:[%s114 + $0x48] sm:$0xff]
      %v222 = vld [vmem:[%s114 + $0x50] sm:$0xff]
      %v223 = vld [vmem:[%s114 + $0x58] sm:$0xff]
      %v224 = vld [vmem:[%s114 + $0x60] sm:$0xff]
      %v225 = vld [vmem:[%s114 + $0x68] sm:$0xff]
      %v226 = vld [vmem:[%s114 + $0x70] sm:$0xff]
      %v227 = vld [vmem:[%s114 + $0x78] sm:$0xff]
      %228 = vmatprep.subr.mxu0 0.0
      %229 = vmatpush1.msra.mxu0 %v212
      %230 = vmatprep.subr.mxu0 0.0
      %231 = vmatpush1.msra.mxu0 %v213
      %232 = vmatprep.subr.mxu0 0.0
      %233 = vmatpush1.msra.mxu0 %v214
      %234 = vmatprep.subr.mxu0 0.0
      %235 = vmatpush1.msra.mxu0 %v215
      %236 = vmatprep.subr.mxu0 0.0
      %237 = vmatpush1.msra.mxu0 %v216
      %238 = vmatprep.subr.mxu0 0.0
      %239 = vmatpush1.msra.mxu0 %v217
      %240 = vmatprep.subr.mxu0 0.0
      %241 = vmatpush1.msra.mxu0 %v218
      %242 = vmatprep.subr.mxu0 0.0
      %243 = vmatpush1.msra.mxu0 %v219
      %244 = vmatprep.subr.mxu0 0.0
      %245 = vmatpush1.msra.mxu0 %v220
      %246 = vmatprep.subr.mxu0 0.0
      %247 = vmatpush1.msra.mxu0 %v221
      %248 = vmatprep.subr.mxu0 0.0
      %249 = vmatpush1.msra.mxu0 %v222
      %250 = vmatprep.subr.mxu0 0.0
      %251 = vmatpush1.msra.mxu0 %v223
      %252 = vmatprep.subr.mxu0 0.0
      %253 = vmatpush1.msra.mxu0 %v224
      %254 = vmatprep.subr.mxu0 0.0
      %255 = vmatpush1.msra.mxu0 %v225
      %256 = vmatprep.subr.mxu0 0.0
      %257 = vmatpush1.msra.mxu0 %v226
      %258 = vmatprep.subr.mxu0 0.0
      %259 = vmatpush1.msra.mxu0 %v227
      %260 = vmatprep.subr.mxu0 0.0
      %261 = vmatpush1.msra.mxu0 0.0
      %262 = vmatprep.subr.mxu0 0.0
      %263 = vmatpush1.msra.mxu0 0.0
      %264 = vmatprep.subr.mxu0 0.0
      %265 = vmatpush1.msra.mxu0 0.0
      %266 = vmatprep.subr.mxu0 0.0
      %267 = vmatpush1.msra.mxu0 0.0
      %268 = vmatprep.subr.mxu0 0.0
      %269 = vmatpush1.msra.mxu0 0.0
      %270 = vmatprep.subr.mxu0 0.0
      %271 = vmatpush1.msra.mxu0 0.0
      %272 = vmatprep.subr.mxu0 0.0
      %273 = vmatpush1.msra.mxu0 0.0
      %274 = vmatprep.subr.mxu0 0.0
      %275 = vmatpush1.msra.mxu0 0.0
      %276 = vmatprep.subr.mxu0 0.0
      %277 = vmatpush1.msra.mxu0 0.0
      %278 = vmatprep.subr.mxu0 0.0
      %279 = vmatpush1.msra.mxu0 0.0
      %280 = vmatprep.subr.mxu0 0.0
      %281 = vmatpush1.msra.mxu0 0.0
      %282 = vmatprep.subr.mxu0 0.0
      %283 = vmatpush1.msra.mxu0 0.0
      %284 = vmatprep.subr.mxu0 0.0
      %285 = vmatpush1.msra.mxu0 0.0
      %286 = vmatprep.subr.mxu0 0.0
      %287 = vmatpush1.msra.mxu0 0.0
      %288 = vmatprep.subr.mxu0 0.0
      %289 = vmatpush1.msra.mxu0 0.0
      %290 = vmatprep.subr.mxu0 0.0
      %291 = vmatpush1.msra.mxu0 0.0
      %292 = vmatprep.mubr.f32.mxu0 0.0
      %293 = vmatmul.mubr.f32.gmra.mrb[0].mxu0 %v204
      %v294 = vpop.f32.mrb[0].mxu0
      %v295 = vadd.f32 0.0, %v294
      %v296 = vpop.f32.mrb[0].mxu0
      %297 = vmatprep.mubr.f32.mxu0 0.0
      %298 = vmatmul.mubr.f32.gmra.mrb[0].mxu0 %v205
      %v299 = vpop.f32.mrb[0].mxu0
      %v300 = vadd.f32 0.0, %v299
      %v301 = vpop.f32.mrb[0].mxu0
      %302 = vmatprep.mubr.f32.mxu0 0.0
      %303 = vmatmul.mubr.f32.gmra.mrb[0].mxu0 %v206
      %v304 = vpop.f32.mrb[0].mxu0
      %v305 = vadd.f32 0.0, %v304
      %v306 = vpop.f32.mrb[0].mxu0
      %307 = vmatprep.mubr.f32.mxu0 0.0
      %308 = vmatmul.mubr.f32.gmra.mrb[0].mxu0 %v207
      %v309 = vpop.f32.mrb[0].mxu0
      %v310 = vadd.f32 0.0, %v309
      %v311 = vpop.f32.mrb[0].mxu0
      %312 = vmatprep.mubr.f32.mxu0 0.0
      %313 = vmatmul.mubr.f32.gmra.mrb[0].mxu0 %v208
      %v314 = vpop.f32.mrb[0].mxu0
      %v315 = vadd.f32 0.0, %v314
      %v316 = vpop.f32.mrb[0].mxu0
      %317 = vmatprep.mubr.f32.mxu0 0.0
      %318 = vmatmul.mubr.f32.gmra.mrb[0].mxu0 %v209
      %v319 = vpop.f32.mrb[0].mxu0
      %v320 = vadd.f32 0.0, %v319
      %v321 = vpop.f32.mrb[0].mxu0
      %322 = vmatprep.mubr.f32.mxu0 0.0
      %323 = vmatmul.mubr.f32.gmra.mrb[0].mxu0 %v210
      %v324 = vpop.f32.mrb[0].mxu0
      %v325 = vadd.f32 0.0, %v324
      %v326 = vpop.f32.mrb[0].mxu0
      %327 = vmatprep.mubr.f32.mxu0 0.0
      %328 = vmatmul.mubr.f32.gmra.mrb[0].mxu0 %v211
      %v329 = vpop.f32.mrb[0].mxu0
      %v330 = vadd.f32 0.0, %v329
      %v331 = vpop.f32.mrb[0].mxu0
      %332 = vdwg.mxu0
      %v333 = vmul.f32 %v295, 0.088388346
      %v334 = vmul.f32 %v300, 0.088388346
      %v335 = vmul.f32 %v305, 0.088388346
      %v336 = vmul.f32 %v310, 0.088388346
      %v337 = vmul.f32 %v315, 0.088388346
      %v338 = vmul.f32 %v320, 0.088388346
      %v339 = vmul.f32 %v325, 0.088388346
      %v340 = vmul.f32 %v330, 0.088388346
      %vm341 = vcmp.gt.f32.partialorder %v196, 0.0
      %vm342 = vcmp.gt.f32.partialorder %v197, 0.0
      %vm343 = vcmp.gt.f32.partialorder %v198, 0.0
      %vm344 = vcmp.gt.f32.partialorder %v199, 0.0
      %vm345 = vcmp.gt.f32.partialorder %v200, 0.0
      %vm346 = vcmp.gt.f32.partialorder %v201, 0.0
      %vm347 = vcmp.gt.f32.partialorder %v202, 0.0
      %vm348 = vcmp.gt.f32.partialorder %v203, 0.0
      %v349 = vsel %vm341, %v333, -1e+30
      %v350 = vsel %vm342, %v334, -1e+30
      %v351 = vsel %vm343, %v335, -1e+30
      %v352 = vsel %vm344, %v336, -1e+30
      %v353 = vsel %vm345, %v337, -1e+30
      %v354 = vsel %vm346, %v338, -1e+30
      %v355 = vsel %vm347, %v339, -1e+30
      %v356 = vsel %vm348, %v340, -1e+30
      %v357 = vld [vmem:[#allocation2] sm:$0xff]
      %v358 = vld [vmem:[#allocation2 + $0x8] sm:$0xff]
      %v359 = vld [vmem:[#allocation2 + $0x10] sm:$0xff]
      %v360 = vld [vmem:[#allocation2 + $0x18] sm:$0xff]
      %v361 = vld [vmem:[#allocation2 + $0x20] sm:$0xff]
      %v362 = vld [vmem:[#allocation2 + $0x28] sm:$0xff]
      %v363 = vld [vmem:[#allocation2 + $0x30] sm:$0xff]
      %v364 = vld [vmem:[#allocation2 + $0x38] sm:$0xff]
      %vm365 = vcmask 523264
      %v366 = vsel %vm365, %v349, -inf
      %367 = vmax.xlane.f32.xlu0 %v366
      %v368 = vpop.xlane.xlu0 %367
      %v369 = vsel %vm365, %v350, -inf
      %370 = vmax.xlane.f32.xlu0 %v369
      %v371 = vpop.xlane.xlu0 %370
      %v372 = vsel %vm365, %v351, -inf
      %373 = vmax.xlane.f32.xlu0 %v372
      %v374 = vpop.xlane.xlu0 %373
      %v375 = vsel %vm365, %v352, -inf
      %376 = vmax.xlane.f32.xlu0 %v375
      %v377 = vpop.xlane.xlu0 %376
      %v378 = vsel %vm365, %v353, -inf
      %379 = vmax.xlane.f32.xlu0 %v378
      %v380 = vpop.xlane.xlu0 %379
      %v381 = vsel %vm365, %v354, -inf
      %382 = vmax.xlane.f32.xlu0 %v381
      %v383 = vpop.xlane.xlu0 %382
      %v384 = vsel %vm365, %v355, -inf
      %385 = vmax.xlane.f32.xlu0 %v384
      %v386 = vpop.xlane.xlu0 %385
      %v387 = vsel %vm365, %v356, -inf
      %388 = vmax.xlane.f32.xlu0 %v387
      %v389 = vpop.xlane.xlu0 %388
      %v390 = vmax.f32 %v357, %v368
      %v391 = vmax.f32 %v358, %v371
      %v392 = vmax.f32 %v359, %v374
      %v393 = vmax.f32 %v360, %v377
      %v394 = vmax.f32 %v361, %v380
      %v395 = vmax.f32 %v362, %v383
      %v396 = vmax.f32 %v363, %v386
      %v397 = vmax.f32 %v364, %v389
      %v398 = vsub.f32 %v357, %v390
      %v399 = vsub.f32 %v358, %v391
      %v400 = vsub.f32 %v359, %v392
      %v401 = vsub.f32 %v360, %v393
      %v402 = vsub.f32 %v361, %v394
      %v403 = vsub.f32 %v362, %v395
      %v404 = vsub.f32 %v363, %v396
      %v405 = vsub.f32 %v364, %v397
      %v406 = vmul.f32 %v398, 1.442695
      %v407 = vpow.pop %v406
      %v408 = vmul.f32 %v399, 1.442695
      %v409 = vpow.pop %v408
      %v410 = vmul.f32 %v400, 1.442695
      %v411 = vpow.pop %v410
      %v412 = vmul.f32 %v401, 1.442695
      %v413 = vpow.pop %v412
      %v414 = vmul.f32 %v402, 1.442695
      %v415 = vpow.pop %v414
      %v416 = vmul.f32 %v403, 1.442695
      %v417 = vpow.pop %v416
      %v418 = vmul.f32 %v404, 1.442695
      %v419 = vpow.pop %v418
      %v420 = vmul.f32 %v405, 1.442695
      %v421 = vpow.pop %v420
      %423 = vset.pattern.permute.xlu0 0
      %424 = vperm.xlu0 %423, %v390
      %v425 = vpop.permute.xlu0 %424
      %428 = vset.pattern.permute.xlu0 0
      %429 = vperm.xlu0 %428, %v391
      %v430 = vpop.permute.xlu0 %429
      %433 = vset.pattern.permute.xlu0 0
      %434 = vperm.xlu0 %433, %v392
      %v435 = vpop.permute.xlu0 %434
      %438 = vset.pattern.permute.xlu0 0
      %439 = vperm.xlu0 %438, %v393
      %v440 = vpop.permute.xlu0 %439
      %443 = vset.pattern.permute.xlu0 0
      %444 = vperm.xlu0 %443, %v394
      %v445 = vpop.permute.xlu0 %444
      %448 = vset.pattern.permute.xlu0 0
      %449 = vperm.xlu0 %448, %v395
      %v450 = vpop.permute.xlu0 %449
      %453 = vset.pattern.permute.xlu0 0
      %454 = vperm.xlu0 %453, %v396
      %v455 = vpop.permute.xlu0 %454
      %458 = vset.pattern.permute.xlu0 0
      %459 = vperm.xlu0 %458, %v397
      %v460 = vpop.permute.xlu0 %459
      %v462 = vsub.f32 %v349, %v425
      %v463 = vsub.f32 %v350, %v430
      %v464 = vsub.f32 %v351, %v435
      %v465 = vsub.f32 %v352, %v440
      %v466 = vsub.f32 %v353, %v445
      %v467 = vsub.f32 %v354, %v450
      %v468 = vsub.f32 %v355, %v455
      %v469 = vsub.f32 %v356, %v460
      %v470 = vmul.f32 %v462, 1.442695
      %v471 = vpow.pop %v470
      %v472 = vmul.f32 %v463, 1.442695
      %v473 = vpow.pop %v472
      %v474 = vmul.f32 %v464, 1.442695
      %v475 = vpow.pop %v474
      %v476 = vmul.f32 %v465, 1.442695
      %v477 = vpow.pop %v476
      %v478 = vmul.f32 %v466, 1.442695
      %v479 = vpow.pop %v478
      %v480 = vmul.f32 %v467, 1.442695
      %v481 = vpow.pop %v480
      %v482 = vmul.f32 %v468, 1.442695
      %v483 = vpow.pop %v482
      %v484 = vmul.f32 %v469, 1.442695
      %v485 = vpow.pop %v484
      %v486 = vmul.f32 %v471, %v196
      %v487 = vmul.f32 %v473, %v197
      %v488 = vmul.f32 %v475, %v198
      %v489 = vmul.f32 %v477, %v199
      %v490 = vmul.f32 %v479, %v200
      %v491 = vmul.f32 %v481, %v201
      %v492 = vmul.f32 %v483, %v202
      %v493 = vmul.f32 %v485, %v203
      %v494 = vld [vmem:[#allocation3] sm:$0xff]
      %v495 = vld [vmem:[#allocation3 + $0x8] sm:$0xff]
      %v496 = vld [vmem:[#allocation3 + $0x10] sm:$0xff]
      %v497 = vld [vmem:[#allocation3 + $0x18] sm:$0xff]
      %v498 = vld [vmem:[#allocation3 + $0x20] sm:$0xff]
      %v499 = vld [vmem:[#allocation3 + $0x28] sm:$0xff]
      %v500 = vld [vmem:[#allocation3 + $0x30] sm:$0xff]
      %v501 = vld [vmem:[#allocation3 + $0x38] sm:$0xff]
      %v502 = vmul.f32 %v407, %v494
      %v503 = vmul.f32 %v409, %v495
      %v504 = vmul.f32 %v411, %v496
      %v505 = vmul.f32 %v413, %v497
      %v506 = vmul.f32 %v415, %v498
      %v507 = vmul.f32 %v417, %v499
      %v508 = vmul.f32 %v419, %v500
      %v509 = vmul.f32 %v421, %v501
      %v510 = vsel %vm365, %v486, 0.0
      %511 = vadd.xlane.f32.xlu0 %v510
      %v512 = vpop.xlane.xlu0 %511
      %v513 = vsel %vm365, %v487, 0.0
      %514 = vadd.xlane.f32.xlu0 %v513
      %v515 = vpop.xlane.xlu0 %514
      %v516 = vsel %vm365, %v488, 0.0
      %517 = vadd.xlane.f32.xlu0 %v516
      %v518 = vpop.xlane.xlu0 %517
      %v519 = vsel %vm365, %v489, 0.0
      %520 = vadd.xlane.f32.xlu0 %v519
      %v521 = vpop.xlane.xlu0 %520
      %v522 = vsel %vm365, %v490, 0.0
      %523 = vadd.xlane.f32.xlu0 %v522
      %v524 = vpop.xlane.xlu0 %523
      %v525 = vsel %vm365, %v491, 0.0
      %526 = vadd.xlane.f32.xlu0 %v525
      %v527 = vpop.xlane.xlu0 %526
      %v528 = vsel %vm365, %v492, 0.0
      %529 = vadd.xlane.f32.xlu0 %v528
      %v530 = vpop.xlane.xlu0 %529
      %v531 = vsel %vm365, %v493, 0.0
      %532 = vadd.xlane.f32.xlu0 %v531
      %v533 = vpop.xlane.xlu0 %532
      %v534 = vadd.f32 %v502, %v512
      %v535 = vadd.f32 %v503, %v515
      %v536 = vadd.f32 %v504, %v518
      %v537 = vadd.f32 %v505, %v521
      %v538 = vadd.f32 %v506, %v524
      %v539 = vadd.f32 %v507, %v527
      %v540 = vadd.f32 %v508, %v530
      %v541 = vadd.f32 %v509, %v533
      %vm542 = vcmask 7168
      %543 = vst.msk [vmem:[#allocation3] sm:$0xff] %vm542, %v534
      %544 = vst.msk [vmem:[#allocation3 + $0x8] sm:$0xff] %vm542, %v535
      %545 = vst.msk [vmem:[#allocation3 + $0x10] sm:$0xff] %vm542, %v536
      %546 = vst.msk [vmem:[#allocation3 + $0x18] sm:$0xff] %vm542, %v537
      %547 = vst.msk [vmem:[#allocation3 + $0x20] sm:$0xff] %vm542, %v538
      %548 = vst.msk [vmem:[#allocation3 + $0x28] sm:$0xff] %vm542, %v539
      %549 = vst.msk [vmem:[#allocation3 + $0x30] sm:$0xff] %vm542, %v540
      %550 = vst.msk [vmem:[#allocation3 + $0x38] sm:$0xff] %vm542, %v541
      %v551 = vld [vmem:[#allocation4] sm:$0xff]
      %v552 = vld [vmem:[#allocation4 + $0x8] sm:$0xff]
      %v553 = vld [vmem:[#allocation4 + $0x10] sm:$0xff]
      %v554 = vld [vmem:[#allocation4 + $0x18] sm:$0xff]
      %v555 = vld [vmem:[#allocation4 + $0x20] sm:$0xff]
      %v556 = vld [vmem:[#allocation4 + $0x28] sm:$0xff]
      %v557 = vld [vmem:[#allocation4 + $0x30] sm:$0xff]
      %v558 = vld [vmem:[#allocation4 + $0x38] sm:$0xff]
      %560 = vset.pattern.permute.xlu0 0
      %561 = vperm.xlu0 %560, %v407
      %v562 = vpop.permute.xlu0 %561
      %565 = vset.pattern.permute.xlu0 0
      %566 = vperm.xlu0 %565, %v409
      %v567 = vpop.permute.xlu0 %566
      %570 = vset.pattern.permute.xlu0 0
      %571 = vperm.xlu0 %570, %v411
      %v572 = vpop.permute.xlu0 %571
      %575 = vset.pattern.permute.xlu0 0
      %576 = vperm.xlu0 %575, %v413
      %v577 = vpop.permute.xlu0 %576
      %580 = vset.pattern.permute.xlu0 0
      %581 = vperm.xlu0 %580, %v415
      %v582 = vpop.permute.xlu0 %581
      %585 = vset.pattern.permute.xlu0 0
      %586 = vperm.xlu0 %585, %v417
      %v587 = vpop.permute.xlu0 %586
      %590 = vset.pattern.permute.xlu0 0
      %591 = vperm.xlu0 %590, %v419
      %v592 = vpop.permute.xlu0 %591
      %595 = vset.pattern.permute.xlu0 0
      %596 = vperm.xlu0 %595, %v421
      %v597 = vpop.permute.xlu0 %596
      %v599 = vmul.f32 %v562, %v551
      %v600 = vmul.f32 %v567, %v552
      %v601 = vmul.f32 %v572, %v553
      %v602 = vmul.f32 %v577, %v554
      %v603 = vmul.f32 %v582, %v555
      %v604 = vmul.f32 %v587, %v556
      %v605 = vmul.f32 %v592, %v557
      %v606 = vmul.f32 %v597, %v558
      %v607 = vld [vmem:[%s127] sm:$0xff]
      %v608 = vld [vmem:[%s127 + $0x8] sm:$0xff]
      %v609 = vld [vmem:[%s127 + $0x10] sm:$0xff]
      %v610 = vld [vmem:[%s127 + $0x18] sm:$0xff]
      %v611 = vld [vmem:[%s127 + $0x20] sm:$0xff]
      %v612 = vld [vmem:[%s127 + $0x28] sm:$0xff]
      %v613 = vld [vmem:[%s127 + $0x30] sm:$0xff]
      %v614 = vld [vmem:[%s127 + $0x38] sm:$0xff]
      %v616 = vsel %vm365, %v486, 0
      %v619 = vsel %vm365, %v487, 0
      %v622 = vsel %vm365, %v488, 0
      %v625 = vsel %vm365, %v489, 0
      %v628 = vsel %vm365, %v490, 0
      %v631 = vsel %vm365, %v491, 0
      %v634 = vsel %vm365, %v492, 0
      %v637 = vsel %vm365, %v493, 0
      %639 = vmatprep.subr.mxu0 0.0
      %640 = vmatpush1.msra.mxu0 %v607
      %641 = vmatprep.subr.mxu0 0.0
      %642 = vmatpush1.msra.mxu0 %v608
      %643 = vmatprep.subr.mxu0 0.0
      %644 = vmatpush1.msra.mxu0 %v609
      %645 = vmatprep.subr.mxu0 0.0
      %646 = vmatpush1.msra.mxu0 %v610
      %647 = vmatprep.subr.mxu0 0.0
      %648 = vmatpush1.msra.mxu0 %v611
      %649 = vmatprep.subr.mxu0 0.0
      %650 = vmatpush1.msra.mxu0 %v612
      %651 = vmatprep.subr.mxu0 0.0
      %652 = vmatpush1.msra.mxu0 %v613
      %653 = vmatprep.subr.mxu0 0.0
      %654 = vmatpush1.msra.mxu0 %v614
      %655 = vmatprep.subr.mxu0 0.0
      %656 = vmatpush1.msra.mxu0 0.0
      %657 = vmatprep.subr.mxu0 0.0
      %658 = vmatpush1.msra.mxu0 0.0
      %659 = vmatprep.subr.mxu0 0.0
      %660 = vmatpush1.msra.mxu0 0.0
      %661 = vmatprep.subr.mxu0 0.0
      %662 = vmatpush1.msra.mxu0 0.0
      %663 = vmatprep.subr.mxu0 0.0
      %664 = vmatpush1.msra.mxu0 0.0
      %665 = vmatprep.subr.mxu0 0.0
      %666 = vmatpush1.msra.mxu0 0.0
      %667 = vmatprep.subr.mxu0 0.0
      %668 = vmatpush1.msra.mxu0 0.0
      %669 = vmatprep.subr.mxu0 0.0
      %670 = vmatpush1.msra.mxu0 0.0
      %671 = vmatprep.subr.mxu0 0.0
      %672 = vmatpush1.msra.mxu0 0.0
      %673 = vmatprep.subr.mxu0 0.0
      %674 = vmatpush1.msra.mxu0 0.0
      %675 = vmatprep.subr.mxu0 0.0
      %676 = vmatpush1.msra.mxu0 0.0
      %677 = vmatprep.subr.mxu0 0.0
      %678 = vmatpush1.msra.mxu0 0.0
      %679 = vmatprep.subr.mxu0 0.0
      %680 = vmatpush1.msra.mxu0 0.0
      %681 = vmatprep.subr.mxu0 0.0
      %682 = vmatpush1.msra.mxu0 0.0
      %683 = vmatprep.subr.mxu0 0.0
      %684 = vmatpush1.msra.mxu0 0.0
      %685 = vmatprep.subr.mxu0 0.0
      %686 = vmatpush1.msra.mxu0 0.0
      %687 = vmatprep.subr.mxu0 0.0
      %688 = vmatpush1.msra.mxu0 0.0
      %689 = vmatprep.subr.mxu0 0.0
      %690 = vmatpush1.msra.mxu0 0.0
      %691 = vmatprep.subr.mxu0 0.0
      %692 = vmatpush1.msra.mxu0 0.0
      %693 = vmatprep.subr.mxu0 0.0
      %694 = vmatpush1.msra.mxu0 0.0
      %695 = vmatprep.subr.mxu0 0.0
      %696 = vmatpush1.msra.mxu0 0.0
      %697 = vmatprep.subr.mxu0 0.0
      %698 = vmatpush1.msra.mxu0 0.0
      %699 = vmatprep.subr.mxu0 0.0
      %700 = vmatpush1.msra.mxu0 0.0
      %701 = vmatprep.subr.mxu0 0.0
      %702 = vmatpush1.msra.mxu0 0.0
      %703 = vmatprep.mubr.f32.mxu0 0.0
      %704 = vmatmul.mubr.f32.gmra.mrb[0].mxu0 %v616
      %v705 = vpop.f32.mrb[0].mxu0
      %v706 = vadd.f32 0.0, %v705
      %v707 = vpop.f32.mrb[0].mxu0
      %708 = vmatprep.mubr.f32.mxu0 0.0
      %709 = vmatmul.mubr.f32.gmra.mrb[0].mxu0 %v619
      %v710 = vpop.f32.mrb[0].mxu0
      %v711 = vadd.f32 0.0, %v710
      %v712 = vpop.f32.mrb[0].mxu0
      %713 = vmatprep.mubr.f32.mxu0 0.0
      %714 = vmatmul.mubr.f32.gmra.mrb[0].mxu0 %v622
      %v715 = vpop.f32.mrb[0].mxu0
      %v716 = vadd.f32 0.0, %v715
      %v717 = vpop.f32.mrb[0].mxu0
      %718 = vmatprep.mubr.f32.mxu0 0.0
      %719 = vmatmul.mubr.f32.gmra.mrb[0].mxu0 %v625
      %v720 = vpop.f32.mrb[0].mxu0
      %v721 = vadd.f32 0.0, %v720
      %v722 = vpop.f32.mrb[0].mxu0
      %723 = vmatprep.mubr.f32.mxu0 0.0
      %724 = vmatmul.mubr.f32.gmra.mrb[0].mxu0 %v628
      %v725 = vpop.f32.mrb[0].mxu0
      %v726 = vadd.f32 0.0, %v725
      %v727 = vpop.f32.mrb[0].mxu0
      %728 = vmatprep.mubr.f32.mxu0 0.0
      %729 = vmatmul.mubr.f32.gmra.mrb[0].mxu0 %v631
      %v730 = vpop.f32.mrb[0].mxu0
      %v731 = vadd.f32 0.0, %v730
      %v732 = vpop.f32.mrb[0].mxu0
      %733 = vmatprep.mubr.f32.mxu0 0.0
      %734 = vmatmul.mubr.f32.gmra.mrb[0].mxu0 %v634
      %v735 = vpop.f32.mrb[0].mxu0
      %v736 = vadd.f32 0.0, %v735
      %v737 = vpop.f32.mrb[0].mxu0
      %738 = vmatprep.mubr.f32.mxu0 0.0
      %739 = vmatmul.mubr.f32.gmra.mrb[0].mxu0 %v637
      %v740 = vpop.f32.mrb[0].mxu0
      %v741 = vadd.f32 0.0, %v740
      %v742 = vpop.f32.mrb[0].mxu0
      %743 = vdwg.mxu0
      %v744 = vadd.f32 %v599, %v706
      %v745 = vadd.f32 %v600, %v711
      %v746 = vadd.f32 %v601, %v716
      %v747 = vadd.f32 %v602, %v721
      %v748 = vadd.f32 %v603, %v726
      %v749 = vadd.f32 %v604, %v731
      %v750 = vadd.f32 %v605, %v736
      %v751 = vadd.f32 %v606, %v741
      %752 = vst [vmem:[#allocation4] sm:$0xff] %v744
      %753 = vst [vmem:[#allocation4 + $0x8] sm:$0xff] %v745
      %754 = vst [vmem:[#allocation4 + $0x10] sm:$0xff] %v746
      %755 = vst [vmem:[#allocation4 + $0x18] sm:$0xff] %v747
      %756 = vst [vmem:[#allocation4 + $0x20] sm:$0xff] %v748
      %757 = vst [vmem:[#allocation4 + $0x28] sm:$0xff] %v749
      %758 = vst [vmem:[#allocation4 + $0x30] sm:$0xff] %v750
      %759 = vst [vmem:[#allocation4 + $0x38] sm:$0xff] %v751
      %760 = vst.msk [vmem:[#allocation2] sm:$0xff] %vm542, %v390
      %761 = vst.msk [vmem:[#allocation2 + $0x8] sm:$0xff] %vm542, %v391
      %762 = vst.msk [vmem:[#allocation2 + $0x10] sm:$0xff] %vm542, %v392
      %763 = vst.msk [vmem:[#allocation2 + $0x18] sm:$0xff] %vm542, %v393
      %764 = vst.msk [vmem:[#allocation2 + $0x20] sm:$0xff] %vm542, %v394
      %765 = vst.msk [vmem:[#allocation2 + $0x28] sm:$0xff] %vm542, %v395
      %766 = vst.msk [vmem:[#allocation2 + $0x30] sm:$0xff] %vm542, %v396
      %767 = vst.msk [vmem:[#allocation2 + $0x38] sm:$0xff] %vm542, %v397
    $region57: #{_forward_impl.3} parent=1 // pred_fallthru
      _
    // Predicated region
    $region58: #{_forward_impl.3} parent=1 // pred_check
      %p768 = pneg %p145
    $region59: #{_forward_impl.3} parent=1 // pred_check_branch
      %770 = sbr.rel (%p768) target = $region61
    $region60: #{_forward_impl.3} parent=1 // pred_region
      %v771 = vlaneseq
      %v772 = vand.u32 %v771, 127
      %v773 = vld [vmem:[%s1] sm:$0xff]
      %v774 = vld [vmem:[%s1 + $0x8] sm:$0xff]
      %v775 = vld [vmem:[%s1 + $0x10] sm:$0xff]
      %v776 = vld [vmem:[%s1 + $0x18] sm:$0xff]
      %v777 = vld [vmem:[%s1 + $0x20] sm:$0xff]
      %v778 = vld [vmem:[%s1 + $0x28] sm:$0xff]
      %v779 = vld [vmem:[%s1 + $0x30] sm:$0xff]
      %v780 = vld [vmem:[%s1 + $0x38] sm:$0xff]
      %781 = vset.pattern.permute.xlu0 0
      %782 = vperm.xlu0 %781, %v773
      %v783 = vpop.permute.xlu0 %782
      %784 = vset.pattern.permute.xlu0 0
      %785 = vperm.xlu0 %784, %v774
      %v786 = vpop.permute.xlu0 %785
      %787 = vset.pattern.permute.xlu0 0
      %788 = vperm.xlu0 %787, %v775
      %v789 = vpop.permute.xlu0 %788
      %790 = vset.pattern.permute.xlu0 0
      %791 = vperm.xlu0 %790, %v776
      %v792 = vpop.permute.xlu0 %791
      %793 = vset.pattern.permute.xlu0 0
      %794 = vperm.xlu0 %793, %v777
      %v795 = vpop.permute.xlu0 %794
      %796 = vset.pattern.permute.xlu0 0
      %797 = vperm.xlu0 %796, %v778
      %v798 = vpop.permute.xlu0 %797
      %799 = vset.pattern.permute.xlu0 0
      %800 = vperm.xlu0 %799, %v779
      %v801 = vpop.permute.xlu0 %800
      %802 = vset.pattern.permute.xlu0 0
      %803 = vperm.xlu0 %802, %v780
      %v804 = vpop.permute.xlu0 %803
      %vm805 = vcmp.eq.s32.totalorder %v783, %v772
      %vm806 = vcmp.eq.s32.totalorder %v786, %v772
      %vm807 = vcmp.eq.s32.totalorder %v789, %v772
      %vm808 = vcmp.eq.s32.totalorder %v792, %v772
      %vm809 = vcmp.eq.s32.totalorder %v795, %v772
      %vm810 = vcmp.eq.s32.totalorder %v798, %v772
      %vm811 = vcmp.eq.s32.totalorder %v801, %v772
      %vm812 = vcmp.eq.s32.totalorder %v804, %v772
      %v813 = vsel %vm805, 1, 0
      %v814 = vsel %vm806, 1, 0
      %v815 = vsel %vm807, 1, 0
      %v816 = vsel %vm808, 1, 0
      %v817 = vsel %vm809, 1, 0
      %v818 = vsel %vm810, 1, 0
      %v819 = vsel %vm811, 1, 0
      %v820 = vsel %vm812, 1, 0
      %v821 = vcvt.s32.f32 %v813
      %v822 = vcvt.s32.f32 %v814
      %v823 = vcvt.s32.f32 %v815
      %v824 = vcvt.s32.f32 %v816
      %v825 = vcvt.s32.f32 %v817
      %v826 = vcvt.s32.f32 %v818
      %v827 = vcvt.s32.f32 %v819
      %v828 = vcvt.s32.f32 %v820
      %v829 = vld [vmem:[%s2] sm:$0xff]
      %v830 = vld [vmem:[%s2 + $0x8] sm:$0x3]
      %v831 = vld [vmem:[#allocation3] sm:$0xff]
      %v832 = vld [vmem:[#allocation3 + $0x8] sm:$0xff]
      %v833 = vld [vmem:[#allocation3 + $0x10] sm:$0xff]
      %v834 = vld [vmem:[#allocation3 + $0x18] sm:$0xff]
      %v835 = vld [vmem:[#allocation3 + $0x20] sm:$0xff]
      %v836 = vld [vmem:[#allocation3 + $0x28] sm:$0xff]
      %v837 = vld [vmem:[#allocation3 + $0x30] sm:$0xff]
      %v838 = vld [vmem:[#allocation3 + $0x38] sm:$0xff]
      %v839 = vmax.f32 %v831, 1e-30
      %v840 = vmax.f32 %v832, 1e-30
      %v841 = vmax.f32 %v833, 1e-30
      %v842 = vmax.f32 %v834, 1e-30
      %v843 = vmax.f32 %v835, 1e-30
      %v844 = vmax.f32 %v836, 1e-30
      %v845 = vmax.f32 %v837, 1e-30
      %v846 = vmax.f32 %v838, 1e-30
      %v847 = vrcp.pop %v839
      %v848 = vrcp.pop %v840
      %v849 = vrcp.pop %v841
      %v850 = vrcp.pop %v842
      %v851 = vrcp.pop %v843
      %v852 = vrcp.pop %v844
      %v853 = vrcp.pop %v845
      %v854 = vrcp.pop %v846
      %v855 = vld [vmem:[#allocation4] sm:$0xff]
      %v856 = vld [vmem:[#allocation4 + $0x8] sm:$0xff]
      %v857 = vld [vmem:[#allocation4 + $0x10] sm:$0xff]
      %v858 = vld [vmem:[#allocation4 + $0x18] sm:$0xff]
      %v859 = vld [vmem:[#allocation4 + $0x20] sm:$0xff]
      %v860 = vld [vmem:[#allocation4 + $0x28] sm:$0xff]
      %v861 = vld [vmem:[#allocation4 + $0x30] sm:$0xff]
      %v862 = vld [vmem:[#allocation4 + $0x38] sm:$0xff]
      %864 = vset.pattern.permute.xlu0 0
      %865 = vperm.xlu0 %864, %v847
      %v866 = vpop.permute.xlu0 %865
      %869 = vset.pattern.permute.xlu0 0
      %870 = vperm.xlu0 %869, %v848
      %v871 = vpop.permute.xlu0 %870
      %874 = vset.pattern.permute.xlu0 0
      %875 = vperm.xlu0 %874, %v849
      %v876 = vpop.permute.xlu0 %875
      %879 = vset.pattern.permute.xlu0 0
      %880 = vperm.xlu0 %879, %v850
      %v881 = vpop.permute.xlu0 %880
      %884 = vset.pattern.permute.xlu0 0
      %885 = vperm.xlu0 %884, %v851
      %v886 = vpop.permute.xlu0 %885
      %889 = vset.pattern.permute.xlu0 0
      %890 = vperm.xlu0 %889, %v852
      %v891 = vpop.permute.xlu0 %890
      %894 = vset.pattern.permute.xlu0 0
      %895 = vperm.xlu0 %894, %v853
      %v896 = vpop.permute.xlu0 %895
      %899 = vset.pattern.permute.xlu0 0
      %900 = vperm.xlu0 %899, %v854
      %v901 = vpop.permute.xlu0 %900
      %v903 = vmul.f32 %v855, %v866
      %v904 = vmul.f32 %v856, %v871
      %v905 = vmul.f32 %v857, %v876
      %v906 = vmul.f32 %v858, %v881
      %v907 = vmul.f32 %v859, %v886
      %v908 = vmul.f32 %v860, %v891
      %v909 = vmul.f32 %v861, %v896
      %v910 = vmul.f32 %v862, %v901
      %vm911 = vcmask 80896
      %v913 = vsel %vm911, %v821, 0
      %v916 = vsel %vm911, %v822, 0
      %v919 = vsel %vm911, %v823, 0
      %v922 = vsel %vm911, %v824, 0
      %v925 = vsel %vm911, %v825, 0
      %v928 = vsel %vm911, %v826, 0
      %v931 = vsel %vm911, %v827, 0
      %v934 = vsel %vm911, %v828, 0
      %vm936 = vcmask 1041408
      %v938 = vsel %vm936, %v830, 0
      %940 = vmatprep.subr.mxu0 0.0
      %941 = vmatpush1.msra.mxu0 %v829
      %942 = vmatprep.subr.mxu0 0.0
      %943 = vmatpush1.msra.mxu0 %v938
      %944 = vmatprep.subr.mxu0 0.0
      %945 = vmatpush1.msra.mxu0 0.0
      %946 = vmatprep.subr.mxu0 0.0
      %947 = vmatpush1.msra.mxu0 0.0
      %948 = vmatprep.subr.mxu0 0.0
      %949 = vmatpush1.msra.mxu0 0.0
      %950 = vmatprep.subr.mxu0 0.0
      %951 = vmatpush1.msra.mxu0 0.0
      %952 = vmatprep.subr.mxu0 0.0
      %953 = vmatpush1.msra.mxu0 0.0
      %954 = vmatprep.subr.mxu0 0.0
      %955 = vmatpush1.msra.mxu0 0.0
      %956 = vmatprep.subr.mxu0 0.0
      %957 = vmatpush1.msra.mxu0 0.0
      %958 = vmatprep.subr.mxu0 0.0
      %959 = vmatpush1.msra.mxu0 0.0
      %960 = vmatprep.subr.mxu0 0.0
      %961 = vmatpush1.msra.mxu0 0.0
      %962 = vmatprep.subr.mxu0 0.0
      %963 = vmatpush1.msra.mxu0 0.0
      %964 = vmatprep.subr.mxu0 0.0
      %965 = vmatpush1.msra.mxu0 0.0
      %966 = vmatprep.subr.mxu0 0.0
      %967 = vmatpush1.msra.mxu0 0.0
      %968 = vmatprep.subr.mxu0 0.0
      %969 = vmatpush1.msra.mxu0 0.0
      %970 = vmatprep.subr.mxu0 0.0
      %971 = vmatpush1.msra.mxu0 0.0
      %972 = vmatprep.subr.mxu0 0.0
      %973 = vmatpush1.msra.mxu0 0.0
      %974 = vmatprep.subr.mxu0 0.0
      %975 = vmatpush1.msra.mxu0 0.0
      %976 = vmatprep.subr.mxu0 0.0
      %977 = vmatpush1.msra.mxu0 0.0
      %978 = vmatprep.subr.mxu0 0.0
      %979 = vmatpush1.msra.mxu0 0.0
      %980 = vmatprep.subr.mxu0 0.0
      %981 = vmatpush1.msra.mxu0 0.0
      %982 = vmatprep.subr.mxu0 0.0
      %983 = vmatpush1.msra.mxu0 0.0
      %984 = vmatprep.subr.mxu0 0.0
      %985 = vmatpush1.msra.mxu0 0.0
      %986 = vmatprep.subr.mxu0 0.0
      %987 = vmatpush1.msra.mxu0 0.0
      %988 = vmatprep.subr.mxu0 0.0
      %989 = vmatpush1.msra.mxu0 0.0
      %990 = vmatprep.subr.mxu0 0.0
      %991 = vmatpush1.msra.mxu0 0.0
      %992 = vmatprep.subr.mxu0 0.0
      %993 = vmatpush1.msra.mxu0 0.0
      %994 = vmatprep.subr.mxu0 0.0
      %995 = vmatpush1.msra.mxu0 0.0
      %996 = vmatprep.subr.mxu0 0.0
      %997 = vmatpush1.msra.mxu0 0.0
      %998 = vmatprep.subr.mxu0 0.0
      %999 = vmatpush1.msra.mxu0 0.0
      %1000 = vmatprep.subr.mxu0 0.0
      %1001 = vmatpush1.msra.mxu0 0.0
      %1002 = vmatprep.subr.mxu0 0.0
      %1003 = vmatpush1.msra.mxu0 0.0
      %1004 = vmatprep.mubr.f32.mxu0 0.0
      %1005 = vmatmul.mubr.f32.gmra.mrb[0].mxu0 %v913
      %v1006 = vpop.f32.mrb[0].mxu0
      %v1007 = vadd.f32 %v903, %v1006
      %v1008 = vpop.f32.mrb[0].mxu0
      %1009 = vmatprep.mubr.f32.mxu0 0.0
      %1010 = vmatmul.mubr.f32.gmra.mrb[0].mxu0 %v916
      %v1011 = vpop.f32.mrb[0].mxu0
      %v1012 = vadd.f32 %v904, %v1011
      %v1013 = vpop.f32.mrb[0].mxu0
      %1014 = vmatprep.mubr.f32.mxu0 0.0
      %1015 = vmatmul.mubr.f32.gmra.mrb[0].mxu0 %v919
      %v1016 = vpop.f32.mrb[0].mxu0
      %v1017 = vadd.f32 %v905, %v1016
      %v1018 = vpop.f32.mrb[0].mxu0
      %1019 = vmatprep.mubr.f32.mxu0 0.0
      %1020 = vmatmul.mubr.f32.gmra.mrb[0].mxu0 %v922
      %v1021 = vpop.f32.mrb[0].mxu0
      %v1022 = vadd.f32 %v906, %v1021
      %v1023 = vpop.f32.mrb[0].mxu0
      %1024 = vmatprep.mubr.f32.mxu0 0.0
      %1025 = vmatmul.mubr.f32.gmra.mrb[0].mxu0 %v925
      %v1026 = vpop.f32.mrb[0].mxu0
      %v1027 = vadd.f32 %v907, %v1026
      %v1028 = vpop.f32.mrb[0].mxu0
      %1029 = vmatprep.mubr.f32.mxu0 0.0
      %1030 = vmatmul.mubr.f32.gmra.mrb[0].mxu0 %v928
      %v1031 = vpop.f32.mrb[0].mxu0
      %v1032 = vadd.f32 %v908, %v1031
      %v1033 = vpop.f32.mrb[0].mxu0
      %1034 = vmatprep.mubr.f32.mxu0 0.0
      %1035 = vmatmul.mubr.f32.gmra.mrb[0].mxu0 %v931
      %v1036 = vpop.f32.mrb[0].mxu0
      %v1037 = vadd.f32 %v909, %v1036
      %v1038 = vpop.f32.mrb[0].mxu0
      %1039 = vmatprep.mubr.f32.mxu0 0.0
      %1040 = vmatmul.mubr.f32.gmra.mrb[0].mxu0 %v934
      %v1041 = vpop.f32.mrb[0].mxu0
      %v1042 = vadd.f32 %v910, %v1041
      %v1043 = vpop.f32.mrb[0].mxu0
      %1044 = vdwg.mxu0
      %1045 = vadd.xlane.f32.xlu0 %v1007
      %v1046 = vpop.xlane.xlu0 %1045
      %1047 = vadd.xlane.f32.xlu0 %v1012
      %v1048 = vpop.xlane.xlu0 %1047
      %1049 = vadd.xlane.f32.xlu0 %v1017
      %v1050 = vpop.xlane.xlu0 %1049
      %1051 = vadd.xlane.f32.xlu0 %v1022
      %v1052 = vpop.xlane.xlu0 %1051
      %1053 = vadd.xlane.f32.xlu0 %v1027
      %v1054 = vpop.xlane.xlu0 %1053
      %1055 = vadd.xlane.f32.xlu0 %v1032
      %v1056 = vpop.xlane.xlu0 %1055
      %1057 = vadd.xlane.f32.xlu0 %v1037
      %v1058 = vpop.xlane.xlu0 %1057
      %1059 = vadd.xlane.f32.xlu0 %v1042
      %v1060 = vpop.xlane.xlu0 %1059
      %v1061 = vrcp.pop 128.0
      %v1062 = vmul.f32 %v1046, %v1061
      %v1063 = vmul.f32 %v1048, %v1061
      %v1064 = vmul.f32 %v1050, %v1061
      %v1065 = vmul.f32 %v1052, %v1061
      %v1066 = vmul.f32 %v1054, %v1061
      %v1067 = vmul.f32 %v1056, %v1061
      %v1068 = vmul.f32 %v1058, %v1061
      %v1069 = vmul.f32 %v1060, %v1061
      %v1070 = vsub.f32 %v1007, %v1062
      %v1071 = vsub.f32 %v1012, %v1063
      %v1072 = vsub.f32 %v1017, %v1064
      %v1073 = vsub.f32 %v1022, %v1065
      %v1074 = vsub.f32 %v1027, %v1066
      %v1075 = vsub.f32 %v1032, %v1067
      %v1076 = vsub.f32 %v1037, %v1068
      %v1077 = vsub.f32 %v1042, %v1069
      %v1078 = vmul.f32 %v1070, %v1070
      %v1079 = vmul.f32 %v1071, %v1071
      %v1080 = vmul.f32 %v1072, %v1072
      %v1081 = vmul.f32 %v1073, %v1073
      %v1082 = vmul.f32 %v1074, %v1074
      %v1083 = vmul.f32 %v1075, %v1075
      %v1084 = vmul.f32 %v1076, %v1076
      %v1085 = vmul.f32 %v1077, %v1077
      %1086 = vadd.xlane.f32.xlu0 %v1078
      %v1087 = vpop.xlane.xlu0 %1086
      %1088 = vadd.xlane.f32.xlu0 %v1079
      %v1089 = vpop.xlane.xlu0 %1088
      %1090 = vadd.xlane.f32.xlu0 %v1080
      %v1091 = vpop.xlane.xlu0 %1090
      %1092 = vadd.xlane.f32.xlu0 %v1081
      %v1093 = vpop.xlane.xlu0 %1092
      %1094 = vadd.xlane.f32.xlu0 %v1082
      %v1095 = vpop.xlane.xlu0 %1094
      %1096 = vadd.xlane.f32.xlu0 %v1083
      %v1097 = vpop.xlane.xlu0 %1096
      %1098 = vadd.xlane.f32.xlu0 %v1084
      %v1099 = vpop.xlane.xlu0 %1098
      %1100 = vadd.xlane.f32.xlu0 %v1085
      %v1101 = vpop.xlane.xlu0 %1100
      %v1102 = vmul.f32 %v1087, %v1061
      %v1103 = vmul.f32 %v1089, %v1061
      %v1104 = vmul.f32 %v1091, %v1061
      %v1105 = vmul.f32 %v1093, %v1061
      %v1106 = vmul.f32 %v1095, %v1061
      %v1107 = vmul.f32 %v1097, %v1061
      %v1108 = vmul.f32 %v1099, %v1061
      %v1109 = vmul.f32 %v1101, %v1061
      %v1110 = vadd.f32 %v1102, 1e-05
      %v1111 = vadd.f32 %v1103, 1e-05
      %v1112 = vadd.f32 %v1104, 1e-05
      %v1113 = vadd.f32 %v1105, 1e-05
      %v1114 = vadd.f32 %v1106, 1e-05
      %v1115 = vadd.f32 %v1107, 1e-05
      %v1116 = vadd.f32 %v1108, 1e-05
      %v1117 = vadd.f32 %v1109, 1e-05
      %v1118 = vrsqrt.pop %v1110
      %v1119 = vrsqrt.pop %v1111
      %v1120 = vrsqrt.pop %v1112
      %v1121 = vrsqrt.pop %v1113
      %v1122 = vrsqrt.pop %v1114
      %v1123 = vrsqrt.pop %v1115
      %v1124 = vrsqrt.pop %v1116
      %v1125 = vrsqrt.pop %v1117
      %v1126 = vmul.f32 %v1070, %v1118
      %v1127 = vmul.f32 %v1071, %v1119
      %v1128 = vmul.f32 %v1072, %v1120
      %v1129 = vmul.f32 %v1073, %v1121
      %v1130 = vmul.f32 %v1074, %v1122
      %v1131 = vmul.f32 %v1075, %v1123
      %v1132 = vmul.f32 %v1076, %v1124
      %v1133 = vmul.f32 %v1077, %v1125
      %v1134 = vld [vmem:[%s7] sm:$0x1]
      %v1136 = vlaneseq
      %v1137 = vshrl.u32 %v1136, 7
      %v1138 = vsub.s32 0, %v1137
      %v1139 = vrot.slane %v1134, %v1138
      %v1141 = vmul.f32 %v1126, %v1139
      %v1142 = vmul.f32 %v1127, %v1139
      %v1143 = vmul.f32 %v1128, %v1139
      %v1144 = vmul.f32 %v1129, %v1139
      %v1145 = vmul.f32 %v1130, %v1139
      %v1146 = vmul.f32 %v1131, %v1139
      %v1147 = vmul.f32 %v1132, %v1139
      %v1148 = vmul.f32 %v1133, %v1139
      %v1149 = vld [vmem:[%s8] sm:$0x1]
      %v1151 = vlaneseq
      %v1152 = vshrl.u32 %v1151, 7
      %v1153 = vsub.s32 0, %v1152
      %v1154 = vrot.slane %v1149, %v1153
      %v1156 = vadd.f32 %v1141, %v1154
      %v1157 = vadd.f32 %v1142, %v1154
      %v1158 = vadd.f32 %v1143, %v1154
      %v1159 = vadd.f32 %v1144, %v1154
      %v1160 = vadd.f32 %v1145, %v1154
      %v1161 = vadd.f32 %v1146, %v1154
      %v1162 = vadd.f32 %v1147, %v1154
      %v1163 = vadd.f32 %v1148, %v1154
      %v1164 = vld [vmem:[%s9] sm:$0xff]
      %v1165 = vld [vmem:[%s9 + $0x8] sm:$0xff]
      %v1166 = vld [vmem:[%s9 + $0x10] sm:$0xff]
      %v1167 = vld [vmem:[%s9 + $0x18] sm:$0xff]
      %v1168 = vld [vmem:[%s9 + $0x20] sm:$0xff]
      %v1169 = vld [vmem:[%s9 + $0x28] sm:$0xff]
      %v1170 = vld [vmem:[%s9 + $0x30] sm:$0xff]
      %v1171 = vld [vmem:[%s9 + $0x38] sm:$0xff]
      %v1172 = vld [vmem:[%s9 + $0x40] sm:$0xff]
      %v1173 = vld [vmem:[%s9 + $0x48] sm:$0xff]
      %v1174 = vld [vmem:[%s9 + $0x50] sm:$0xff]
      %v1175 = vld [vmem:[%s9 + $0x58] sm:$0xff]
      %v1176 = vld [vmem:[%s9 + $0x60] sm:$0xff]
      %v1177 = vld [vmem:[%s9 + $0x68] sm:$0xff]
      %v1178 = vld [vmem:[%s9 + $0x70] sm:$0xff]
      %v1179 = vld [vmem:[%s9 + $0x78] sm:$0xff]
      %v1180 = vld [vmem:[%s10] sm:$0x1]
      %v1182 = vlaneseq
      %v1183 = vshrl.u32 %v1182, 7
      %v1184 = vsub.s32 0, %v1183
      %v1185 = vrot.slane %v1180, %v1184
      %1187 = vmatprep.subr.mxu0 0.0
      %1188 = vmatpush1.msra.mxu0 %v1164
      %1189 = vmatprep.subr.mxu0 0.0
      %1190 = vmatpush1.msra.mxu0 %v1165
      %1191 = vmatprep.subr.mxu0 0.0
      %1192 = vmatpush1.msra.mxu0 %v1166
      %1193 = vmatprep.subr.mxu0 0.0
      %1194 = vmatpush1.msra.mxu0 %v1167
      %1195 = vmatprep.subr.mxu0 0.0
      %1196 = vmatpush1.msra.mxu0 %v1168
      %1197 = vmatprep.subr.mxu0 0.0
      %1198 = vmatpush1.msra.mxu0 %v1169
      %1199 = vmatprep.subr.mxu0 0.0
      %1200 = vmatpush1.msra.mxu0 %v1170
      %1201 = vmatprep.subr.mxu0 0.0
      %1202 = vmatpush1.msra.mxu0 %v1171
      %1203 = vmatprep.subr.mxu0 0.0
      %1204 = vmatpush1.msra.mxu0 %v1172
      %1205 = vmatprep.subr.mxu0 0.0
      %1206 = vmatpush1.msra.mxu0 %v1173
      %1207 = vmatprep.subr.mxu0 0.0
      %1208 = vmatpush1.msra.mxu0 %v1174
      %1209 = vmatprep.subr.mxu0 0.0
      %1210 = vmatpush1.msra.mxu0 %v1175
      %1211 = vmatprep.subr.mxu0 0.0
      %1212 = vmatpush1.msra.mxu0 %v1176
      %1213 = vmatprep.subr.mxu0 0.0
      %1214 = vmatpush1.msra.mxu0 %v1177
      %1215 = vmatprep.subr.mxu0 0.0
      %1216 = vmatpush1.msra.mxu0 %v1178
      %1217 = vmatprep.subr.mxu0 0.0
      %1218 = vmatpush1.msra.mxu0 %v1179
      %1219 = vmatprep.subr.mxu0 0.0
      %1220 = vmatpush1.msra.mxu0 0.0
      %1221 = vmatprep.subr.mxu0 0.0
      %1222 = vmatpush1.msra.mxu0 0.0
      %1223 = vmatprep.subr.mxu0 0.0
      %1224 = vmatpush1.msra.mxu0 0.0
      %1225 = vmatprep.subr.mxu0 0.0
      %1226 = vmatpush1.msra.mxu0 0.0
      %1227 = vmatprep.subr.mxu0 0.0
      %1228 = vmatpush1.msra.mxu0 0.0
      %1229 = vmatprep.subr.mxu0 0.0
      %1230 = vmatpush1.msra.mxu0 0.0
      %1231 = vmatprep.subr.mxu0 0.0
      %1232 = vmatpush1.msra.mxu0 0.0
      %1233 = vmatprep.subr.mxu0 0.0
      %1234 = vmatpush1.msra.mxu0 0.0
      %1235 = vmatprep.subr.mxu0 0.0
      %1236 = vmatpush1.msra.mxu0 0.0
      %1237 = vmatprep.subr.mxu0 0.0
      %1238 = vmatpush1.msra.mxu0 0.0
      %1239 = vmatprep.subr.mxu0 0.0
      %1240 = vmatpush1.msra.mxu0 0.0
      %1241 = vmatprep.subr.mxu0 0.0
      %1242 = vmatpush1.msra.mxu0 0.0
      %1243 = vmatprep.subr.mxu0 0.0
      %1244 = vmatpush1.msra.mxu0 0.0
      %1245 = vmatprep.subr.mxu0 0.0
      %1246 = vmatpush1.msra.mxu0 0.0
      %1247 = vmatprep.subr.mxu0 0.0
      %1248 = vmatpush1.msra.mxu0 0.0
      %1249 = vmatprep.subr.mxu0 0.0
      %1250 = vmatpush1.msra.mxu0 0.0
      %1251 = vmatprep.mubr.f32.mxu0 0.0
      %1252 = vmatmul.mubr.f32.gmra.mrb[0].mxu0 %v1156
      %v1253 = vpop.f32.mrb[0].mxu0
      %v1254 = vadd.f32 %v1185, %v1253
      %v1255 = vpop.f32.mrb[0].mxu0
      %1256 = vmatprep.mubr.f32.mxu0 0.0
      %1257 = vmatmul.mubr.f32.gmra.mrb[0].mxu0 %v1157
      %v1258 = vpop.f32.mrb[0].mxu0
      %v1259 = vadd.f32 %v1185, %v1258
      %v1260 = vpop.f32.mrb[0].mxu0
      %1261 = vmatprep.mubr.f32.mxu0 0.0
      %1262 = vmatmul.mubr.f32.gmra.mrb[0].mxu0 %v1158
      %v1263 = vpop.f32.mrb[0].mxu0
      %v1264 = vadd.f32 %v1185, %v1263
      %v1265 = vpop.f32.mrb[0].mxu0
      %1266 = vmatprep.mubr.f32.mxu0 0.0
      %1267 = vmatmul.mubr.f32.gmra.mrb[0].mxu0 %v1159
      %v1268 = vpop.f32.mrb[0].mxu0
      %v1269 = vadd.f32 %v1185, %v1268
      %v1270 = vpop.f32.mrb[0].mxu0
      %1271 = vmatprep.mubr.f32.mxu0 0.0
      %1272 = vmatmul.mubr.f32.gmra.mrb[0].mxu0 %v1160
      %v1273 = vpop.f32.mrb[0].mxu0
      %v1274 = vadd.f32 %v1185, %v1273
      %v1275 = vpop.f32.mrb[0].mxu0
      %1276 = vmatprep.mubr.f32.mxu0 0.0
      %1277 = vmatmul.mubr.f32.gmra.mrb[0].mxu0 %v1161
      %v1278 = vpop.f32.mrb[0].mxu0
      %v1279 = vadd.f32 %v1185, %v1278
      %v1280 = vpop.f32.mrb[0].mxu0
      %1281 = vmatprep.mubr.f32.mxu0 0.0
      %1282 = vmatmul.mubr.f32.gmra.mrb[0].mxu0 %v1162
      %v1283 = vpop.f32.mrb[0].mxu0
      %v1284 = vadd.f32 %v1185, %v1283
      %v1285 = vpop.f32.mrb[0].mxu0
      %1286 = vmatprep.mubr.f32.mxu0 0.0
      %1287 = vmatmul.mubr.f32.gmra.mrb[0].mxu0 %v1163
      %v1288 = vpop.f32.mrb[0].mxu0
      %v1289 = vadd.f32 %v1185, %v1288
      %v1290 = vpop.f32.mrb[0].mxu0
      %1291 = vdwg.mxu0
      %v1292 = vxor.u32 %v1254, 2147483648
      %v1293 = vxor.u32 %v1259, 2147483648
      %v1294 = vxor.u32 %v1264, 2147483648
      %v1295 = vxor.u32 %v1269, 2147483648
      %v1296 = vxor.u32 %v1274, 2147483648
      %v1297 = vxor.u32 %v1279, 2147483648
      %v1298 = vxor.u32 %v1284, 2147483648
      %v1299 = vxor.u32 %v1289, 2147483648
      %v1300 = vmul.f32 %v1292, 1.442695
      %v1301 = vpow.pop %v1300
      %v1302 = vmul.f32 %v1293, 1.442695
      %v1303 = vpow.pop %v1302
      %v1304 = vmul.f32 %v1294, 1.442695
      %v1305 = vpow.pop %v1304
      %v1306 = vmul.f32 %v1295, 1.442695
      %v1307 = vpow.pop %v1306
      %v1308 = vmul.f32 %v1296, 1.442695
      %v1309 = vpow.pop %v1308
      %v1310 = vmul.f32 %v1297, 1.442695
      %v1311 = vpow.pop %v1310
      %v1312 = vmul.f32 %v1298, 1.442695
      %v1313 = vpow.pop %v1312
      %v1314 = vmul.f32 %v1299, 1.442695
      %v1315 = vpow.pop %v1314
      %v1316 = vadd.f32 %v1301, 1.0
      %v1317 = vadd.f32 %v1303, 1.0
      %v1318 = vadd.f32 %v1305, 1.0
      %v1319 = vadd.f32 %v1307, 1.0
      %v1320 = vadd.f32 %v1309, 1.0
      %v1321 = vadd.f32 %v1311, 1.0
      %v1322 = vadd.f32 %v1313, 1.0
      %v1323 = vadd.f32 %v1315, 1.0
      %v1324 = vrcp.pop %v1316
      %v1325 = vmul.f32 1.0, %v1324
      %v1326 = vrcp.pop %v1317
      %v1327 = vmul.f32 1.0, %v1326
      %v1328 = vrcp.pop %v1318
      %v1329 = vmul.f32 1.0, %v1328
      %v1330 = vrcp.pop %v1319
      %v1331 = vmul.f32 1.0, %v1330
      %v1332 = vrcp.pop %v1320
      %v1333 = vmul.f32 1.0, %v1332
      %v1334 = vrcp.pop %v1321
      %v1335 = vmul.f32 1.0, %v1334
      %v1336 = vrcp.pop %v1322
      %v1337 = vmul.f32 1.0, %v1336
      %v1338 = vrcp.pop %v1323
      %v1339 = vmul.f32 1.0, %v1338
      %v1340 = vmul.f32 %v1254, %v1325
      %v1341 = vmul.f32 %v1259, %v1327
      %v1342 = vmul.f32 %v1264, %v1329
      %v1343 = vmul.f32 %v1269, %v1331
      %v1344 = vmul.f32 %v1274, %v1333
      %v1345 = vmul.f32 %v1279, %v1335
      %v1346 = vmul.f32 %v1284, %v1337
      %v1347 = vmul.f32 %v1289, %v1339
      %v1348 = vld [vmem:[%s11] sm:$0xff]
      %v1349 = vld [vmem:[%s11 + $0x8] sm:$0xff]
      %v1350 = vld [vmem:[%s11 + $0x10] sm:$0xff]
      %v1351 = vld [vmem:[%s11 + $0x18] sm:$0xff]
      %v1352 = vld [vmem:[%s11 + $0x20] sm:$0xff]
      %v1353 = vld [vmem:[%s11 + $0x28] sm:$0xff]
      %v1354 = vld [vmem:[%s11 + $0x30] sm:$0xff]
      %v1355 = vld [vmem:[%s11 + $0x38] sm:$0xff]
      %v1356 = vld [vmem:[%s11 + $0x40] sm:$0xff]
      %v1357 = vld [vmem:[%s11 + $0x48] sm:$0xff]
      %v1358 = vld [vmem:[%s11 + $0x50] sm:$0xff]
      %v1359 = vld [vmem:[%s11 + $0x58] sm:$0xff]
      %v1360 = vld [vmem:[%s11 + $0x60] sm:$0xff]
      %v1361 = vld [vmem:[%s11 + $0x68] sm:$0xff]
      %v1362 = vld [vmem:[%s11 + $0x70] sm:$0xff]
      %v1363 = vld [vmem:[%s11 + $0x78] sm:$0xff]
      %v1364 = vld [vmem:[%s12] sm:$0x1]
      %v1366 = vlaneseq
      %v1367 = vshrl.u32 %v1366, 7
      %v1368 = vsub.s32 0, %v1367
      %v1369 = vrot.slane %v1364, %v1368
      %1371 = vmatprep.subr.mxu0 0.0
      %1372 = vmatpush1.msra.mxu0 %v1348
      %1373 = vmatprep.subr.mxu0 0.0
      %1374 = vmatpush1.msra.mxu0 %v1349
      %1375 = vmatprep.subr.mxu0 0.0
      %1376 = vmatpush1.msra.mxu0 %v1350
      %1377 = vmatprep.subr.mxu0 0.0
      %1378 = vmatpush1.msra.mxu0 %v1351
      %1379 = vmatprep.subr.mxu0 0.0
      %1380 = vmatpush1.msra.mxu0 %v1352
      %1381 = vmatprep.subr.mxu0 0.0
      %1382 = vmatpush1.msra.mxu0 %v1353
      %1383 = vmatprep.subr.mxu0 0.0
      %1384 = vmatpush1.msra.mxu0 %v1354
      %1385 = vmatprep.subr.mxu0 0.0
      %1386 = vmatpush1.msra.mxu0 %v1355
      %1387 = vmatprep.subr.mxu0 0.0
      %1388 = vmatpush1.msra.mxu0 %v1356
      %1389 = vmatprep.subr.mxu0 0.0
      %1390 = vmatpush1.msra.mxu0 %v1357
      %1391 = vmatprep.subr.mxu0 0.0
      %1392 = vmatpush1.msra.mxu0 %v1358
      %1393 = vmatprep.subr.mxu0 0.0
      %1394 = vmatpush1.msra.mxu0 %v1359
      %1395 = vmatprep.subr.mxu0 0.0
      %1396 = vmatpush1.msra.mxu0 %v1360
      %1397 = vmatprep.subr.mxu0 0.0
      %1398 = vmatpush1.msra.mxu0 %v1361
      %1399 = vmatprep.subr.mxu0 0.0
      %1400 = vmatpush1.msra.mxu0 %v1362
      %1401 = vmatprep.subr.mxu0 0.0
      %1402 = vmatpush1.msra.mxu0 %v1363
      %1403 = vmatprep.subr.mxu0 0.0
      %1404 = vmatpush1.msra.mxu0 0.0
      %1405 = vmatprep.subr.mxu0 0.0
      %1406 = vmatpush1.msra.mxu0 0.0
      %1407 = vmatprep.subr.mxu0 0.0
      %1408 = vmatpush1.msra.mxu0 0.0
      %1409 = vmatprep.subr.mxu0 0.0
      %1410 = vmatpush1.msra.mxu0 0.0
      %1411 = vmatprep.subr.mxu0 0.0
      %1412 = vmatpush1.msra.mxu0 0.0
      %1413 = vmatprep.subr.mxu0 0.0
      %1414 = vmatpush1.msra.mxu0 0.0
      %1415 = vmatprep.subr.mxu0 0.0
      %1416 = vmatpush1.msra.mxu0 0.0
      %1417 = vmatprep.subr.mxu0 0.0
      %1418 = vmatpush1.msra.mxu0 0.0
      %1419 = vmatprep.subr.mxu0 0.0
      %1420 = vmatpush1.msra.mxu0 0.0
      %1421 = vmatprep.subr.mxu0 0.0
      %1422 = vmatpush1.msra.mxu0 0.0
      %1423 = vmatprep.subr.mxu0 0.0
      %1424 = vmatpush1.msra.mxu0 0.0
      %1425 = vmatprep.subr.mxu0 0.0
      %1426 = vmatpush1.msra.mxu0 0.0
      %1427 = vmatprep.subr.mxu0 0.0
      %1428 = vmatpush1.msra.mxu0 0.0
      %1429 = vmatprep.subr.mxu0 0.0
      %1430 = vmatpush1.msra.mxu0 0.0
      %1431 = vmatprep.subr.mxu0 0.0
      %1432 = vmatpush1.msra.mxu0 0.0
      %1433 = vmatprep.subr.mxu0 0.0
      %1434 = vmatpush1.msra.mxu0 0.0
      %1435 = vmatprep.mubr.f32.mxu0 0.0
      %1436 = vmatmul.mubr.f32.gmra.mrb[0].mxu0 %v1340
      %v1437 = vpop.f32.mrb[0].mxu0
      %v1438 = vadd.f32 %v1369, %v1437
      %v1439 = vpop.f32.mrb[0].mxu0
      %1440 = vmatprep.mubr.f32.mxu0 0.0
      %1441 = vmatmul.mubr.f32.gmra.mrb[0].mxu0 %v1341
      %v1442 = vpop.f32.mrb[0].mxu0
      %v1443 = vadd.f32 %v1369, %v1442
      %v1444 = vpop.f32.mrb[0].mxu0
      %1445 = vmatprep.mubr.f32.mxu0 0.0
      %1446 = vmatmul.mubr.f32.gmra.mrb[0].mxu0 %v1342
      %v1447 = vpop.f32.mrb[0].mxu0
      %v1448 = vadd.f32 %v1369, %v1447
      %v1449 = vpop.f32.mrb[0].mxu0
      %1450 = vmatprep.mubr.f32.mxu0 0.0
      %1451 = vmatmul.mubr.f32.gmra.mrb[0].mxu0 %v1343
      %v1452 = vpop.f32.mrb[0].mxu0
      %v1453 = vadd.f32 %v1369, %v1452
      %v1454 = vpop.f32.mrb[0].mxu0
      %1455 = vmatprep.mubr.f32.mxu0 0.0
      %1456 = vmatmul.mubr.f32.gmra.mrb[0].mxu0 %v1344
      %v1457 = vpop.f32.mrb[0].mxu0
      %v1458 = vadd.f32 %v1369, %v1457
      %v1459 = vpop.f32.mrb[0].mxu0
      %1460 = vmatprep.mubr.f32.mxu0 0.0
      %1461 = vmatmul.mubr.f32.gmra.mrb[0].mxu0 %v1345
      %v1462 = vpop.f32.mrb[0].mxu0
      %v1463 = vadd.f32 %v1369, %v1462
      %v1464 = vpop.f32.mrb[0].mxu0
      %1465 = vmatprep.mubr.f32.mxu0 0.0
      %1466 = vmatmul.mubr.f32.gmra.mrb[0].mxu0 %v1346
      %v1467 = vpop.f32.mrb[0].mxu0
      %v1468 = vadd.f32 %v1369, %v1467
      %v1469 = vpop.f32.mrb[0].mxu0
      %1470 = vmatprep.mubr.f32.mxu0 0.0
      %1471 = vmatmul.mubr.f32.gmra.mrb[0].mxu0 %v1347
      %v1472 = vpop.f32.mrb[0].mxu0
      %v1473 = vadd.f32 %v1369, %v1472
      %v1474 = vpop.f32.mrb[0].mxu0
      %1475 = vdwg.mxu0
      %v1476 = vxor.u32 %v1438, 2147483648
      %v1477 = vxor.u32 %v1443, 2147483648
      %v1478 = vxor.u32 %v1448, 2147483648
      %v1479 = vxor.u32 %v1453, 2147483648
      %v1480 = vxor.u32 %v1458, 2147483648
      %v1481 = vxor.u32 %v1463, 2147483648
      %v1482 = vxor.u32 %v1468, 2147483648
      %v1483 = vxor.u32 %v1473, 2147483648
      %v1484 = vmul.f32 %v1476, 1.442695
      %v1485 = vpow.pop %v1484
      %v1486 = vmul.f32 %v1477, 1.442695
      %v1487 = vpow.pop %v1486
      %v1488 = vmul.f32 %v1478, 1.442695
      %v1489 = vpow.pop %v1488
      %v1490 = vmul.f32 %v1479, 1.442695
      %v1491 = vpow.pop %v1490
      %v1492 = vmul.f32 %v1480, 1.442695
      %v1493 = vpow.pop %v1492
      %v1494 = vmul.f32 %v1481, 1.442695
      %v1495 = vpow.pop %v1494
      %v1496 = vmul.f32 %v1482, 1.442695
      %v1497 = vpow.pop %v1496
      %v1498 = vmul.f32 %v1483, 1.442695
      %v1499 = vpow.pop %v1498
      %v1500 = vadd.f32 %v1485, 1.0
      %v1501 = vadd.f32 %v1487, 1.0
      %v1502 = vadd.f32 %v1489, 1.0
      %v1503 = vadd.f32 %v1491, 1.0
      %v1504 = vadd.f32 %v1493, 1.0
      %v1505 = vadd.f32 %v1495, 1.0
      %v1506 = vadd.f32 %v1497, 1.0
      %v1507 = vadd.f32 %v1499, 1.0
      %v1508 = vrcp.pop %v1500
      %v1509 = vmul.f32 1.0, %v1508
      %v1510 = vrcp.pop %v1501
      %v1511 = vmul.f32 1.0, %v1510
      %v1512 = vrcp.pop %v1502
      %v1513 = vmul.f32 1.0, %v1512
      %v1514 = vrcp.pop %v1503
      %v1515 = vmul.f32 1.0, %v1514
      %v1516 = vrcp.pop %v1504
      %v1517 = vmul.f32 1.0, %v1516
      %v1518 = vrcp.pop %v1505
      %v1519 = vmul.f32 1.0, %v1518
      %v1520 = vrcp.pop %v1506
      %v1521 = vmul.f32 1.0, %v1520
      %v1522 = vrcp.pop %v1507
      %v1523 = vmul.f32 1.0, %v1522
      %v1524 = vmul.f32 %v1438, %v1509
      %v1525 = vmul.f32 %v1443, %v1511
      %v1526 = vmul.f32 %v1448, %v1513
      %v1527 = vmul.f32 %v1453, %v1515
      %v1528 = vmul.f32 %v1458, %v1517
      %v1529 = vmul.f32 %v1463, %v1519
      %v1530 = vmul.f32 %v1468, %v1521
      %v1531 = vmul.f32 %v1473, %v1523
      %1532 = vst [vmem:[#allocation7] sm:$0xff] %v1524
      %1533 = vst [vmem:[#allocation7 + $0x8] sm:$0xff] %v1525
      %1534 = vst [vmem:[#allocation7 + $0x10] sm:$0xff] %v1526
      %1535 = vst [vmem:[#allocation7 + $0x18] sm:$0xff] %v1527
      %1536 = vst [vmem:[#allocation7 + $0x20] sm:$0xff] %v1528
      %1537 = vst [vmem:[#allocation7 + $0x28] sm:$0xff] %v1529
      %1538 = vst [vmem:[#allocation7 + $0x30] sm:$0xff] %v1530
      %1539 = vst [vmem:[#allocation7 + $0x38] sm:$0xff] %v1531
    $region61: #{_forward_impl.3} parent=1 // pred_fallthru
      _
    // Predicated region
    $region62: #{_forward_impl.3} parent=1 // pred_check
      _
    $region63: #{_forward_impl.3} parent=1 // pred_check_branch
      %1541 = sbr.rel (0) target = $region65
    $region64: #{_forward_impl.3} parent=1 // pred_region
      %s1543 = ssub.s32 1024, 1024
      %1544 = vsyncadd [#allocation8], %s1543
      %s1545 = sshll.u32 [#allocation7], 4
      %s1546 = int_to_ptr.vmem [resolvable:$true] %s1545
      %1551 = dma.vmem_to_hbm [thread:$0]  %s1546, 1024, %s13, [#allocation8], 128, 128, 8
    $region65: #{_forward_impl.3} parent=1 // pred_fallthru
      _
    // Predicated region
    $region66: #{_forward_impl.3} parent=1 // pred_check
      _
    $region67: #{_forward_impl.3} parent=1 // pred_check_branch
      %1553 = sbr.rel (0) target = $region69
    $region68: #{_forward_impl.3} parent=1 // pred_region
      %1554 = dma.done [#allocation8], 1024
    $region69: #{_forward_impl.3} parent=1 // pred_fallthru
      _
    %1555 = vsyncpa [#allocation8], 1

</llo_original>
